<compile_context>
chip_gen: v7x
topology: tpu7x:2x2x1
jax: 0.10.0
libtpu: 0.0.40
codegen_flags: <defaults>
</compile_context>

<pallas_src>
from functools import partial

import jax
import jax.numpy as jnp
from jax.experimental import pallas as pl
from jax.experimental.pallas import tpu as pltpu


# ----------------------------------------------------------------------------
# Fused kernel: one image per grid step; all 4 levels, both branches, both conv
# stages computed with two tap-stacked GEMMs.
# ----------------------------------------------------------------------------
def _pffm_kernel(dm5_ref, dm4_ref, dm3_ref, dm2_ref,
                 d5_ref, d4_ref, d3_ref, d2_ref,
                 am5_ref, am4_ref, am3_ref, am2_ref,
                 mask_ref, w1_ref, w2_ref, b1_ref, b2_ref,
                 o5_ref, o4_ref, o3_ref, o2_ref,
                 x1_ref, rhs1_ref, rhs2_ref,
                 *, H, W, in_d, out_d):
    S = H * W
    L = 8 * S          # lane extent of the refine stage (4 levels x 2 branches)
    Lh = 4 * S         # lane extent of the concat stage (4 levels)
    # Flattened (row-major) spatial offset of each 3x3 tap, t = ky*3 + kx.
    offsets = tuple(dy * W + dx for dy in (-1, 0, 1) for dx in (-1, 0, 1))

    mask = mask_ref[...]                       # (9, 1, L), loaded once

    def masked_roll(x, t):
        # Column p of the result sees the tap-t source pixel of column p;
        # wrapped / out-of-image columns are zeroed (== zero 'same' padding).
        # Any wrap across a level/branch segment seam is an out-of-image tap,
        # so lane-stacking never cross-contaminates.
        s = offsets[t]
        if s == 0:
            return x                           # center tap: no shift, always valid
        return pltpu.roll(x, (-s) % L, 1) * mask[t]

    # ---- Stage 1: conv_refinement (shared weights) on all 8 (branch, level)
    # pairs at once; the elementwise input sums are fused here.
    seg_inputs = ((dm5_ref, d5_ref), (dm4_ref, d4_ref),
                  (dm3_ref, d3_ref), (dm2_ref, d2_ref),
                  (d5_ref, am5_ref), (d4_ref, am4_ref),
                  (d3_ref, am3_ref), (d2_ref, am2_ref))
    for i, (a_ref, b_ref) in enumerate(seg_inputs):
        x1_ref[:, i * S:(i + 1) * S] = a_ref[...] + b_ref[...]
    x1 = x1_ref[...]                           # (in_d, 8*S)

    for t in range(9):                         # tap-stacked GEMM RHS (9*in_d, 8*S)
        rhs1_ref[t * in_d:(t + 1) * in_d, :] = masked_roll(x1, t)

    r = jnp.maximum(
        jnp.dot(w1_ref[...], rhs1_ref[...], preferred_element_type=jnp.float32)
        + b1_ref[...], 0.0)                    # (in_d, 8*S)

    # ---- Stage 2: conv_concatenate.  torch.cat([r1, r2], dim=1) is realized
    # by stacking the two branch halves of r along sublanes per tap.
    for t in range(9):
        rt = masked_roll(r, t)                 # (in_d, 8*S)
        base = t * 2 * in_d
        rhs2_ref[base:base + in_d, :] = rt[:, :Lh]               # r1 channels
        rhs2_ref[base + in_d:base + 2 * in_d, :] = rt[:, Lh:]    # r2 channels

    y = jnp.maximum(
        jnp.dot(w2_ref[...], rhs2_ref[...], preferred_element_type=jnp.float32)
        + b2_ref[...], 0.0)                    # (out_d, 4*S)

    o5_ref[...] = y[:, 0 * S:1 * S].astype(o5_ref.dtype)
    o4_ref[...] = y[:, 1 * S:2 * S].astype(o4_ref.dtype)
    o3_ref[...] = y[:, 2 * S:3 * S].astype(o3_ref.dtype)
    o2_ref[...] = y[:, 3 * S:4 * S].astype(o2_ref.dtype)


# ----------------------------------------------------------------------------
# Spatial-only edge masks, tiled over the n_seg lane-stacked segments:
# mask[t, 0, seg*S + y*W + x] == 1 iff the tap-t source pixel is inside the
# image.  Shape (9, 1, n_seg*S): broadcasts over channels in-kernel.
# ----------------------------------------------------------------------------
def _edge_masks(H, W, n_seg):
    y = jnp.arange(H)[:, None]
    x = jnp.arange(W)[None, :]
    taps = []
    for dy in (-1, 0, 1):
        for dx in (-1, 0, 1):
            ok = ((y + dy >= 0) & (y + dy < H) & (x + dx >= 0) & (x + dx < W))
            taps.append(ok.reshape(H * W))
    m = jnp.stack(taps, axis=0).astype(jnp.float32)   # (9, S)
    m = jnp.tile(m, (1, n_seg))                       # (9, n_seg*S)
    return m[:, None, :]                              # (9, 1, n_seg*S)


# ----------------------------------------------------------------------------
# Parameter construction (deterministic, synthetic) + eval-mode BN folding.
# ----------------------------------------------------------------------------
def _fold_bn(conv_b, gamma, beta, running_mean, running_var, eps=1e-5):
    scale = gamma / jnp.sqrt(running_var + eps)
    bias = (conv_b - running_mean) * scale + beta
    return scale, bias


def make_params(in_d, out_d, key):
    ks = jax.random.split(key, 12)
    # conv_refinement: Conv2d(in_d, in_d, 3, pad=1) + BatchNorm2d(in_d)  (OIHW)
    w1 = 0.1 * jax.random.normal(ks[0], (in_d, in_d, 3, 3), jnp.float32)
    b1 = 0.05 * jax.random.normal(ks[1], (in_d,), jnp.float32)
    g1 = 1.0 + 0.1 * jax.random.normal(ks[2], (in_d,), jnp.float32)
    be1 = 0.05 * jax.random.normal(ks[3], (in_d,), jnp.float32)
    rm1 = 0.1 * jax.random.normal(ks[4], (in_d,), jnp.float32)
    rv1 = 0.5 + jax.random.uniform(ks[5], (in_d,), jnp.float32)
    s1, bb1 = _fold_bn(b1, g1, be1, rm1, rv1)

    # conv_concatenate: Conv2d(2*in_d, out_d, 3, pad=1) + BatchNorm2d(out_d)
    w2 = 0.1 * jax.random.normal(ks[6], (out_d, 2 * in_d, 3, 3), jnp.float32)
    b2 = 0.05 * jax.random.normal(ks[7], (out_d,), jnp.float32)
    g2 = 1.0 + 0.1 * jax.random.normal(ks[8], (out_d,), jnp.float32)
    be2 = 0.05 * jax.random.normal(ks[9], (out_d,), jnp.float32)
    rm2 = 0.1 * jax.random.normal(ks[10], (out_d,), jnp.float32)
    rv2 = 0.5 + jax.random.uniform(ks[11], (out_d,), jnp.float32)
    s2, bb2 = _fold_bn(b2, g2, be2, rm2, rv2)

    # Tap-major, BN-scale-folded, flattened GEMM weights:
    #   w_flat[co, t*Cin + ci] == scale[co] * w[co, ci, ky, kx],  t = ky*3 + kx,
    # matching the tap-stacked RHS row order built in the kernel.
    def flatten(w, scale):
        o, i = w.shape[0], w.shape[1]
        w_t = jnp.transpose(w, (2, 3, 0, 1)).reshape(9, o, i) * scale[None, :, None]
        return jnp.transpose(w_t, (1, 0, 2)).reshape(o, 9 * i)

    return dict(
        # raw (reference path)
        w1_oihw=w1, s1=s1, b1_fold=bb1, w2_oihw=w2, s2=s2, b2_fold=bb2,
        # kernel-ready
        w1_flat=flatten(w1, s1), w2_flat=flatten(w2, s2),
        b1k=bb1[:, None], b2k=bb2[:, None],
    )


# ----------------------------------------------------------------------------
# Module forward (NCHW in / NCHW out, like PyTorch).
# ----------------------------------------------------------------------------
def primary_feature_fusion_forward(params, dm5, dm4, dm3, dm2,
                                   d5, d4, d3, d2, am5, am4, am3, am2):
    N, in_d, H, W = dm5.shape
    S = H * W
    out_d = params["w2_flat"].shape[0]

    # NCHW -> (N, C, H*W): free reshape; no transpose / pad / add / concat here.
    flat = lambda x: x.astype(jnp.float32).reshape(N, in_d, S)
    data = [flat(x) for x in (dm5, dm4, dm3, dm2, d5, d4, d3, d2, am5, am4, am3, am2)]
    masks = _edge_masks(H, W, 8)            # (9, 1, 8*S), spatial only

    data_spec = pl.BlockSpec((None, in_d, S), lambda b: (b, 0, 0))
    out_spec = pl.BlockSpec((None, out_d, S), lambda b: (b, 0, 0))
    in_specs = [data_spec] * 12 + [
        pl.BlockSpec((9, 1, 8 * S), lambda b: (0, 0, 0)),        # edge masks (resident)
        pl.BlockSpec((in_d, 9 * in_d), lambda b: (0, 0)),        # w1 (folded, flat)
        pl.BlockSpec((out_d, 18 * in_d), lambda b: (0, 0)),      # w2 (folded, flat)
        pl.BlockSpec((in_d, 1), lambda b: (0, 0)),               # b1 (folded)
        pl.BlockSpec((out_d, 1), lambda b: (0, 0)),              # b2 (folded)
    ]

    kernel = partial(_pffm_kernel, H=H, W=W, in_d=in_d, out_d=out_d)
    outs = pl.pallas_call(
        kernel,
        out_shape=tuple(jax.ShapeDtypeStruct((N, out_d, S), jnp.float32)
                        for _ in range(4)),
        grid=(N,),
        in_specs=in_specs,
        out_specs=(out_spec,) * 4,
        scratch_shapes=[
            pltpu.VMEM((in_d, 8 * S), jnp.float32),        # branch/level-stacked input
            pltpu.VMEM((9 * in_d, 8 * S), jnp.float32),    # tap-stacked refine RHS
            pltpu.VMEM((18 * in_d, 4 * S), jnp.float32),   # tap-stacked concat RHS
        ],
        compiler_params=pltpu.CompilerParams(
            dimension_semantics=("parallel",)),
    )(*data, masks, params["w1_flat"], params["w2_flat"],
      params["b1k"], params["b2k"])

    # (N, out_d, H*W) is flattened NCHW -> free reshape back.
    return tuple(o.reshape(N, out_d, H, W) for o in outs)


# ----------------------------------------------------------------------------
# Pure-JAX reference (lax.conv, NCHW) for the correctness check.
# ----------------------------------------------------------------------------
def _ref_conv_bn_relu(x, w_oihw, scale, bias):
    y = jax.lax.conv_general_dilated(
        x.astype(jnp.float32), w_oihw, window_strides=(1, 1),
        padding=((1, 1), (1, 1)),
        dimension_numbers=("NCHW", "OIHW", "NCHW"),
        precision=jax.lax.Precision.HIGHEST)
    y = y * scale[None, :, None, None] + bias[None, :, None, None]
    return jnp.maximum(y, 0.0)


def _ref_forward(params, dm5, dm4, dm3, dm2, d5, d4, d3, d2, am5, am4, am3, am2):
    cr = lambda x: _ref_conv_bn_relu(x, params["w1_oihw"], params["s1"],
                                     params["b1_fold"])
    cc = lambda x: _ref_conv_bn_relu(x, params["w2_oihw"], params["s2"],
                                     params["b2_fold"])
    r1 = [cr(dm5 + d5), cr(dm4 + d4), cr(dm3 + d3), cr(dm2 + d2)]
    r2 = [cr(d5 + am5), cr(d4 + am4), cr(d3 + am3), cr(d2 + am2)]
    return tuple(cc(jnp.concatenate([a, b], axis=1)) for a, b in zip(r1, r2))


if __name__ == "__main__":
    in_d, out_d = 4, 8
    N, H, W = 2, 16, 16

    key = jax.random.PRNGKey(0)
    pkey, xkey = jax.random.split(key)
    params = make_params(in_d, out_d, pkey)

    xkeys = jax.random.split(xkey, 12)
    inputs = [jax.random.normal(k, (N, in_d, H, W), jnp.float32) for k in xkeys]

    outs = primary_feature_fusion_forward(params, *inputs)
    outs = jax.block_until_ready(outs)

    refs = _ref_forward(params, *inputs)
    for o, r in zip(outs, refs):
        assert o.shape == (N, out_d, H, W)
        err = float(jnp.max(jnp.abs(o - r)))
        assert err < 1e-3, f"mismatch vs reference conv: {err}"

    print("KERNEL_OK")
</pallas_src>

<mosaic_0001>
module attributes {stable_mosaic.version = 11 : i64} {
  func.func @_pffm_kernel(%arg0: i32, %arg1: memref<1x4x256xf32, #tpu.memory_space<vmem>>, %arg2: memref<1x4x256xf32, #tpu.memory_space<vmem>>, %arg3: memref<1x4x256xf32, #tpu.memory_space<vmem>>, %arg4: memref<1x4x256xf32, #tpu.memory_space<vmem>>, %arg5: memref<1x4x256xf32, #tpu.memory_space<vmem>>, %arg6: memref<1x4x256xf32, #tpu.memory_space<vmem>>, %arg7: memref<1x4x256xf32, #tpu.memory_space<vmem>>, %arg8: memref<1x4x256xf32, #tpu.memory_space<vmem>>, %arg9: memref<1x4x256xf32, #tpu.memory_space<vmem>>, %arg10: memref<1x4x256xf32, #tpu.memory_space<vmem>>, %arg11: memref<1x4x256xf32, #tpu.memory_space<vmem>>, %arg12: memref<1x4x256xf32, #tpu.memory_space<vmem>>, %arg13: memref<9x1x2048xf32, #tpu.memory_space<vmem>>, %arg14: memref<4x36xf32, #tpu.memory_space<vmem>>, %arg15: memref<8x72xf32, #tpu.memory_space<vmem>>, %arg16: memref<4x1xf32, #tpu.memory_space<vmem>>, %arg17: memref<8x1xf32, #tpu.memory_space<vmem>>, %arg18: memref<1x8x256xf32, #tpu.memory_space<vmem>>, %arg19: memref<1x8x256xf32, #tpu.memory_space<vmem>>, %arg20: memref<1x8x256xf32, #tpu.memory_space<vmem>>, %arg21: memref<1x8x256xf32, #tpu.memory_space<vmem>>, %arg22: memref<4x2048xf32, #tpu.memory_space<vmem>>, %arg23: memref<36x2048xf32, #tpu.memory_space<vmem>>, %arg24: memref<72x1024xf32, #tpu.memory_space<vmem>>) attributes {dimension_semantics = [#tpu.dimension_semantics<parallel>], iteration_bounds = array<i64: 2>, scalar_prefetch = 0 : i64, scratch_operands = 3 : i64, tpu.core_type = #tpu.core_type<tc>, window_params = [{transform_indices = @transform_0, window_bounds = array<i64: 1, 4, 256>}, {transform_indices = @transform_1, window_bounds = array<i64: 1, 4, 256>}, {transform_indices = @transform_2, window_bounds = array<i64: 1, 4, 256>}, {transform_indices = @transform_3, window_bounds = array<i64: 1, 4, 256>}, {transform_indices = @transform_4, window_bounds = array<i64: 1, 4, 256>}, {transform_indices = @transform_5, window_bounds = array<i64: 1, 4, 256>}, {transform_indices = @transform_6, window_bounds = array<i64: 1, 4, 256>}, {transform_indices = @transform_7, window_bounds = array<i64: 1, 4, 256>}, {transform_indices = @transform_8, window_bounds = array<i64: 1, 4, 256>}, {transform_indices = @transform_9, window_bounds = array<i64: 1, 4, 256>}, {transform_indices = @transform_10, window_bounds = array<i64: 1, 4, 256>}, {transform_indices = @transform_11, window_bounds = array<i64: 1, 4, 256>}, {pipeline_mode = #tpu.pipeline_mode<synchronous>, transform_indices = @transform_12, window_bounds = array<i64: 9, 1, 2048>}, {pipeline_mode = #tpu.pipeline_mode<synchronous>, transform_indices = @transform_13, window_bounds = array<i64: 4, 36>}, {pipeline_mode = #tpu.pipeline_mode<synchronous>, transform_indices = @transform_14, window_bounds = array<i64: 8, 72>}, {pipeline_mode = #tpu.pipeline_mode<synchronous>, transform_indices = @transform_15, window_bounds = array<i64: 4, 1>}, {pipeline_mode = #tpu.pipeline_mode<synchronous>, transform_indices = @transform_16, window_bounds = array<i64: 8, 1>}, {transform_indices = @transform_17, window_bounds = array<i64: 1, 8, 256>}, {transform_indices = @transform_18, window_bounds = array<i64: 1, 8, 256>}, {transform_indices = @transform_19, window_bounds = array<i64: 1, 8, 256>}, {transform_indices = @transform_20, window_bounds = array<i64: 1, 8, 256>}]} {
    %c0 = arith.constant 0 : index
    %c0_0 = arith.constant 0 : index
    %c0_1 = arith.constant 0 : index
    %0 = vector.load %arg13[%c0, %c0_0, %c0_1] : memref<9x1x2048xf32, #tpu.memory_space<vmem>>, vector<9x1x2048xf32>
    %c0_2 = arith.constant 0 : index
    %c0_3 = arith.constant 0 : index
    %c0_4 = arith.constant 0 : index
    %1 = vector.load %arg1[%c0_2, %c0_3, %c0_4] : memref<1x4x256xf32, #tpu.memory_space<vmem>>, vector<1x4x256xf32>
    %2 = vector.shape_cast %1 : vector<1x4x256xf32> to vector<4x256xf32>
    %c0_5 = arith.constant 0 : index
    %c0_6 = arith.constant 0 : index
    %c0_7 = arith.constant 0 : index
    %3 = vector.load %arg5[%c0_5, %c0_6, %c0_7] : memref<1x4x256xf32, #tpu.memory_space<vmem>>, vector<1x4x256xf32>
    %4 = vector.shape_cast %3 : vector<1x4x256xf32> to vector<4x256xf32>
    %5 = arith.addf %2, %4 : vector<4x256xf32>
    %c0_8 = arith.constant 0 : index
    %c0_9 = arith.constant 0 : index
    %6 = vector.load %arg22[%c0_8, %c0_9] : memref<4x2048xf32, #tpu.memory_space<vmem>>, vector<4x256xf32>
    tpu.vector_store %arg22[%c0_8, %c0_9], %5 {strides = array<i32>} : memref<4x2048xf32, #tpu.memory_space<vmem>>, vector<4x256xf32>,
    %c0_10 = arith.constant 0 : index
    %c0_11 = arith.constant 0 : index
    %c0_12 = arith.constant 0 : index
    %7 = vector.load %arg2[%c0_10, %c0_11, %c0_12] : memref<1x4x256xf32, #tpu.memory_space<vmem>>, vector<1x4x256xf32>
    %8 = vector.shape_cast %7 : vector<1x4x256xf32> to vector<4x256xf32>
    %c0_13 = arith.constant 0 : index
    %c0_14 = arith.constant 0 : index
    %c0_15 = arith.constant 0 : index
    %9 = vector.load %arg6[%c0_13, %c0_14, %c0_15] : memref<1x4x256xf32, #tpu.memory_space<vmem>>, vector<1x4x256xf32>
    %10 = vector.shape_cast %9 : vector<1x4x256xf32> to vector<4x256xf32>
    %11 = arith.addf %8, %10 : vector<4x256xf32>
    %c0_16 = arith.constant 0 : index
    %c256 = arith.constant 256 : index
    %12 = vector.load %arg22[%c0_16, %c256] : memref<4x2048xf32, #tpu.memory_space<vmem>>, vector<4x256xf32>
    tpu.vector_store %arg22[%c0_16, %c256], %11 {strides = array<i32>} : memref<4x2048xf32, #tpu.memory_space<vmem>>, vector<4x256xf32>,
    %c0_17 = arith.constant 0 : index
    %c0_18 = arith.constant 0 : index
    %c0_19 = arith.constant 0 : index
    %13 = vector.load %arg3[%c0_17, %c0_18, %c0_19] : memref<1x4x256xf32, #tpu.memory_space<vmem>>, vector<1x4x256xf32>
    %14 = vector.shape_cast %13 : vector<1x4x256xf32> to vector<4x256xf32>
    %c0_20 = arith.constant 0 : index
    %c0_21 = arith.constant 0 : index
    %c0_22 = arith.constant 0 : index
    %15 = vector.load %arg7[%c0_20, %c0_21, %c0_22] : memref<1x4x256xf32, #tpu.memory_space<vmem>>, vector<1x4x256xf32>
    %16 = vector.shape_cast %15 : vector<1x4x256xf32> to vector<4x256xf32>
    %17 = arith.addf %14, %16 : vector<4x256xf32>
    %c0_23 = arith.constant 0 : index
    %c512 = arith.constant 512 : index
    %18 = vector.load %arg22[%c0_23, %c512] : memref<4x2048xf32, #tpu.memory_space<vmem>>, vector<4x256xf32>
    tpu.vector_store %arg22[%c0_23, %c512], %17 {strides = array<i32>} : memref<4x2048xf32, #tpu.memory_space<vmem>>, vector<4x256xf32>,
    %c0_24 = arith.constant 0 : index
    %c0_25 = arith.constant 0 : index
    %c0_26 = arith.constant 0 : index
    %19 = vector.load %arg4[%c0_24, %c0_25, %c0_26] : memref<1x4x256xf32, #tpu.memory_space<vmem>>, vector<1x4x256xf32>
    %20 = vector.shape_cast %19 : vector<1x4x256xf32> to vector<4x256xf32>
    %c0_27 = arith.constant 0 : index
    %c0_28 = arith.constant 0 : index
    %c0_29 = arith.constant 0 : index
    %21 = vector.load %arg8[%c0_27, %c0_28, %c0_29] : memref<1x4x256xf32, #tpu.memory_space<vmem>>, vector<1x4x256xf32>
    %22 = vector.shape_cast %21 : vector<1x4x256xf32> to vector<4x256xf32>
    %23 = arith.addf %20, %22 : vector<4x256xf32>
    %c0_30 = arith.constant 0 : index
    %c768 = arith.constant 768 : index
    %24 = vector.load %arg22[%c0_30, %c768] : memref<4x2048xf32, #tpu.memory_space<vmem>>, vector<4x256xf32>
    tpu.vector_store %arg22[%c0_30, %c768], %23 {strides = array<i32>} : memref<4x2048xf32, #tpu.memory_space<vmem>>, vector<4x256xf32>,
    %c0_31 = arith.constant 0 : index
    %c0_32 = arith.constant 0 : index
    %c0_33 = arith.constant 0 : index
    %25 = vector.load %arg5[%c0_31, %c0_32, %c0_33] : memref<1x4x256xf32, #tpu.memory_space<vmem>>, vector<1x4x256xf32>
    %26 = vector.shape_cast %25 : vector<1x4x256xf32> to vector<4x256xf32>
    %c0_34 = arith.constant 0 : index
    %c0_35 = arith.constant 0 : index
    %c0_36 = arith.constant 0 : index
    %27 = vector.load %arg9[%c0_34, %c0_35, %c0_36] : memref<1x4x256xf32, #tpu.memory_space<vmem>>, vector<1x4x256xf32>
    %28 = vector.shape_cast %27 : vector<1x4x256xf32> to vector<4x256xf32>
    %29 = arith.addf %26, %28 : vector<4x256xf32>
    %c0_37 = arith.constant 0 : index
    %c1024 = arith.constant 1024 : index
    %30 = vector.load %arg22[%c0_37, %c1024] : memref<4x2048xf32, #tpu.memory_space<vmem>>, vector<4x256xf32>
    tpu.vector_store %arg22[%c0_37, %c1024], %29 {strides = array<i32>} : memref<4x2048xf32, #tpu.memory_space<vmem>>, vector<4x256xf32>,
    %c0_38 = arith.constant 0 : index
    %c0_39 = arith.constant 0 : index
    %c0_40 = arith.constant 0 : index
    %31 = vector.load %arg6[%c0_38, %c0_39, %c0_40] : memref<1x4x256xf32, #tpu.memory_space<vmem>>, vector<1x4x256xf32>
    %32 = vector.shape_cast %31 : vector<1x4x256xf32> to vector<4x256xf32>
    %c0_41 = arith.constant 0 : index
    %c0_42 = arith.constant 0 : index
    %c0_43 = arith.constant 0 : index
    %33 = vector.load %arg10[%c0_41, %c0_42, %c0_43] : memref<1x4x256xf32, #tpu.memory_space<vmem>>, vector<1x4x256xf32>
    %34 = vector.shape_cast %33 : vector<1x4x256xf32> to vector<4x256xf32>
    %35 = arith.addf %32, %34 : vector<4x256xf32>
    %c0_44 = arith.constant 0 : index
    %c1280 = arith.constant 1280 : index
    %36 = vector.load %arg22[%c0_44, %c1280] : memref<4x2048xf32, #tpu.memory_space<vmem>>, vector<4x256xf32>
    tpu.vector_store %arg22[%c0_44, %c1280], %35 {strides = array<i32>} : memref<4x2048xf32, #tpu.memory_space<vmem>>, vector<4x256xf32>,
    %c0_45 = arith.constant 0 : index
    %c0_46 = arith.constant 0 : index
    %c0_47 = arith.constant 0 : index
    %37 = vector.load %arg7[%c0_45, %c0_46, %c0_47] : memref<1x4x256xf32, #tpu.memory_space<vmem>>, vector<1x4x256xf32>
    %38 = vector.shape_cast %37 : vector<1x4x256xf32> to vector<4x256xf32>
    %c0_48 = arith.constant 0 : index
    %c0_49 = arith.constant 0 : index
    %c0_50 = arith.constant 0 : index
    %39 = vector.load %arg11[%c0_48, %c0_49, %c0_50] : memref<1x4x256xf32, #tpu.memory_space<vmem>>, vector<1x4x256xf32>
    %40 = vector.shape_cast %39 : vector<1x4x256xf32> to vector<4x256xf32>
    %41 = arith.addf %38, %40 : vector<4x256xf32>
    %c0_51 = arith.constant 0 : index
    %c1536 = arith.constant 1536 : index
    %42 = vector.load %arg22[%c0_51, %c1536] : memref<4x2048xf32, #tpu.memory_space<vmem>>, vector<4x256xf32>
    tpu.vector_store %arg22[%c0_51, %c1536], %41 {strides = array<i32>} : memref<4x2048xf32, #tpu.memory_space<vmem>>, vector<4x256xf32>,
    %c0_52 = arith.constant 0 : index
    %c0_53 = arith.constant 0 : index
    %c0_54 = arith.constant 0 : index
    %43 = vector.load %arg8[%c0_52, %c0_53, %c0_54] : memref<1x4x256xf32, #tpu.memory_space<vmem>>, vector<1x4x256xf32>
    %44 = vector.shape_cast %43 : vector<1x4x256xf32> to vector<4x256xf32>
    %c0_55 = arith.constant 0 : index
    %c0_56 = arith.constant 0 : index
    %c0_57 = arith.constant 0 : index
    %45 = vector.load %arg12[%c0_55, %c0_56, %c0_57] : memref<1x4x256xf32, #tpu.memory_space<vmem>>, vector<1x4x256xf32>
    %46 = vector.shape_cast %45 : vector<1x4x256xf32> to vector<4x256xf32>
    %47 = arith.addf %44, %46 : vector<4x256xf32>
    %c0_58 = arith.constant 0 : index
    %c1792 = arith.constant 1792 : index
    %48 = vector.load %arg22[%c0_58, %c1792] : memref<4x2048xf32, #tpu.memory_space<vmem>>, vector<4x256xf32>
    tpu.vector_store %arg22[%c0_58, %c1792], %47 {strides = array<i32>} : memref<4x2048xf32, #tpu.memory_space<vmem>>, vector<4x256xf32>,
    %c0_59 = arith.constant 0 : index
    %c0_60 = arith.constant 0 : index
    %49 = vector.load %arg22[%c0_59, %c0_60] : memref<4x2048xf32, #tpu.memory_space<vmem>>, vector<4x2048xf32>
    %c17_i32 = arith.constant 17 : i32
    %50 = tpu.dynamic_rotate %49 by %c17_i32 dim 1 : vector<4x2048xf32>, i32 -> vector<4x2048xf32>
    %51 = vector.extract_strided_slice %0 {offsets = [0, 0, 0], sizes = [1, 1, 2048], strides = [1, 1, 1]} : vector<9x1x2048xf32> to vector<1x1x2048xf32>
    %52 = vector.shape_cast %51 : vector<1x1x2048xf32> to vector<1x2048xf32>
    %53 = vector.broadcast %52 : vector<1x2048xf32> to vector<4x2048xf32>
    %54 = arith.mulf %50, %53 : vector<4x2048xf32>
    %c0_61 = arith.constant 0 : index
    %c0_62 = arith.constant 0 : index
    %55 = vector.load %arg23[%c0_61, %c0_62] : memref<36x2048xf32, #tpu.memory_space<vmem>>, vector<4x2048xf32>
    tpu.vector_store %arg23[%c0_61, %c0_62], %54 {strides = array<i32>} : memref<36x2048xf32, #tpu.memory_space<vmem>>, vector<4x2048xf32>,
    %c16_i32 = arith.constant 16 : i32
    %56 = tpu.dynamic_rotate %49 by %c16_i32 dim 1 : vector<4x2048xf32>, i32 -> vector<4x2048xf32>
    %57 = vector.extract_strided_slice %0 {offsets = [1, 0, 0], sizes = [1, 1, 2048], strides = [1, 1, 1]} : vector<9x1x2048xf32> to vector<1x1x2048xf32>
    %58 = vector.shape_cast %57 : vector<1x1x2048xf32> to vector<1x2048xf32>
    %59 = vector.broadcast %58 : vector<1x2048xf32> to vector<4x2048xf32>
    %60 = arith.mulf %56, %59 : vector<4x2048xf32>
    %c4 = arith.constant 4 : index
    %c0_63 = arith.constant 0 : index
    %61 = vector.load %arg23[%c4, %c0_63] : memref<36x2048xf32, #tpu.memory_space<vmem>>, vector<4x2048xf32>
    tpu.vector_store %arg23[%c4, %c0_63], %60 {strides = array<i32>} : memref<36x2048xf32, #tpu.memory_space<vmem>>, vector<4x2048xf32>,
    %c15_i32 = arith.constant 15 : i32
    %62 = tpu.dynamic_rotate %49 by %c15_i32 dim 1 : vector<4x2048xf32>, i32 -> vector<4x2048xf32>
    %63 = vector.extract_strided_slice %0 {offsets = [2, 0, 0], sizes = [1, 1, 2048], strides = [1, 1, 1]} : vector<9x1x2048xf32> to vector<1x1x2048xf32>
    %64 = vector.shape_cast %63 : vector<1x1x2048xf32> to vector<1x2048xf32>
    %65 = vector.broadcast %64 : vector<1x2048xf32> to vector<4x2048xf32>
    %66 = arith.mulf %62, %65 : vector<4x2048xf32>
    %c8 = arith.constant 8 : index
    %c0_64 = arith.constant 0 : index
    %67 = vector.load %arg23[%c8, %c0_64] : memref<36x2048xf32, #tpu.memory_space<vmem>>, vector<4x2048xf32>
    tpu.vector_store %arg23[%c8, %c0_64], %66 {strides = array<i32>} : memref<36x2048xf32, #tpu.memory_space<vmem>>, vector<4x2048xf32>,
    %c1_i32 = arith.constant 1 : i32
    %68 = tpu.dynamic_rotate %49 by %c1_i32 dim 1 : vector<4x2048xf32>, i32 -> vector<4x2048xf32>
    %69 = vector.extract_strided_slice %0 {offsets = [3, 0, 0], sizes = [1, 1, 2048], strides = [1, 1, 1]} : vector<9x1x2048xf32> to vector<1x1x2048xf32>
    %70 = vector.shape_cast %69 : vector<1x1x2048xf32> to vector<1x2048xf32>
    %71 = vector.broadcast %70 : vector<1x2048xf32> to vector<4x2048xf32>
    %72 = arith.mulf %68, %71 : vector<4x2048xf32>
    %c12 = arith.constant 12 : index
    %c0_65 = arith.constant 0 : index
    %73 = vector.load %arg23[%c12, %c0_65] : memref<36x2048xf32, #tpu.memory_space<vmem>>, vector<4x2048xf32>
    tpu.vector_store %arg23[%c12, %c0_65], %72 {strides = array<i32>} : memref<36x2048xf32, #tpu.memory_space<vmem>>, vector<4x2048xf32>,
    %c16 = arith.constant 16 : index
    %c0_66 = arith.constant 0 : index
    %74 = vector.load %arg23[%c16, %c0_66] : memref<36x2048xf32, #tpu.memory_space<vmem>>, vector<4x2048xf32>
    tpu.vector_store %arg23[%c16, %c0_66], %49 {strides = array<i32>} : memref<36x2048xf32, #tpu.memory_space<vmem>>, vector<4x2048xf32>,
    %c2047_i32 = arith.constant 2047 : i32
    %75 = tpu.dynamic_rotate %49 by %c2047_i32 dim 1 : vector<4x2048xf32>, i32 -> vector<4x2048xf32>
    %76 = vector.extract_strided_slice %0 {offsets = [5, 0, 0], sizes = [1, 1, 2048], strides = [1, 1, 1]} : vector<9x1x2048xf32> to vector<1x1x2048xf32>
    %77 = vector.shape_cast %76 : vector<1x1x2048xf32> to vector<1x2048xf32>
    %78 = vector.broadcast %77 : vector<1x2048xf32> to vector<4x2048xf32>
    %79 = arith.mulf %75, %78 : vector<4x2048xf32>
    %c20 = arith.constant 20 : index
    %c0_67 = arith.constant 0 : index
    %80 = vector.load %arg23[%c20, %c0_67] : memref<36x2048xf32, #tpu.memory_space<vmem>>, vector<4x2048xf32>
    tpu.vector_store %arg23[%c20, %c0_67], %79 {strides = array<i32>} : memref<36x2048xf32, #tpu.memory_space<vmem>>, vector<4x2048xf32>,
    %c2033_i32 = arith.constant 2033 : i32
    %81 = tpu.dynamic_rotate %49 by %c2033_i32 dim 1 : vector<4x2048xf32>, i32 -> vector<4x2048xf32>
    %82 = vector.extract_strided_slice %0 {offsets = [6, 0, 0], sizes = [1, 1, 2048], strides = [1, 1, 1]} : vector<9x1x2048xf32> to vector<1x1x2048xf32>
    %83 = vector.shape_cast %82 : vector<1x1x2048xf32> to vector<1x2048xf32>
    %84 = vector.broadcast %83 : vector<1x2048xf32> to vector<4x2048xf32>
    %85 = arith.mulf %81, %84 : vector<4x2048xf32>
    %c24 = arith.constant 24 : index
    %c0_68 = arith.constant 0 : index
    %86 = vector.load %arg23[%c24, %c0_68] : memref<36x2048xf32, #tpu.memory_space<vmem>>, vector<4x2048xf32>
    tpu.vector_store %arg23[%c24, %c0_68], %85 {strides = array<i32>} : memref<36x2048xf32, #tpu.memory_space<vmem>>, vector<4x2048xf32>,
    %c2032_i32 = arith.constant 2032 : i32
    %87 = tpu.dynamic_rotate %49 by %c2032_i32 dim 1 : vector<4x2048xf32>, i32 -> vector<4x2048xf32>
    %88 = vector.extract_strided_slice %0 {offsets = [7, 0, 0], sizes = [1, 1, 2048], strides = [1, 1, 1]} : vector<9x1x2048xf32> to vector<1x1x2048xf32>
    %89 = vector.shape_cast %88 : vector<1x1x2048xf32> to vector<1x2048xf32>
    %90 = vector.broadcast %89 : vector<1x2048xf32> to vector<4x2048xf32>
    %91 = arith.mulf %87, %90 : vector<4x2048xf32>
    %c28 = arith.constant 28 : index
    %c0_69 = arith.constant 0 : index
    %92 = vector.load %arg23[%c28, %c0_69] : memref<36x2048xf32, #tpu.memory_space<vmem>>, vector<4x2048xf32>
    tpu.vector_store %arg23[%c28, %c0_69], %91 {strides = array<i32>} : memref<36x2048xf32, #tpu.memory_space<vmem>>, vector<4x2048xf32>,
    %c2031_i32 = arith.constant 2031 : i32
    %93 = tpu.dynamic_rotate %49 by %c2031_i32 dim 1 : vector<4x2048xf32>, i32 -> vector<4x2048xf32>
    %94 = vector.extract_strided_slice %0 {offsets = [8, 0, 0], sizes = [1, 1, 2048], strides = [1, 1, 1]} : vector<9x1x2048xf32> to vector<1x1x2048xf32>
    %95 = vector.shape_cast %94 : vector<1x1x2048xf32> to vector<1x2048xf32>
    %96 = vector.broadcast %95 : vector<1x2048xf32> to vector<4x2048xf32>
    %97 = arith.mulf %93, %96 : vector<4x2048xf32>
    %c32 = arith.constant 32 : index
    %c0_70 = arith.constant 0 : index
    %98 = vector.load %arg23[%c32, %c0_70] : memref<36x2048xf32, #tpu.memory_space<vmem>>, vector<4x2048xf32>
    tpu.vector_store %arg23[%c32, %c0_70], %97 {strides = array<i32>} : memref<36x2048xf32, #tpu.memory_space<vmem>>, vector<4x2048xf32>,
    %c0_71 = arith.constant 0 : index
    %c0_72 = arith.constant 0 : index
    %99 = vector.load %arg14[%c0_71, %c0_72] : memref<4x36xf32, #tpu.memory_space<vmem>>, vector<4x36xf32>
    %c0_73 = arith.constant 0 : index
    %c0_74 = arith.constant 0 : index
    %100 = vector.load %arg23[%c0_73, %c0_74] : memref<36x2048xf32, #tpu.memory_space<vmem>>, vector<36x2048xf32>
    %cst = arith.constant dense<0.000000e+00> : vector<4x2048xf32>
    %101 = tpu.matmul %99, %100, %cst {dimension_numbers = #tpu.dot_dimension_numbers<[1], [0], [0], [1], [0, 0, 1, 1], [], []>} : vector<4x36xf32>, vector<36x2048xf32>, vector<4x2048xf32> -> vector<4x2048xf32>
    %c0_75 = arith.constant 0 : index
    %c0_76 = arith.constant 0 : index
    %102 = vector.load %arg16[%c0_75, %c0_76] : memref<4x1xf32, #tpu.memory_space<vmem>>, vector<4x1xf32>
    %103 = vector.broadcast %102 : vector<4x1xf32> to vector<4x2048xf32>
    %104 = arith.addf %101, %103 : vector<4x2048xf32>
    %cst_77 = arith.constant 0.000000e+00 : f32
    %105 = vector.broadcast %cst_77 : f32 to vector<4x2048xf32>
    %106 = arith.maximumf %104, %105 : vector<4x2048xf32>
    %c17_i32_78 = arith.constant 17 : i32
    %107 = tpu.dynamic_rotate %106 by %c17_i32_78 dim 1 : vector<4x2048xf32>, i32 -> vector<4x2048xf32>
    %108 = vector.extract_strided_slice %0 {offsets = [0, 0, 0], sizes = [1, 1, 2048], strides = [1, 1, 1]} : vector<9x1x2048xf32> to vector<1x1x2048xf32>
    %109 = vector.shape_cast %108 : vector<1x1x2048xf32> to vector<1x2048xf32>
    %110 = vector.broadcast %109 : vector<1x2048xf32> to vector<4x2048xf32>
    %111 = arith.mulf %107, %110 : vector<4x2048xf32>
    %112 = vector.extract_strided_slice %111 {offsets = [0, 0], sizes = [4, 1024], strides = [1, 1]} : vector<4x2048xf32> to vector<4x1024xf32>
    %c0_79 = arith.constant 0 : index
    %c0_80 = arith.constant 0 : index
    %113 = vector.load %arg24[%c0_79, %c0_80] : memref<72x1024xf32, #tpu.memory_space<vmem>>, vector<4x1024xf32>
    tpu.vector_store %arg24[%c0_79, %c0_80], %112 {strides = array<i32>} : memref<72x1024xf32, #tpu.memory_space<vmem>>, vector<4x1024xf32>,
    %114 = vector.extract_strided_slice %111 {offsets = [0, 1024], sizes = [4, 1024], strides = [1, 1]} : vector<4x2048xf32> to vector<4x1024xf32>
    %c4_81 = arith.constant 4 : index
    %c0_82 = arith.constant 0 : index
    %115 = vector.load %arg24[%c4_81, %c0_82] : memref<72x1024xf32, #tpu.memory_space<vmem>>, vector<4x1024xf32>
    tpu.vector_store %arg24[%c4_81, %c0_82], %114 {strides = array<i32>} : memref<72x1024xf32, #tpu.memory_space<vmem>>, vector<4x1024xf32>,
    %c16_i32_83 = arith.constant 16 : i32
    %116 = tpu.dynamic_rotate %106 by %c16_i32_83 dim 1 : vector<4x2048xf32>, i32 -> vector<4x2048xf32>
    %117 = vector.extract_strided_slice %0 {offsets = [1, 0, 0], sizes = [1, 1, 2048], strides = [1, 1, 1]} : vector<9x1x2048xf32> to vector<1x1x2048xf32>
    %118 = vector.shape_cast %117 : vector<1x1x2048xf32> to vector<1x2048xf32>
    %119 = vector.broadcast %118 : vector<1x2048xf32> to vector<4x2048xf32>
    %120 = arith.mulf %116, %119 : vector<4x2048xf32>
    %121 = vector.extract_strided_slice %120 {offsets = [0, 0], sizes = [4, 1024], strides = [1, 1]} : vector<4x2048xf32> to vector<4x1024xf32>
    %c8_84 = arith.constant 8 : index
    %c0_85 = arith.constant 0 : index
    %122 = vector.load %arg24[%c8_84, %c0_85] : memref<72x1024xf32, #tpu.memory_space<vmem>>, vector<4x1024xf32>
    tpu.vector_store %arg24[%c8_84, %c0_85], %121 {strides = array<i32>} : memref<72x1024xf32, #tpu.memory_space<vmem>>, vector<4x1024xf32>,
    %123 = vector.extract_strided_slice %120 {offsets = [0, 1024], sizes = [4, 1024], strides = [1, 1]} : vector<4x2048xf32> to vector<4x1024xf32>
    %c12_86 = arith.constant 12 : index
    %c0_87 = arith.constant 0 : index
    %124 = vector.load %arg24[%c12_86, %c0_87] : memref<72x1024xf32, #tpu.memory_space<vmem>>, vector<4x1024xf32>
    tpu.vector_store %arg24[%c12_86, %c0_87], %123 {strides = array<i32>} : memref<72x1024xf32, #tpu.memory_space<vmem>>, vector<4x1024xf32>,
    %c15_i32_88 = arith.constant 15 : i32
    %125 = tpu.dynamic_rotate %106 by %c15_i32_88 dim 1 : vector<4x2048xf32>, i32 -> vector<4x2048xf32>
    %126 = vector.extract_strided_slice %0 {offsets = [2, 0, 0], sizes = [1, 1, 2048], strides = [1, 1, 1]} : vector<9x1x2048xf32> to vector<1x1x2048xf32>
    %127 = vector.shape_cast %126 : vector<1x1x2048xf32> to vector<1x2048xf32>
    %128 = vector.broadcast %127 : vector<1x2048xf32> to vector<4x2048xf32>
    %129 = arith.mulf %125, %128 : vector<4x2048xf32>
    %130 = vector.extract_strided_slice %129 {offsets = [0, 0], sizes = [4, 1024], strides = [1, 1]} : vector<4x2048xf32> to vector<4x1024xf32>
    %c16_89 = arith.constant 16 : index
    %c0_90 = arith.constant 0 : index
    %131 = vector.load %arg24[%c16_89, %c0_90] : memref<72x1024xf32, #tpu.memory_space<vmem>>, vector<4x1024xf32>
    tpu.vector_store %arg24[%c16_89, %c0_90], %130 {strides = array<i32>} : memref<72x1024xf32, #tpu.memory_space<vmem>>, vector<4x1024xf32>,
    %132 = vector.extract_strided_slice %129 {offsets = [0, 1024], sizes = [4, 1024], strides = [1, 1]} : vector<4x2048xf32> to vector<4x1024xf32>
    %c20_91 = arith.constant 20 : index
    %c0_92 = arith.constant 0 : index
    %133 = vector.load %arg24[%c20_91, %c0_92] : memref<72x1024xf32, #tpu.memory_space<vmem>>, vector<4x1024xf32>
    tpu.vector_store %arg24[%c20_91, %c0_92], %132 {strides = array<i32>} : memref<72x1024xf32, #tpu.memory_space<vmem>>, vector<4x1024xf32>,
    %c1_i32_93 = arith.constant 1 : i32
    %134 = tpu.dynamic_rotate %106 by %c1_i32_93 dim 1 : vector<4x2048xf32>, i32 -> vector<4x2048xf32>
    %135 = vector.extract_strided_slice %0 {offsets = [3, 0, 0], sizes = [1, 1, 2048], strides = [1, 1, 1]} : vector<9x1x2048xf32> to vector<1x1x2048xf32>
    %136 = vector.shape_cast %135 : vector<1x1x2048xf32> to vector<1x2048xf32>
    %137 = vector.broadcast %136 : vector<1x2048xf32> to vector<4x2048xf32>
    %138 = arith.mulf %134, %137 : vector<4x2048xf32>
    %139 = vector.extract_strided_slice %138 {offsets = [0, 0], sizes = [4, 1024], strides = [1, 1]} : vector<4x2048xf32> to vector<4x1024xf32>
    %c24_94 = arith.constant 24 : index
    %c0_95 = arith.constant 0 : index
    %140 = vector.load %arg24[%c24_94, %c0_95] : memref<72x1024xf32, #tpu.memory_space<vmem>>, vector<4x1024xf32>
    tpu.vector_store %arg24[%c24_94, %c0_95], %139 {strides = array<i32>} : memref<72x1024xf32, #tpu.memory_space<vmem>>, vector<4x1024xf32>,
    %141 = vector.extract_strided_slice %138 {offsets = [0, 1024], sizes = [4, 1024], strides = [1, 1]} : vector<4x2048xf32> to vector<4x1024xf32>
    %c28_96 = arith.constant 28 : index
    %c0_97 = arith.constant 0 : index
    %142 = vector.load %arg24[%c28_96, %c0_97] : memref<72x1024xf32, #tpu.memory_space<vmem>>, vector<4x1024xf32>
    tpu.vector_store %arg24[%c28_96, %c0_97], %141 {strides = array<i32>} : memref<72x1024xf32, #tpu.memory_space<vmem>>, vector<4x1024xf32>,
    %143 = vector.extract_strided_slice %106 {offsets = [0, 0], sizes = [4, 1024], strides = [1, 1]} : vector<4x2048xf32> to vector<4x1024xf32>
    %c32_98 = arith.constant 32 : index
    %c0_99 = arith.constant 0 : index
    %144 = vector.load %arg24[%c32_98, %c0_99] : memref<72x1024xf32, #tpu.memory_space<vmem>>, vector<4x1024xf32>
    tpu.vector_store %arg24[%c32_98, %c0_99], %143 {strides = array<i32>} : memref<72x1024xf32, #tpu.memory_space<vmem>>, vector<4x1024xf32>,
    %145 = vector.extract_strided_slice %106 {offsets = [0, 1024], sizes = [4, 1024], strides = [1, 1]} : vector<4x2048xf32> to vector<4x1024xf32>
    %c36 = arith.constant 36 : index
    %c0_100 = arith.constant 0 : index
    %146 = vector.load %arg24[%c36, %c0_100] : memref<72x1024xf32, #tpu.memory_space<vmem>>, vector<4x1024xf32>
    tpu.vector_store %arg24[%c36, %c0_100], %145 {strides = array<i32>} : memref<72x1024xf32, #tpu.memory_space<vmem>>, vector<4x1024xf32>,
    %c2047_i32_101 = arith.constant 2047 : i32
    %147 = tpu.dynamic_rotate %106 by %c2047_i32_101 dim 1 : vector<4x2048xf32>, i32 -> vector<4x2048xf32>
    %148 = vector.extract_strided_slice %0 {offsets = [5, 0, 0], sizes = [1, 1, 2048], strides = [1, 1, 1]} : vector<9x1x2048xf32> to vector<1x1x2048xf32>
    %149 = vector.shape_cast %148 : vector<1x1x2048xf32> to vector<1x2048xf32>
    %150 = vector.broadcast %149 : vector<1x2048xf32> to vector<4x2048xf32>
    %151 = arith.mulf %147, %150 : vector<4x2048xf32>
    %152 = vector.extract_strided_slice %151 {offsets = [0, 0], sizes = [4, 1024], strides = [1, 1]} : vector<4x2048xf32> to vector<4x1024xf32>
    %c40 = arith.constant 40 : index
    %c0_102 = arith.constant 0 : index
    %153 = vector.load %arg24[%c40, %c0_102] : memref<72x1024xf32, #tpu.memory_space<vmem>>, vector<4x1024xf32>
    tpu.vector_store %arg24[%c40, %c0_102], %152 {strides = array<i32>} : memref<72x1024xf32, #tpu.memory_space<vmem>>, vector<4x1024xf32>,
    %154 = vector.extract_strided_slice %151 {offsets = [0, 1024], sizes = [4, 1024], strides = [1, 1]} : vector<4x2048xf32> to vector<4x1024xf32>
    %c44 = arith.constant 44 : index
    %c0_103 = arith.constant 0 : index
    %155 = vector.load %arg24[%c44, %c0_103] : memref<72x1024xf32, #tpu.memory_space<vmem>>, vector<4x1024xf32>
    tpu.vector_store %arg24[%c44, %c0_103], %154 {strides = array<i32>} : memref<72x1024xf32, #tpu.memory_space<vmem>>, vector<4x1024xf32>,
    %c2033_i32_104 = arith.constant 2033 : i32
    %156 = tpu.dynamic_rotate %106 by %c2033_i32_104 dim 1 : vector<4x2048xf32>, i32 -> vector<4x2048xf32>
    %157 = vector.extract_strided_slice %0 {offsets = [6, 0, 0], sizes = [1, 1, 2048], strides = [1, 1, 1]} : vector<9x1x2048xf32> to vector<1x1x2048xf32>
    %158 = vector.shape_cast %157 : vector<1x1x2048xf32> to vector<1x2048xf32>
    %159 = vector.broadcast %158 : vector<1x2048xf32> to vector<4x2048xf32>
    %160 = arith.mulf %156, %159 : vector<4x2048xf32>
    %161 = vector.extract_strided_slice %160 {offsets = [0, 0], sizes = [4, 1024], strides = [1, 1]} : vector<4x2048xf32> to vector<4x1024xf32>
    %c48 = arith.constant 48 : index
    %c0_105 = arith.constant 0 : index
    %162 = vector.load %arg24[%c48, %c0_105] : memref<72x1024xf32, #tpu.memory_space<vmem>>, vector<4x1024xf32>
    tpu.vector_store %arg24[%c48, %c0_105], %161 {strides = array<i32>} : memref<72x1024xf32, #tpu.memory_space<vmem>>, vector<4x1024xf32>,
    %163 = vector.extract_strided_slice %160 {offsets = [0, 1024], sizes = [4, 1024], strides = [1, 1]} : vector<4x2048xf32> to vector<4x1024xf32>
    %c52 = arith.constant 52 : index
    %c0_106 = arith.constant 0 : index
    %164 = vector.load %arg24[%c52, %c0_106] : memref<72x1024xf32, #tpu.memory_space<vmem>>, vector<4x1024xf32>
    tpu.vector_store %arg24[%c52, %c0_106], %163 {strides = array<i32>} : memref<72x1024xf32, #tpu.memory_space<vmem>>, vector<4x1024xf32>,
    %c2032_i32_107 = arith.constant 2032 : i32
    %165 = tpu.dynamic_rotate %106 by %c2032_i32_107 dim 1 : vector<4x2048xf32>, i32 -> vector<4x2048xf32>
    %166 = vector.extract_strided_slice %0 {offsets = [7, 0, 0], sizes = [1, 1, 2048], strides = [1, 1, 1]} : vector<9x1x2048xf32> to vector<1x1x2048xf32>
    %167 = vector.shape_cast %166 : vector<1x1x2048xf32> to vector<1x2048xf32>
    %168 = vector.broadcast %167 : vector<1x2048xf32> to vector<4x2048xf32>
    %169 = arith.mulf %165, %168 : vector<4x2048xf32>
    %170 = vector.extract_strided_slice %169 {offsets = [0, 0], sizes = [4, 1024], strides = [1, 1]} : vector<4x2048xf32> to vector<4x1024xf32>
    %c56 = arith.constant 56 : index
    %c0_108 = arith.constant 0 : index
    %171 = vector.load %arg24[%c56, %c0_108] : memref<72x1024xf32, #tpu.memory_space<vmem>>, vector<4x1024xf32>
    tpu.vector_store %arg24[%c56, %c0_108], %170 {strides = array<i32>} : memref<72x1024xf32, #tpu.memory_space<vmem>>, vector<4x1024xf32>,
    %172 = vector.extract_strided_slice %169 {offsets = [0, 1024], sizes = [4, 1024], strides = [1, 1]} : vector<4x2048xf32> to vector<4x1024xf32>
    %c60 = arith.constant 60 : index
    %c0_109 = arith.constant 0 : index
    %173 = vector.load %arg24[%c60, %c0_109] : memref<72x1024xf32, #tpu.memory_space<vmem>>, vector<4x1024xf32>
    tpu.vector_store %arg24[%c60, %c0_109], %172 {strides = array<i32>} : memref<72x1024xf32, #tpu.memory_space<vmem>>, vector<4x1024xf32>,
    %c2031_i32_110 = arith.constant 2031 : i32
    %174 = tpu.dynamic_rotate %106 by %c2031_i32_110 dim 1 : vector<4x2048xf32>, i32 -> vector<4x2048xf32>
    %175 = vector.extract_strided_slice %0 {offsets = [8, 0, 0], sizes = [1, 1, 2048], strides = [1, 1, 1]} : vector<9x1x2048xf32> to vector<1x1x2048xf32>
    %176 = vector.shape_cast %175 : vector<1x1x2048xf32> to vector<1x2048xf32>
    %177 = vector.broadcast %176 : vector<1x2048xf32> to vector<4x2048xf32>
    %178 = arith.mulf %174, %177 : vector<4x2048xf32>
    %179 = vector.extract_strided_slice %178 {offsets = [0, 0], sizes = [4, 1024], strides = [1, 1]} : vector<4x2048xf32> to vector<4x1024xf32>
    %c64 = arith.constant 64 : index
    %c0_111 = arith.constant 0 : index
    %180 = vector.load %arg24[%c64, %c0_111] : memref<72x1024xf32, #tpu.memory_space<vmem>>, vector<4x1024xf32>
    tpu.vector_store %arg24[%c64, %c0_111], %179 {strides = array<i32>} : memref<72x1024xf32, #tpu.memory_space<vmem>>, vector<4x1024xf32>,
    %181 = vector.extract_strided_slice %178 {offsets = [0, 1024], sizes = [4, 1024], strides = [1, 1]} : vector<4x2048xf32> to vector<4x1024xf32>
    %c68 = arith.constant 68 : index
    %c0_112 = arith.constant 0 : index
    %182 = vector.load %arg24[%c68, %c0_112] : memref<72x1024xf32, #tpu.memory_space<vmem>>, vector<4x1024xf32>
    tpu.vector_store %arg24[%c68, %c0_112], %181 {strides = array<i32>} : memref<72x1024xf32, #tpu.memory_space<vmem>>, vector<4x1024xf32>,
    %c0_113 = arith.constant 0 : index
    %c0_114 = arith.constant 0 : index
    %183 = vector.load %arg15[%c0_113, %c0_114] : memref<8x72xf32, #tpu.memory_space<vmem>>, vector<8x72xf32>
    %c0_115 = arith.constant 0 : index
    %c0_116 = arith.constant 0 : index
    %184 = vector.load %arg24[%c0_115, %c0_116] : memref<72x1024xf32, #tpu.memory_space<vmem>>, vector<72x1024xf32>
    %cst_117 = arith.constant dense<0.000000e+00> : vector<8x1024xf32>
    %185 = tpu.matmul %183, %184, %cst_117 {dimension_numbers = #tpu.dot_dimension_numbers<[1], [0], [0], [1], [0, 0, 1, 1], [], []>} : vector<8x72xf32>, vector<72x1024xf32>, vector<8x1024xf32> -> vector<8x1024xf32>
    %c0_118 = arith.constant 0 : index
    %c0_119 = arith.constant 0 : index
    %186 = vector.load %arg17[%c0_118, %c0_119] : memref<8x1xf32, #tpu.memory_space<vmem>>, vector<8x1xf32>
    %187 = vector.broadcast %186 : vector<8x1xf32> to vector<8x1024xf32>
    %188 = arith.addf %185, %187 : vector<8x1024xf32>
    %cst_120 = arith.constant 0.000000e+00 : f32
    %189 = vector.broadcast %cst_120 : f32 to vector<8x1024xf32>
    %190 = arith.maximumf %188, %189 : vector<8x1024xf32>
    %191 = vector.extract_strided_slice %190 {offsets = [0, 0], sizes = [8, 256], strides = [1, 1]} : vector<8x1024xf32> to vector<8x256xf32>
    %c0_121 = arith.constant 0 : index
    %c0_122 = arith.constant 0 : index
    %c0_123 = arith.constant 0 : index
    %192 = vector.load %arg18[%c0_121, %c0_122, %c0_123] : memref<1x8x256xf32, #tpu.memory_space<vmem>>, vector<1x8x256xf32>
    %193 = vector.shape_cast %192 : vector<1x8x256xf32> to vector<8x256xf32>
    %194 = vector.shape_cast %191 : vector<8x256xf32> to vector<1x8x256xf32>
    tpu.vector_store %arg18[%c0_121, %c0_122, %c0_123], %194 {strides = array<i32>} : memref<1x8x256xf32, #tpu.memory_space<vmem>>, vector<1x8x256xf32>,
    %195 = vector.extract_strided_slice %190 {offsets = [0, 256], sizes = [8, 256], strides = [1, 1]} : vector<8x1024xf32> to vector<8x256xf32>
    %c0_124 = arith.constant 0 : index
    %c0_125 = arith.constant 0 : index
    %c0_126 = arith.constant 0 : index
    %196 = vector.load %arg19[%c0_124, %c0_125, %c0_126] : memref<1x8x256xf32, #tpu.memory_space<vmem>>, vector<1x8x256xf32>
    %197 = vector.shape_cast %196 : vector<1x8x256xf32> to vector<8x256xf32>
    %198 = vector.shape_cast %195 : vector<8x256xf32> to vector<1x8x256xf32>
    tpu.vector_store %arg19[%c0_124, %c0_125, %c0_126], %198 {strides = array<i32>} : memref<1x8x256xf32, #tpu.memory_space<vmem>>, vector<1x8x256xf32>,
    %199 = vector.extract_strided_slice %190 {offsets = [0, 512], sizes = [8, 256], strides = [1, 1]} : vector<8x1024xf32> to vector<8x256xf32>
    %c0_127 = arith.constant 0 : index
    %c0_128 = arith.constant 0 : index
    %c0_129 = arith.constant 0 : index
    %200 = vector.load %arg20[%c0_127, %c0_128, %c0_129] : memref<1x8x256xf32, #tpu.memory_space<vmem>>, vector<1x8x256xf32>
    %201 = vector.shape_cast %200 : vector<1x8x256xf32> to vector<8x256xf32>
    %202 = vector.shape_cast %199 : vector<8x256xf32> to vector<1x8x256xf32>
    tpu.vector_store %arg20[%c0_127, %c0_128, %c0_129], %202 {strides = array<i32>} : memref<1x8x256xf32, #tpu.memory_space<vmem>>, vector<1x8x256xf32>,
    %203 = vector.extract_strided_slice %190 {offsets = [0, 768], sizes = [8, 256], strides = [1, 1]} : vector<8x1024xf32> to vector<8x256xf32>
    %c0_130 = arith.constant 0 : index
    %c0_131 = arith.constant 0 : index
    %c0_132 = arith.constant 0 : index
    %204 = vector.load %arg21[%c0_130, %c0_131, %c0_132] : memref<1x8x256xf32, #tpu.memory_space<vmem>>, vector<1x8x256xf32>
    %205 = vector.shape_cast %204 : vector<1x8x256xf32> to vector<8x256xf32>
    %206 = vector.shape_cast %203 : vector<8x256xf32> to vector<1x8x256xf32>
    tpu.vector_store %arg21[%c0_130, %c0_131, %c0_132], %206 {strides = array<i32>} : memref<1x8x256xf32, #tpu.memory_space<vmem>>, vector<1x8x256xf32>,
    return
  }
  func.func @transform_0(%arg0: i32) -> (i32, i32, i32) {
    %c0_i32 = arith.constant 0 : i32
    %c0_i32_0 = arith.constant 0 : i32
    %c0_i32_1 = arith.constant 0 : i32
    return %arg0, %c0_i32, %c0_i32_0 : i32, i32, i32
  }
  func.func @transform_1(%arg0: i32) -> (i32, i32, i32) {
    %c0_i32 = arith.constant 0 : i32
    %c0_i32_0 = arith.constant 0 : i32
    %c0_i32_1 = arith.constant 0 : i32
    return %arg0, %c0_i32, %c0_i32_0 : i32, i32, i32
  }
  func.func @transform_2(%arg0: i32) -> (i32, i32, i32) {
    %c0_i32 = arith.constant 0 : i32
    %c0_i32_0 = arith.constant 0 : i32
    %c0_i32_1 = arith.constant 0 : i32
    return %arg0, %c0_i32, %c0_i32_0 : i32, i32, i32
  }
  func.func @transform_3(%arg0: i32) -> (i32, i32, i32) {
    %c0_i32 = arith.constant 0 : i32
    %c0_i32_0 = arith.constant 0 : i32
    %c0_i32_1 = arith.constant 0 : i32
    return %arg0, %c0_i32, %c0_i32_0 : i32, i32, i32
  }
  func.func @transform_4(%arg0: i32) -> (i32, i32, i32) {
    %c0_i32 = arith.constant 0 : i32
    %c0_i32_0 = arith.constant 0 : i32
    %c0_i32_1 = arith.constant 0 : i32
    return %arg0, %c0_i32, %c0_i32_0 : i32, i32, i32
  }
  func.func @transform_5(%arg0: i32) -> (i32, i32, i32) {
    %c0_i32 = arith.constant 0 : i32
    %c0_i32_0 = arith.constant 0 : i32
    %c0_i32_1 = arith.constant 0 : i32
    return %arg0, %c0_i32, %c0_i32_0 : i32, i32, i32
  }
  func.func @transform_6(%arg0: i32) -> (i32, i32, i32) {
    %c0_i32 = arith.constant 0 : i32
    %c0_i32_0 = arith.constant 0 : i32
    %c0_i32_1 = arith.constant 0 : i32
    return %arg0, %c0_i32, %c0_i32_0 : i32, i32, i32
  }
  func.func @transform_7(%arg0: i32) -> (i32, i32, i32) {
    %c0_i32 = arith.constant 0 : i32
    %c0_i32_0 = arith.constant 0 : i32
    %c0_i32_1 = arith.constant 0 : i32
    return %arg0, %c0_i32, %c0_i32_0 : i32, i32, i32
  }
  func.func @transform_8(%arg0: i32) -> (i32, i32, i32) {
    %c0_i32 = arith.constant 0 : i32
    %c0_i32_0 = arith.constant 0 : i32
    %c0_i32_1 = arith.constant 0 : i32
    return %arg0, %c0_i32, %c0_i32_0 : i32, i32, i32
  }
  func.func @transform_9(%arg0: i32) -> (i32, i32, i32) {
    %c0_i32 = arith.constant 0 : i32
    %c0_i32_0 = arith.constant 0 : i32
    %c0_i32_1 = arith.constant 0 : i32
    return %arg0, %c0_i32, %c0_i32_0 : i32, i32, i32
  }
  func.func @transform_10(%arg0: i32) -> (i32, i32, i32) {
    %c0_i32 = arith.constant 0 : i32
    %c0_i32_0 = arith.constant 0 : i32
    %c0_i32_1 = arith.constant 0 : i32
    return %arg0, %c0_i32, %c0_i32_0 : i32, i32, i32
  }
  func.func @transform_11(%arg0: i32) -> (i32, i32, i32) {
    %c0_i32 = arith.constant 0 : i32
    %c0_i32_0 = arith.constant 0 : i32
    %c0_i32_1 = arith.constant 0 : i32
    return %arg0, %c0_i32, %c0_i32_0 : i32, i32, i32
  }
  func.func @transform_12(%arg0: i32) -> (i32, i32, i32) {
    %c0_i32 = arith.constant 0 : i32
    %c0_i32_0 = arith.constant 0 : i32
    %c0_i32_1 = arith.constant 0 : i32
    %c0_i32_2 = arith.constant 0 : i32
    return %c0_i32, %c0_i32_0, %c0_i32_1 : i32, i32, i32
  }
  func.func @transform_13(%arg0: i32) -> (i32, i32) {
    %c0_i32 = arith.constant 0 : i32
    %c0_i32_0 = arith.constant 0 : i32
    %c0_i32_1 = arith.constant 0 : i32
    return %c0_i32, %c0_i32_0 : i32, i32
  }
  func.func @transform_14(%arg0: i32) -> (i32, i32) {
    %c0_i32 = arith.constant 0 : i32
    %c0_i32_0 = arith.constant 0 : i32
    %c0_i32_1 = arith.constant 0 : i32
    return %c0_i32, %c0_i32_0 : i32, i32
  }
  func.func @transform_15(%arg0: i32) -> (i32, i32) {
    %c0_i32 = arith.constant 0 : i32
    %c0_i32_0 = arith.constant 0 : i32
    %c0_i32_1 = arith.constant 0 : i32
    return %c0_i32, %c0_i32_0 : i32, i32
  }
  func.func @transform_16(%arg0: i32) -> (i32, i32) {
    %c0_i32 = arith.constant 0 : i32
    %c0_i32_0 = arith.constant 0 : i32
    %c0_i32_1 = arith.constant 0 : i32
    return %c0_i32, %c0_i32_0 : i32, i32
  }
  func.func @transform_17(%arg0: i32) -> (i32, i32, i32) {
    %c0_i32 = arith.constant 0 : i32
    %c0_i32_0 = arith.constant 0 : i32
    %c0_i32_1 = arith.constant 0 : i32
    return %arg0, %c0_i32, %c0_i32_0 : i32, i32, i32
  }
  func.func @transform_18(%arg0: i32) -> (i32, i32, i32) {
    %c0_i32 = arith.constant 0 : i32
    %c0_i32_0 = arith.constant 0 : i32
    %c0_i32_1 = arith.constant 0 : i32
    return %arg0, %c0_i32, %c0_i32_0 : i32, i32, i32
  }
  func.func @transform_19(%arg0: i32) -> (i32, i32, i32) {
    %c0_i32 = arith.constant 0 : i32
    %c0_i32_0 = arith.constant 0 : i32
    %c0_i32_1 = arith.constant 0 : i32
    return %arg0, %c0_i32, %c0_i32_0 : i32, i32, i32
  }
  func.func @transform_20(%arg0: i32) -> (i32, i32, i32) {
    %c0_i32 = arith.constant 0 : i32
    %c0_i32_0 = arith.constant 0 : i32
    %c0_i32_1 = arith.constant 0 : i32
    return %arg0, %c0_i32, %c0_i32_0 : i32, i32, i32
  }
}

</mosaic_0001>

<llo_original>
// kernel: tpu_custom_call.1
$region0: #{tpu_custom_call.1}
  #allocation0 [shape = 'u32[]', space=smem, size = 0x4, offset = 0x4, fixed_abs, tag = 'smem constant byte address 0x4 - core index']
  #allocation1 [shape = 'u32[144,128]{1,0:T(1,128)}', space=vmem, size = 0x12000, scoped, tag = 'internal scratch']
  #allocation2 [shape = 'f32[4,2048]{1,0:T(4,128)}', space=vmem, size = 0x8000, scoped, tag = 'scratch operand']
  #allocation3 [shape = 'f32[36,2048]{1,0:T(8,128)}', space=vmem, size = 0x50000, scoped, tag = 'scratch operand']
  #allocation4 [shape = 'f32[72,1024]{1,0:T(8,128)}', space=vmem, size = 0x48000, scoped, tag = 'scratch operand']
  %s0 = inlined_call_operand.hbm [shape: f32[2,4,256], index: 0, kind: input, shape index: {}]
  %s1 = inlined_call_operand.vmem [shape: f32[2,4,256], index: 1, kind: input, shape index: {}]
  %s2 = inlined_call_operand.hbm [shape: f32[2,4,256], index: 2, kind: input, shape index: {}]
  %s3 = inlined_call_operand.hbm [shape: f32[2,4,256], index: 3, kind: input, shape index: {}]
  %s4 = inlined_call_operand.hbm [shape: f32[2,4,256], index: 4, kind: input, shape index: {}]
  %s5 = inlined_call_operand.vmem [shape: f32[2,4,256], index: 5, kind: input, shape index: {}]
  %s6 = inlined_call_operand.hbm [shape: f32[2,4,256], index: 6, kind: input, shape index: {}]
  %s7 = inlined_call_operand.hbm [shape: f32[2,4,256], index: 7, kind: input, shape index: {}]
  %s8 = inlined_call_operand.hbm [shape: f32[2,4,256], index: 8, kind: input, shape index: {}]
  %s9 = inlined_call_operand.vmem [shape: f32[2,4,256], index: 9, kind: input, shape index: {}]
  %s10 = inlined_call_operand.hbm [shape: f32[2,4,256], index: 10, kind: input, shape index: {}]
  %s11 = inlined_call_operand.hbm [shape: f32[2,4,256], index: 11, kind: input, shape index: {}]
  %s12 = inlined_call_operand.hbm [shape: f32[9,1,2048], index: 12, kind: input, shape index: {}]
  %s13 = inlined_call_operand.vmem [shape: f32[4,36], index: 13, kind: input, shape index: {}]
  %s14 = inlined_call_operand.vmem [shape: f32[8,72], index: 14, kind: input, shape index: {}]
  %s15 = inlined_call_operand.vmem [shape: f32[4,1], index: 15, kind: input, shape index: {}]
  %s16 = inlined_call_operand.vmem [shape: f32[8,1], index: 16, kind: input, shape index: {}]
  %s17 = inlined_call_operand.hbm [shape: f32[2,8,256], index: 17, kind: output, shape index: {0}]
  %s18 = inlined_call_operand.hbm [shape: f32[2,8,256], index: 18, kind: output, shape index: {1}]
  %s19 = inlined_call_operand.hbm [shape: f32[2,8,256], index: 19, kind: output, shape index: {2}]
  %s20 = inlined_call_operand.hbm [shape: f32[2,8,256], index: 20, kind: output, shape index: {3}]
  %21 = xla_tuple %s17, %s18, %s19, %s20
  %s22 = sld [smem:[#allocation0]]
  $region165: #{tpu_custom_call.1} parent=0
    _
  %s24 = ssub.s32 1, %s22
  %s25 = scalar_select 0, %s24, %s22
  $region1: #{tpu_custom_call.1} parent=0
    #allocation5 [shape = 'u8[8192]{0}', space=vmem, size = 0x2000, scoped, tag = 'input window, operand 0']
    #allocation6 [shape = 's32[2]{0}', space=sflag, size = 0x8, scoped, tag = 'scoped memory for tpu_custom_call.1']
    #allocation7 [shape = 's32[2]{0}', space=sflag, size = 0x8, scoped, tag = 'scoped memory for tpu_custom_call.1']
    #allocation8 [shape = 'u8[8192]{0}', space=vmem, size = 0x2000, scoped, tag = 'input window, operand 2']
    #allocation9 [shape = 's32[2]{0}', space=sflag, size = 0x8, scoped, tag = 'scoped memory for tpu_custom_call.1']
    #allocation10 [shape = 'u8[8192]{0}', space=vmem, size = 0x2000, scoped, tag = 'input window, operand 3']
    #allocation11 [shape = 'u8[8192]{0}', space=vmem, size = 0x2000, scoped, tag = 'input window, operand 4']
    #allocation12 [shape = 's32[2]{0}', space=sflag, size = 0x8, scoped, tag = 'scoped memory for tpu_custom_call.1']
    #allocation13 [shape = 'u8[8192]{0}', space=vmem, size = 0x2000, scoped, tag = 'input window, operand 6']
    #allocation14 [shape = 'u8[8192]{0}', space=vmem, size = 0x2000, scoped, tag = 'input window, operand 7']
    #allocation15 [shape = 's32[2]{0}', space=sflag, size = 0x8, scoped, tag = 'scoped memory for tpu_custom_call.1']
    #allocation16 [shape = 'u8[8192]{0}', space=vmem, size = 0x2000, scoped, tag = 'input window, operand 8']
    #allocation17 [shape = 'u8[8192]{0}', space=vmem, size = 0x2000, scoped, tag = 'input window, operand 10']
    #allocation18 [shape = 's32[2]{0}', space=sflag, size = 0x8, scoped, tag = 'scoped memory for tpu_custom_call.1']
    #allocation19 [shape = 'u8[8192]{0}', space=vmem, size = 0x2000, scoped, tag = 'input window, operand 11']
    #allocation20 [shape = 'u8[73728]{0}', space=vmem, size = 0x12000, scoped, tag = 'input window, operand 12, single buffered']
    #allocation21 [shape = 's32[1]{0}', space=sflag, size = 0x4, scoped, tag = 'scoped memory for tpu_custom_call.1']
    #allocation22 [shape = 'u8[16384]{0}', space=vmem, size = 0x4000, scoped, tag = 'output window, operand 0']
    #allocation23 [shape = 'u8[16384]{0}', space=vmem, size = 0x4000, scoped, tag = 'output window, operand 1']
    #allocation24 [shape = 's32[2]{0}', space=sflag, size = 0x8, scoped, tag = 'scoped memory for tpu_custom_call.1']
    #allocation25 [shape = 'u8[16384]{0}', space=vmem, size = 0x4000, scoped, tag = 'output window, operand 2']
    #allocation26 [shape = 'u8[16384]{0}', space=vmem, size = 0x4000, scoped, tag = 'output window, operand 3']
    #allocation27 [shape = 's32[2]{0}', space=sflag, size = 0x8, scoped, tag = 'scoped memory for tpu_custom_call.1']
    %26 = vsyncpa [#allocation6], 0
    %s27 = scalar_lea.sflag [#allocation6], 1
    %28 = vsyncpa %s27, 0
    %29 = vsyncpa [#allocation9], 0
    %s30 = scalar_lea.sflag [#allocation9], 1
    %31 = vsyncpa %s30, 0
    %32 = vsyncpa [#allocation12], 0
    %s33 = scalar_lea.sflag [#allocation12], 1
    %34 = vsyncpa %s33, 0
    %35 = vsyncpa [#allocation15], 0
    %s36 = scalar_lea.sflag [#allocation15], 1
    %37 = vsyncpa %s36, 0
    %38 = vsyncpa [#allocation18], 0
    %s39 = scalar_lea.sflag [#allocation18], 1
    %40 = vsyncpa %s39, 0
    %41 = vsyncpa [#allocation21], 0
    %42 = vsyncpa [#allocation7], 0
    %s43 = scalar_lea.sflag [#allocation7], 1
    %44 = vsyncpa %s43, 0
    %45 = vsyncpa [#allocation24], 0
    %s46 = scalar_lea.sflag [#allocation24], 1
    %47 = vsyncpa %s46, 0
    %48 = vsyncpa [#allocation27], 0
    %s49 = scalar_lea.sflag [#allocation27], 1
    %50 = vsyncpa %s49, 0
    loop: start=0, step=1, limit=4
    $region2: #{tpu_custom_call.1} parent=1 // loop_pre_header
      _
    $region3: #{tpu_custom_call.1} parent=1 // loop_header
      %s52 = sphi 0, %s56
      %p53 = scmp.ge.s32.totalorder %s52, 4
      %s62 = sphi 0, %s64
      %s65 = sphi 0, %s62
      %s66 = sphi 0, %s65
      %s82 = sphi 0, %s66
      %s88 = sphi 0, %s90
      %s91 = sphi 0, %s88
      %s92 = sphi 0, %s91
      %s108 = sphi 0, %s92
      %s114 = sphi 0, %s116
      %s117 = sphi 0, %s114
      %s118 = sphi 0, %s117
      %s134 = sphi 0, %s118
      %s140 = sphi 0, %s142
      %s143 = sphi 0, %s140
      %s144 = sphi 0, %s143
      %s160 = sphi 0, %s144
      %s166 = sphi 0, %s168
      %s169 = sphi 0, %s166
      %s170 = sphi 0, %s169
      %s186 = sphi 0, %s170
      %s192 = sphi 0, %s194
      %s195 = sphi 0, %s192
      %s196 = sphi 0, %s195
      %s212 = sphi 0, %s196
      %s218 = sphi 0, %s220
      %s221 = sphi 0, %s218
      %s222 = sphi 0, %s221
      %s238 = sphi 0, %s222
      %s244 = sphi 0, %s246
      %s247 = sphi 0, %s244
      %s248 = sphi 0, %s247
      %s264 = sphi 0, %s248
      %s270 = sphi 0, %s272
      %s273 = sphi 0, %s270
      %s274 = sphi 0, %s273
      %s290 = sphi 0, %s274
      %s296 = sphi 0, %s298
      %s299 = sphi 0, %s296
      %s300 = sphi 0, %s299
      %s316 = sphi 0, %s300
      %s322 = sphi 0, %s324
      %s325 = sphi 0, %s322
      %s326 = sphi 0, %s325
      %s342 = sphi 0, %s326
      %s348 = sphi 0, %s350
      %s351 = sphi 0, %s348
      %s352 = sphi 0, %s351
      %s368 = sphi 0, %s352
      %s372 = sphi 0, %s372
      %s374 = sphi 0, %s372
      %s375 = sphi 0, %s374
      %s389 = sphi 0, %s375
      %s393 = sphi 0, %s393
      %s395 = sphi 0, %s393
      %s396 = sphi 0, %s395
      %s410 = sphi 0, %s396
      %s414 = sphi 0, %s414
      %s416 = sphi 0, %s414
      %s417 = sphi 0, %s416
      %s431 = sphi 0, %s417
      %s435 = sphi 0, %s435
      %s437 = sphi 0, %s435
      %s438 = sphi 0, %s437
      %s452 = sphi 0, %s438
      %s456 = sphi 0, %s456
      %s458 = sphi 0, %s456
      %s459 = sphi 0, %s458
      %s473 = sphi 0, %s459
      %s479 = sphi 0, %s481
      %s482 = sphi 0, %s479
      %s483 = sphi 0, %s482
      %s499 = sphi 0, %s483
      %s505 = sphi 0, %s507
      %s508 = sphi 0, %s505
      %s509 = sphi 0, %s508
      %s525 = sphi 0, %s509
      %s531 = sphi 0, %s533
      %s534 = sphi 0, %s531
      %s535 = sphi 0, %s534
      %s551 = sphi 0, %s535
      %s557 = sphi 0, %s559
      %s560 = sphi 0, %s557
      %s561 = sphi 0, %s560
      %s577 = sphi 0, %s561
    $region4: #{tpu_custom_call.1} parent=1 // loop_header_branch
      %55 = sbr.rel (%p53) target = $region8
    $region5: #{tpu_custom_call.1} parent=1 // loop_body
      %s57 = ssub.s32 %s52, 1
      %s58 = ssub.s32 %s52, 2
      %s59 = sadd.s32 %s52, 1
      %s60 = ssub.s32 %s52, %s59
      %p61 = scmp.eq.s32.totalorder %s60, 0
      %s63 = sadd.s32 %s62, 1
      %s64 = scalar_select %p61, %s62, %s63
      %p67 = pneg %p61
      %p68 = scmp.eq.s32.totalorder %s52, 1
      %p69 = por %p67, %p68
      %p70 = scmp.ne.s32.totalorder %s62, %s65
      %p71 = scmp.eq.s32.totalorder %s52, 0
      %p72 = por %p70, %p71
      %p73 = scmp.ne.s32.totalorder %s62, %s65
      %p74 = scmp.eq.s32.totalorder %s57, 1
      %p75 = por %p73, %p74
      %p76 = scmp.ne.s32.totalorder %s65, %s66
      %p77 = scmp.eq.s32.totalorder %s57, 0
      %p78 = por %p76, %p77
      %p79 = scmp.ne.s32.totalorder %s65, %s66
      %p80 = scmp.eq.s32.totalorder %s58, 1
      %p81 = por %p79, %p80
      %p83 = scmp.ne.s32.totalorder %s66, %s82
      %p84 = scmp.eq.s32.totalorder %s58, 0
      %p85 = por %p83, %p84
      %s86 = ssub.s32 %s52, %s59
      %p87 = scmp.eq.s32.totalorder %s86, 0
      %s89 = sadd.s32 %s88, 1
      %s90 = scalar_select %p87, %s88, %s89
      %p93 = pneg %p87
      %p94 = scmp.eq.s32.totalorder %s52, 1
      %p95 = por %p93, %p94
      %p96 = scmp.ne.s32.totalorder %s88, %s91
      %p97 = scmp.eq.s32.totalorder %s52, 0
      %p98 = por %p96, %p97
      %p99 = scmp.ne.s32.totalorder %s88, %s91
      %p100 = scmp.eq.s32.totalorder %s57, 1
      %p101 = por %p99, %p100
      %p102 = scmp.ne.s32.totalorder %s91, %s92
      %p103 = scmp.eq.s32.totalorder %s57, 0
      %p104 = por %p102, %p103
      %p105 = scmp.ne.s32.totalorder %s91, %s92
      %p106 = scmp.eq.s32.totalorder %s58, 1
      %p107 = por %p105, %p106
      %p109 = scmp.ne.s32.totalorder %s92, %s108
      %p110 = scmp.eq.s32.totalorder %s58, 0
      %p111 = por %p109, %p110
      %s112 = ssub.s32 %s52, %s59
      %p113 = scmp.eq.s32.totalorder %s112, 0
      %s115 = sadd.s32 %s114, 1
      %s116 = scalar_select %p113, %s114, %s115
      %p119 = pneg %p113
      %p120 = scmp.eq.s32.totalorder %s52, 1
      %p121 = por %p119, %p120
      %p122 = scmp.ne.s32.totalorder %s114, %s117
      %p123 = scmp.eq.s32.totalorder %s52, 0
      %p124 = por %p122, %p123
      %p125 = scmp.ne.s32.totalorder %s114, %s117
      %p126 = scmp.eq.s32.totalorder %s57, 1
      %p127 = por %p125, %p126
      %p128 = scmp.ne.s32.totalorder %s117, %s118
      %p129 = scmp.eq.s32.totalorder %s57, 0
      %p130 = por %p128, %p129
      %p131 = scmp.ne.s32.totalorder %s117, %s118
      %p132 = scmp.eq.s32.totalorder %s58, 1
      %p133 = por %p131, %p132
      %p135 = scmp.ne.s32.totalorder %s118, %s134
      %p136 = scmp.eq.s32.totalorder %s58, 0
      %p137 = por %p135, %p136
      %s138 = ssub.s32 %s52, %s59
      %p139 = scmp.eq.s32.totalorder %s138, 0
      %s141 = sadd.s32 %s140, 1
      %s142 = scalar_select %p139, %s140, %s141
      %p145 = pneg %p139
      %p146 = scmp.eq.s32.totalorder %s52, 1
      %p147 = por %p145, %p146
      %p148 = scmp.ne.s32.totalorder %s140, %s143
      %p149 = scmp.eq.s32.totalorder %s52, 0
      %p150 = por %p148, %p149
      %p151 = scmp.ne.s32.totalorder %s140, %s143
      %p152 = scmp.eq.s32.totalorder %s57, 1
      %p153 = por %p151, %p152
      %p154 = scmp.ne.s32.totalorder %s143, %s144
      %p155 = scmp.eq.s32.totalorder %s57, 0
      %p156 = por %p154, %p155
      %p157 = scmp.ne.s32.totalorder %s143, %s144
      %p158 = scmp.eq.s32.totalorder %s58, 1
      %p159 = por %p157, %p158
      %p161 = scmp.ne.s32.totalorder %s144, %s160
      %p162 = scmp.eq.s32.totalorder %s58, 0
      %p163 = por %p161, %p162
      %s164 = ssub.s32 %s52, %s59
      %p165 = scmp.eq.s32.totalorder %s164, 0
      %s167 = sadd.s32 %s166, 1
      %s168 = scalar_select %p165, %s166, %s167
      %p171 = pneg %p165
      %p172 = scmp.eq.s32.totalorder %s52, 1
      %p173 = por %p171, %p172
      %p174 = scmp.ne.s32.totalorder %s166, %s169
      %p175 = scmp.eq.s32.totalorder %s52, 0
      %p176 = por %p174, %p175
      %p177 = scmp.ne.s32.totalorder %s166, %s169
      %p178 = scmp.eq.s32.totalorder %s57, 1
      %p179 = por %p177, %p178
      %p180 = scmp.ne.s32.totalorder %s169, %s170
      %p181 = scmp.eq.s32.totalorder %s57, 0
      %p182 = por %p180, %p181
      %p183 = scmp.ne.s32.totalorder %s169, %s170
      %p184 = scmp.eq.s32.totalorder %s58, 1
      %p185 = por %p183, %p184
      %p187 = scmp.ne.s32.totalorder %s170, %s186
      %p188 = scmp.eq.s32.totalorder %s58, 0
      %p189 = por %p187, %p188
      %s190 = ssub.s32 %s52, %s59
      %p191 = scmp.eq.s32.totalorder %s190, 0
      %s193 = sadd.s32 %s192, 1
      %s194 = scalar_select %p191, %s192, %s193
      %p197 = pneg %p191
      %p198 = scmp.eq.s32.totalorder %s52, 1
      %p199 = por %p197, %p198
      %p200 = scmp.ne.s32.totalorder %s192, %s195
      %p201 = scmp.eq.s32.totalorder %s52, 0
      %p202 = por %p200, %p201
      %p203 = scmp.ne.s32.totalorder %s192, %s195
      %p204 = scmp.eq.s32.totalorder %s57, 1
      %p205 = por %p203, %p204
      %p206 = scmp.ne.s32.totalorder %s195, %s196
      %p207 = scmp.eq.s32.totalorder %s57, 0
      %p208 = por %p206, %p207
      %p209 = scmp.ne.s32.totalorder %s195, %s196
      %p210 = scmp.eq.s32.totalorder %s58, 1
      %p211 = por %p209, %p210
      %p213 = scmp.ne.s32.totalorder %s196, %s212
      %p214 = scmp.eq.s32.totalorder %s58, 0
      %p215 = por %p213, %p214
      %s216 = ssub.s32 %s52, %s59
      %p217 = scmp.eq.s32.totalorder %s216, 0
      %s219 = sadd.s32 %s218, 1
      %s220 = scalar_select %p217, %s218, %s219
      %p223 = pneg %p217
      %p224 = scmp.eq.s32.totalorder %s52, 1
      %p225 = por %p223, %p224
      %p226 = scmp.ne.s32.totalorder %s218, %s221
      %p227 = scmp.eq.s32.totalorder %s52, 0
      %p228 = por %p226, %p227
      %p229 = scmp.ne.s32.totalorder %s218, %s221
      %p230 = scmp.eq.s32.totalorder %s57, 1
      %p231 = por %p229, %p230
      %p232 = scmp.ne.s32.totalorder %s221, %s222
      %p233 = scmp.eq.s32.totalorder %s57, 0
      %p234 = por %p232, %p233
      %p235 = scmp.ne.s32.totalorder %s221, %s222
      %p236 = scmp.eq.s32.totalorder %s58, 1
      %p237 = por %p235, %p236
      %p239 = scmp.ne.s32.totalorder %s222, %s238
      %p240 = scmp.eq.s32.totalorder %s58, 0
      %p241 = por %p239, %p240
      %s242 = ssub.s32 %s52, %s59
      %p243 = scmp.eq.s32.totalorder %s242, 0
      %s245 = sadd.s32 %s244, 1
      %s246 = scalar_select %p243, %s244, %s245
      %p249 = pneg %p243
      %p250 = scmp.eq.s32.totalorder %s52, 1
      %p251 = por %p249, %p250
      %p252 = scmp.ne.s32.totalorder %s244, %s247
      %p253 = scmp.eq.s32.totalorder %s52, 0
      %p254 = por %p252, %p253
      %p255 = scmp.ne.s32.totalorder %s244, %s247
      %p256 = scmp.eq.s32.totalorder %s57, 1
      %p257 = por %p255, %p256
      %p258 = scmp.ne.s32.totalorder %s247, %s248
      %p259 = scmp.eq.s32.totalorder %s57, 0
      %p260 = por %p258, %p259
      %p261 = scmp.ne.s32.totalorder %s247, %s248
      %p262 = scmp.eq.s32.totalorder %s58, 1
      %p263 = por %p261, %p262
      %p265 = scmp.ne.s32.totalorder %s248, %s264
      %p266 = scmp.eq.s32.totalorder %s58, 0
      %p267 = por %p265, %p266
      %s268 = ssub.s32 %s52, %s59
      %p269 = scmp.eq.s32.totalorder %s268, 0
      %s271 = sadd.s32 %s270, 1
      %s272 = scalar_select %p269, %s270, %s271
      %p275 = pneg %p269
      %p276 = scmp.eq.s32.totalorder %s52, 1
      %p277 = por %p275, %p276
      %p278 = scmp.ne.s32.totalorder %s270, %s273
      %p279 = scmp.eq.s32.totalorder %s52, 0
      %p280 = por %p278, %p279
      %p281 = scmp.ne.s32.totalorder %s270, %s273
      %p282 = scmp.eq.s32.totalorder %s57, 1
      %p283 = por %p281, %p282
      %p284 = scmp.ne.s32.totalorder %s273, %s274
      %p285 = scmp.eq.s32.totalorder %s57, 0
      %p286 = por %p284, %p285
      %p287 = scmp.ne.s32.totalorder %s273, %s274
      %p288 = scmp.eq.s32.totalorder %s58, 1
      %p289 = por %p287, %p288
      %p291 = scmp.ne.s32.totalorder %s274, %s290
      %p292 = scmp.eq.s32.totalorder %s58, 0
      %p293 = por %p291, %p292
      %s294 = ssub.s32 %s52, %s59
      %p295 = scmp.eq.s32.totalorder %s294, 0
      %s297 = sadd.s32 %s296, 1
      %s298 = scalar_select %p295, %s296, %s297
      %p301 = pneg %p295
      %p302 = scmp.eq.s32.totalorder %s52, 1
      %p303 = por %p301, %p302
      %p304 = scmp.ne.s32.totalorder %s296, %s299
      %p305 = scmp.eq.s32.totalorder %s52, 0
      %p306 = por %p304, %p305
      %p307 = scmp.ne.s32.totalorder %s296, %s299
      %p308 = scmp.eq.s32.totalorder %s57, 1
      %p309 = por %p307, %p308
      %p310 = scmp.ne.s32.totalorder %s299, %s300
      %p311 = scmp.eq.s32.totalorder %s57, 0
      %p312 = por %p310, %p311
      %p313 = scmp.ne.s32.totalorder %s299, %s300
      %p314 = scmp.eq.s32.totalorder %s58, 1
      %p315 = por %p313, %p314
      %p317 = scmp.ne.s32.totalorder %s300, %s316
      %p318 = scmp.eq.s32.totalorder %s58, 0
      %p319 = por %p317, %p318
      %s320 = ssub.s32 %s52, %s59
      %p321 = scmp.eq.s32.totalorder %s320, 0
      %s323 = sadd.s32 %s322, 1
      %s324 = scalar_select %p321, %s322, %s323
      %p327 = pneg %p321
      %p328 = scmp.eq.s32.totalorder %s52, 1
      %p329 = por %p327, %p328
      %p330 = scmp.ne.s32.totalorder %s322, %s325
      %p331 = scmp.eq.s32.totalorder %s52, 0
      %p332 = por %p330, %p331
      %p333 = scmp.ne.s32.totalorder %s322, %s325
      %p334 = scmp.eq.s32.totalorder %s57, 1
      %p335 = por %p333, %p334
      %p336 = scmp.ne.s32.totalorder %s325, %s326
      %p337 = scmp.eq.s32.totalorder %s57, 0
      %p338 = por %p336, %p337
      %p339 = scmp.ne.s32.totalorder %s325, %s326
      %p340 = scmp.eq.s32.totalorder %s58, 1
      %p341 = por %p339, %p340
      %p343 = scmp.ne.s32.totalorder %s326, %s342
      %p344 = scmp.eq.s32.totalorder %s58, 0
      %p345 = por %p343, %p344
      %s346 = ssub.s32 %s52, %s59
      %p347 = scmp.eq.s32.totalorder %s346, 0
      %s349 = sadd.s32 %s348, 1
      %s350 = scalar_select %p347, %s348, %s349
      %p353 = pneg %p347
      %p354 = scmp.eq.s32.totalorder %s52, 1
      %p355 = por %p353, %p354
      %p356 = scmp.ne.s32.totalorder %s348, %s351
      %p357 = scmp.eq.s32.totalorder %s52, 0
      %p358 = por %p356, %p357
      %p359 = scmp.ne.s32.totalorder %s348, %s351
      %p360 = scmp.eq.s32.totalorder %s57, 1
      %p361 = por %p359, %p360
      %p362 = scmp.ne.s32.totalorder %s351, %s352
      %p363 = scmp.eq.s32.totalorder %s57, 0
      %p364 = por %p362, %p363
      %p365 = scmp.ne.s32.totalorder %s351, %s352
      %p366 = scmp.eq.s32.totalorder %s58, 1
      %p367 = por %p365, %p366
      %p369 = scmp.ne.s32.totalorder %s352, %s368
      %p370 = scmp.eq.s32.totalorder %s58, 0
      %p371 = por %p369, %p370
      %s373 = sadd.s32 %s372, 1
      %p376 = scmp.eq.s32.totalorder %s52, 1
      %p377 = scmp.ne.s32.totalorder %s372, %s374
      %p378 = scmp.eq.s32.totalorder %s52, 0
      %p379 = por %p377, %p378
      %p380 = scmp.ne.s32.totalorder %s372, %s374
      %p381 = scmp.eq.s32.totalorder %s57, 1
      %p382 = por %p380, %p381
      %p383 = scmp.ne.s32.totalorder %s374, %s375
      %p384 = scmp.eq.s32.totalorder %s57, 0
      %p385 = por %p383, %p384
      %p386 = scmp.ne.s32.totalorder %s374, %s375
      %p387 = scmp.eq.s32.totalorder %s58, 1
      %p388 = por %p386, %p387
      %p390 = scmp.ne.s32.totalorder %s375, %s389
      %p391 = scmp.eq.s32.totalorder %s58, 0
      %p392 = por %p390, %p391
      %s394 = sadd.s32 %s393, 1
      %p397 = scmp.eq.s32.totalorder %s52, 1
      %p398 = scmp.ne.s32.totalorder %s393, %s395
      %p399 = scmp.eq.s32.totalorder %s52, 0
      %p400 = por %p398, %p399
      %p401 = scmp.ne.s32.totalorder %s393, %s395
      %p402 = scmp.eq.s32.totalorder %s57, 1
      %p403 = por %p401, %p402
      %p404 = scmp.ne.s32.totalorder %s395, %s396
      %p405 = scmp.eq.s32.totalorder %s57, 0
      %p406 = por %p404, %p405
      %p407 = scmp.ne.s32.totalorder %s395, %s396
      %p408 = scmp.eq.s32.totalorder %s58, 1
      %p409 = por %p407, %p408
      %p411 = scmp.ne.s32.totalorder %s396, %s410
      %p412 = scmp.eq.s32.totalorder %s58, 0
      %p413 = por %p411, %p412
      %s415 = sadd.s32 %s414, 1
      %p418 = scmp.eq.s32.totalorder %s52, 1
      %p419 = scmp.ne.s32.totalorder %s414, %s416
      %p420 = scmp.eq.s32.totalorder %s52, 0
      %p421 = por %p419, %p420
      %p422 = scmp.ne.s32.totalorder %s414, %s416
      %p423 = scmp.eq.s32.totalorder %s57, 1
      %p424 = por %p422, %p423
      %p425 = scmp.ne.s32.totalorder %s416, %s417
      %p426 = scmp.eq.s32.totalorder %s57, 0
      %p427 = por %p425, %p426
      %p428 = scmp.ne.s32.totalorder %s416, %s417
      %p429 = scmp.eq.s32.totalorder %s58, 1
      %p430 = por %p428, %p429
      %p432 = scmp.ne.s32.totalorder %s417, %s431
      %p433 = scmp.eq.s32.totalorder %s58, 0
      %p434 = por %p432, %p433
      %s436 = sadd.s32 %s435, 1
      %p439 = scmp.eq.s32.totalorder %s52, 1
      %p440 = scmp.ne.s32.totalorder %s435, %s437
      %p441 = scmp.eq.s32.totalorder %s52, 0
      %p442 = por %p440, %p441
      %p443 = scmp.ne.s32.totalorder %s435, %s437
      %p444 = scmp.eq.s32.totalorder %s57, 1
      %p445 = por %p443, %p444
      %p446 = scmp.ne.s32.totalorder %s437, %s438
      %p447 = scmp.eq.s32.totalorder %s57, 0
      %p448 = por %p446, %p447
      %p449 = scmp.ne.s32.totalorder %s437, %s438
      %p450 = scmp.eq.s32.totalorder %s58, 1
      %p451 = por %p449, %p450
      %p453 = scmp.ne.s32.totalorder %s438, %s452
      %p454 = scmp.eq.s32.totalorder %s58, 0
      %p455 = por %p453, %p454
      %s457 = sadd.s32 %s456, 1
      %p460 = scmp.eq.s32.totalorder %s52, 1
      %p461 = scmp.ne.s32.totalorder %s456, %s458
      %p462 = scmp.eq.s32.totalorder %s52, 0
      %p463 = por %p461, %p462
      %p464 = scmp.ne.s32.totalorder %s456, %s458
      %p465 = scmp.eq.s32.totalorder %s57, 1
      %p466 = por %p464, %p465
      %p467 = scmp.ne.s32.totalorder %s458, %s459
      %p468 = scmp.eq.s32.totalorder %s57, 0
      %p469 = por %p467, %p468
      %p470 = scmp.ne.s32.totalorder %s458, %s459
      %p471 = scmp.eq.s32.totalorder %s58, 1
      %p472 = por %p470, %p471
      %p474 = scmp.ne.s32.totalorder %s459, %s473
      %p475 = scmp.eq.s32.totalorder %s58, 0
      %p476 = por %p474, %p475
      %s477 = ssub.s32 %s52, %s59
      %p478 = scmp.eq.s32.totalorder %s477, 0
      %s480 = sadd.s32 %s479, 1
      %s481 = scalar_select %p478, %s479, %s480
      %p484 = pneg %p478
      %p485 = scmp.eq.s32.totalorder %s52, 1
      %p486 = por %p484, %p485
      %p487 = scmp.ne.s32.totalorder %s479, %s482
      %p488 = scmp.eq.s32.totalorder %s52, 0
      %p489 = por %p487, %p488
      %p490 = scmp.ne.s32.totalorder %s479, %s482
      %p491 = scmp.eq.s32.totalorder %s57, 1
      %p492 = por %p490, %p491
      %p493 = scmp.ne.s32.totalorder %s482, %s483
      %p494 = scmp.eq.s32.totalorder %s57, 0
      %p495 = por %p493, %p494
      %p496 = scmp.ne.s32.totalorder %s482, %s483
      %p497 = scmp.eq.s32.totalorder %s58, 1
      %p498 = por %p496, %p497
      %p500 = scmp.ne.s32.totalorder %s483, %s499
      %p501 = scmp.eq.s32.totalorder %s58, 0
      %p502 = por %p500, %p501
      %s503 = ssub.s32 %s52, %s59
      %p504 = scmp.eq.s32.totalorder %s503, 0
      %s506 = sadd.s32 %s505, 1
      %s507 = scalar_select %p504, %s505, %s506
      %p510 = pneg %p504
      %p511 = scmp.eq.s32.totalorder %s52, 1
      %p512 = por %p510, %p511
      %p513 = scmp.ne.s32.totalorder %s505, %s508
      %p514 = scmp.eq.s32.totalorder %s52, 0
      %p515 = por %p513, %p514
      %p516 = scmp.ne.s32.totalorder %s505, %s508
      %p517 = scmp.eq.s32.totalorder %s57, 1
      %p518 = por %p516, %p517
      %p519 = scmp.ne.s32.totalorder %s508, %s509
      %p520 = scmp.eq.s32.totalorder %s57, 0
      %p521 = por %p519, %p520
      %p522 = scmp.ne.s32.totalorder %s508, %s509
      %p523 = scmp.eq.s32.totalorder %s58, 1
      %p524 = por %p522, %p523
      %p526 = scmp.ne.s32.totalorder %s509, %s525
      %p527 = scmp.eq.s32.totalorder %s58, 0
      %p528 = por %p526, %p527
      %s529 = ssub.s32 %s52, %s59
      %p530 = scmp.eq.s32.totalorder %s529, 0
      %s532 = sadd.s32 %s531, 1
      %s533 = scalar_select %p530, %s531, %s532
      %p536 = pneg %p530
      %p537 = scmp.eq.s32.totalorder %s52, 1
      %p538 = por %p536, %p537
      %p539 = scmp.ne.s32.totalorder %s531, %s534
      %p540 = scmp.eq.s32.totalorder %s52, 0
      %p541 = por %p539, %p540
      %p542 = scmp.ne.s32.totalorder %s531, %s534
      %p543 = scmp.eq.s32.totalorder %s57, 1
      %p544 = por %p542, %p543
      %p545 = scmp.ne.s32.totalorder %s534, %s535
      %p546 = scmp.eq.s32.totalorder %s57, 0
      %p547 = por %p545, %p546
      %p548 = scmp.ne.s32.totalorder %s534, %s535
      %p549 = scmp.eq.s32.totalorder %s58, 1
      %p550 = por %p548, %p549
      %p552 = scmp.ne.s32.totalorder %s535, %s551
      %p553 = scmp.eq.s32.totalorder %s58, 0
      %p554 = por %p552, %p553
      %s555 = ssub.s32 %s52, %s59
      %p556 = scmp.eq.s32.totalorder %s555, 0
      %s558 = sadd.s32 %s557, 1
      %s559 = scalar_select %p556, %s557, %s558
      %p562 = pneg %p556
      %p563 = scmp.eq.s32.totalorder %s52, 1
      %p564 = por %p562, %p563
      %p565 = scmp.ne.s32.totalorder %s557, %s560
      %p566 = scmp.eq.s32.totalorder %s52, 0
      %p567 = por %p565, %p566
      %p568 = scmp.ne.s32.totalorder %s557, %s560
      %p569 = scmp.eq.s32.totalorder %s57, 1
      %p570 = por %p568, %p569
      %p571 = scmp.ne.s32.totalorder %s560, %s561
      %p572 = scmp.eq.s32.totalorder %s57, 0
      %p573 = por %p571, %p572
      %p574 = scmp.ne.s32.totalorder %s560, %s561
      %p575 = scmp.eq.s32.totalorder %s58, 1
      %p576 = por %p574, %p575
      %p578 = scmp.ne.s32.totalorder %s561, %s577
      %p579 = scmp.eq.s32.totalorder %s58, 0
      %p580 = por %p578, %p579
      %p581 = scmp.le.s32.totalorder 1, %s52
      %p582 = scmp.lt.s32.totalorder %s52, 3
      %p583 = pnand %p581, %p582
      %p584 = pneg %p583
      // Predicated region
      $region9: #{tpu_custom_call.1} parent=5 // pred_check
        _
      $region10: #{tpu_custom_call.1} parent=5 // pred_check_branch
        %586 = sbr.rel (%p583) target = $region12
      $region11: #{tpu_custom_call.1} parent=5 // pred_region
        %s587 = ssub.s32 %s52, 1
        // Predicated region
        $region13: #{tpu_custom_call.1} parent=11 // pred_check
          %p588 = pneg %p385
        $region14: #{tpu_custom_call.1} parent=11 // pred_check_branch
          %590 = sbr.rel (%p588) target = $region16
        $region15: #{tpu_custom_call.1} parent=11 // pred_region
          %s592 = ssub.s32 2304, 2304
          %593 = vsyncadd [#allocation21], %s592
          %s594 = sshll.u32 [#allocation20], 4
          %s595 = int_to_ptr.vmem [resolvable:$true] %s594
          %600 = dma.hbm_to_vmem [thread:$0]  %s12, 2304, %s595, [#allocation21], 256, 256, 16
        $region16: #{tpu_custom_call.1} parent=11 // pred_fallthru
          _
        // Predicated region
        $region17: #{tpu_custom_call.1} parent=11 // pred_check
          %p601 = pneg %p406
        $region18: #{tpu_custom_call.1} parent=11 // pred_check_branch
          %603 = sbr.rel (%p601) target = $region20
        $region19: #{tpu_custom_call.1} parent=11 // pred_region
          _
        $region20: #{tpu_custom_call.1} parent=11 // pred_fallthru
          _
        // Predicated region
        $region21: #{tpu_custom_call.1} parent=11 // pred_check
          %p604 = pneg %p427
        $region22: #{tpu_custom_call.1} parent=11 // pred_check_branch
          %606 = sbr.rel (%p604) target = $region24
        $region23: #{tpu_custom_call.1} parent=11 // pred_region
          _
        $region24: #{tpu_custom_call.1} parent=11 // pred_fallthru
          _
        // Predicated region
        $region25: #{tpu_custom_call.1} parent=11 // pred_check
          %p607 = pneg %p448
        $region26: #{tpu_custom_call.1} parent=11 // pred_check_branch
          %609 = sbr.rel (%p607) target = $region28
        $region27: #{tpu_custom_call.1} parent=11 // pred_region
          _
        $region28: #{tpu_custom_call.1} parent=11 // pred_fallthru
          _
        // Predicated region
        $region29: #{tpu_custom_call.1} parent=11 // pred_check
          %p610 = pneg %p469
        $region30: #{tpu_custom_call.1} parent=11 // pred_check_branch
          %612 = sbr.rel (%p610) target = $region32
        $region31: #{tpu_custom_call.1} parent=11 // pred_region
          _
        $region32: #{tpu_custom_call.1} parent=11 // pred_fallthru
          _
      $region12: #{tpu_custom_call.1} parent=5 // pred_fallthru
        _
      %p613 = scmp.lt.s32.totalorder %s52, 2
      // Predicated region
      $region33: #{tpu_custom_call.1} parent=5 // pred_check
        %p614 = pneg %p613
      $region34: #{tpu_custom_call.1} parent=5 // pred_check_branch
        %616 = sbr.rel (%p614) target = $region36
      $region35: #{tpu_custom_call.1} parent=5 // pred_region
        // Predicated region
        $region37: #{tpu_custom_call.1} parent=35 // pred_check
          %p617 = pneg %p72
        $region38: #{tpu_custom_call.1} parent=35 // pred_check_branch
          %619 = sbr.rel (%p617) target = $region40
        $region39: #{tpu_custom_call.1} parent=35 // pred_region
          %s620 = sand.u32 %s62, 1
          %s621 = scalar_lea.sflag [#allocation6], %s620
          %s622 = sand.u32 %s62, 1
          %s623 = smul.addr %s622, 8
          %s624 = scalar_lea.vmem [#allocation5], %s623
          %s626 = ssub.s32 128, 128
          %627 = vsyncadd %s621, %s626
          %s628 = smul.addr %s52, 2
          %s629 = smul.addr %s628, 64
          %s630 = scalar_lea.hbm %s0, %s629
          %s632 = sshll.u32 %s624, 4
          %s633 = int_to_ptr.vmem [resolvable:$true] %s632
          %635 = dma.hbm_to_vmem [thread:$0]  %s630, 128, %s633, %s621
        $region40: #{tpu_custom_call.1} parent=35 // pred_fallthru
          _
        // Predicated region
        $region41: #{tpu_custom_call.1} parent=35 // pred_check
          %p636 = pneg %p98
        $region42: #{tpu_custom_call.1} parent=35 // pred_check_branch
          %638 = sbr.rel (%p636) target = $region44
        $region43: #{tpu_custom_call.1} parent=35 // pred_region
          %p639 = scmp.lt.s32.totalorder %s52, 1
          %s640 = scalar_select %p639, %s52, 1
          %s641 = smul.addr %s640, 2
          %s642 = smul.addr %s641, 4
          %s643 = scalar_lea.vmem %s1, %s642
        $region44: #{tpu_custom_call.1} parent=35 // pred_fallthru
          _
        // Predicated region
        $region45: #{tpu_custom_call.1} parent=35 // pred_check
          %p644 = pneg %p124
        $region46: #{tpu_custom_call.1} parent=35 // pred_check_branch
          %646 = sbr.rel (%p644) target = $region48
        $region47: #{tpu_custom_call.1} parent=35 // pred_region
          %s647 = sand.u32 %s52, 1
          %s648 = scalar_lea.sflag [#allocation9], %s647
          %s649 = sand.u32 %s114, 1
          %s650 = smul.addr %s649, 8
          %s651 = scalar_lea.vmem [#allocation8], %s650
          %s653 = ssub.s32 128, 128
          %654 = vsyncadd %s648, %s653
          %s655 = smul.addr %s52, 2
          %s656 = smul.addr %s655, 64
          %s657 = scalar_lea.hbm %s2, %s656
          %s659 = sshll.u32 %s651, 4
          %s660 = int_to_ptr.vmem [resolvable:$true] %s659
          %662 = dma.hbm_to_vmem [thread:$0]  %s657, 128, %s660, %s648
        $region48: #{tpu_custom_call.1} parent=35 // pred_fallthru
          _
        // Predicated region
        $region49: #{tpu_custom_call.1} parent=35 // pred_check
          %p663 = pneg %p150
        $region50: #{tpu_custom_call.1} parent=35 // pred_check_branch
          %665 = sbr.rel (%p663) target = $region52
        $region51: #{tpu_custom_call.1} parent=35 // pred_region
          %s666 = sand.u32 %s52, 1
          %s667 = scalar_lea.sflag [#allocation9], %s666
          %s668 = sand.u32 %s140, 1
          %s669 = smul.addr %s668, 8
          %s670 = scalar_lea.vmem [#allocation10], %s669
          %s672 = ssub.s32 128, 128
          %673 = vsyncadd %s667, %s672
          %s674 = smul.addr %s52, 2
          %s675 = smul.addr %s674, 64
          %s676 = scalar_lea.hbm %s3, %s675
          %s678 = sshll.u32 %s670, 4
          %s679 = int_to_ptr.vmem [resolvable:$true] %s678
          %681 = dma.hbm_to_vmem [thread:$0]  %s676, 128, %s679, %s667
        $region52: #{tpu_custom_call.1} parent=35 // pred_fallthru
          _
        // Predicated region
        $region53: #{tpu_custom_call.1} parent=35 // pred_check
          %p682 = pneg %p176
        $region54: #{tpu_custom_call.1} parent=35 // pred_check_branch
          %684 = sbr.rel (%p682) target = $region56
        $region55: #{tpu_custom_call.1} parent=35 // pred_region
          %s685 = sand.u32 %s52, 1
          %s686 = scalar_lea.sflag [#allocation12], %s685
          %s687 = sand.u32 %s166, 1
          %s688 = smul.addr %s687, 8
          %s689 = scalar_lea.vmem [#allocation11], %s688
          %s691 = ssub.s32 128, 128
          %692 = vsyncadd %s686, %s691
          %s693 = smul.addr %s52, 2
          %s694 = smul.addr %s693, 64
          %s695 = scalar_lea.hbm %s4, %s694
          %s697 = sshll.u32 %s689, 4
          %s698 = int_to_ptr.vmem [resolvable:$true] %s697
          %700 = dma.hbm_to_vmem [thread:$0]  %s695, 128, %s698, %s686
        $region56: #{tpu_custom_call.1} parent=35 // pred_fallthru
          _
        // Predicated region
        $region57: #{tpu_custom_call.1} parent=35 // pred_check
          %p701 = pneg %p202
        $region58: #{tpu_custom_call.1} parent=35 // pred_check_branch
          %703 = sbr.rel (%p701) target = $region60
        $region59: #{tpu_custom_call.1} parent=35 // pred_region
          %p704 = scmp.lt.s32.totalorder %s52, 1
          %s705 = scalar_select %p704, %s52, 1
          %s706 = smul.addr %s705, 2
          %s707 = smul.addr %s706, 4
          %s708 = scalar_lea.vmem %s5, %s707
        $region60: #{tpu_custom_call.1} parent=35 // pred_fallthru
          _
        // Predicated region
        $region61: #{tpu_custom_call.1} parent=35 // pred_check
          %p709 = pneg %p228
        $region62: #{tpu_custom_call.1} parent=35 // pred_check_branch
          %711 = sbr.rel (%p709) target = $region64
        $region63: #{tpu_custom_call.1} parent=35 // pred_region
          %s712 = sand.u32 %s52, 1
          %s713 = scalar_lea.sflag [#allocation12], %s712
          %s714 = sand.u32 %s218, 1
          %s715 = smul.addr %s714, 8
          %s716 = scalar_lea.vmem [#allocation13], %s715
          %s718 = ssub.s32 128, 128
          %719 = vsyncadd %s713, %s718
          %s720 = smul.addr %s52, 2
          %s721 = smul.addr %s720, 64
          %s722 = scalar_lea.hbm %s6, %s721
          %s724 = sshll.u32 %s716, 4
          %s725 = int_to_ptr.vmem [resolvable:$true] %s724
          %727 = dma.hbm_to_vmem [thread:$0]  %s722, 128, %s725, %s713
        $region64: #{tpu_custom_call.1} parent=35 // pred_fallthru
          _
        // Predicated region
        $region65: #{tpu_custom_call.1} parent=35 // pred_check
          %p728 = pneg %p254
        $region66: #{tpu_custom_call.1} parent=35 // pred_check_branch
          %730 = sbr.rel (%p728) target = $region68
        $region67: #{tpu_custom_call.1} parent=35 // pred_region
          %s731 = sand.u32 %s52, 1
          %s732 = scalar_lea.sflag [#allocation15], %s731
          %s733 = sand.u32 %s244, 1
          %s734 = smul.addr %s733, 8
          %s735 = scalar_lea.vmem [#allocation14], %s734
          %s737 = ssub.s32 128, 128
          %738 = vsyncadd %s732, %s737
          %s739 = smul.addr %s52, 2
          %s740 = smul.addr %s739, 64
          %s741 = scalar_lea.hbm %s7, %s740
          %s743 = sshll.u32 %s735, 4
          %s744 = int_to_ptr.vmem [resolvable:$true] %s743
          %746 = dma.hbm_to_vmem [thread:$0]  %s741, 128, %s744, %s732
        $region68: #{tpu_custom_call.1} parent=35 // pred_fallthru
          _
        // Predicated region
        $region69: #{tpu_custom_call.1} parent=35 // pred_check
          %p747 = pneg %p280
        $region70: #{tpu_custom_call.1} parent=35 // pred_check_branch
          %749 = sbr.rel (%p747) target = $region72
        $region71: #{tpu_custom_call.1} parent=35 // pred_region
          %s750 = sand.u32 %s52, 1
          %s751 = scalar_lea.sflag [#allocation15], %s750
          %s752 = sand.u32 %s270, 1
          %s753 = smul.addr %s752, 8
          %s754 = scalar_lea.vmem [#allocation16], %s753
          %s756 = ssub.s32 128, 128
          %757 = vsyncadd %s751, %s756
          %s758 = smul.addr %s52, 2
          %s759 = smul.addr %s758, 64
          %s760 = scalar_lea.hbm %s8, %s759
          %s762 = sshll.u32 %s754, 4
          %s763 = int_to_ptr.vmem [resolvable:$true] %s762
          %765 = dma.hbm_to_vmem [thread:$0]  %s760, 128, %s763, %s751
        $region72: #{tpu_custom_call.1} parent=35 // pred_fallthru
          _
        // Predicated region
        $region73: #{tpu_custom_call.1} parent=35 // pred_check
          %p766 = pneg %p306
        $region74: #{tpu_custom_call.1} parent=35 // pred_check_branch
          %768 = sbr.rel (%p766) target = $region76
        $region75: #{tpu_custom_call.1} parent=35 // pred_region
          %p769 = scmp.lt.s32.totalorder %s52, 1
          %s770 = scalar_select %p769, %s52, 1
          %s771 = smul.addr %s770, 2
          %s772 = smul.addr %s771, 4
          %s773 = scalar_lea.vmem %s9, %s772
        $region76: #{tpu_custom_call.1} parent=35 // pred_fallthru
          _
        // Predicated region
        $region77: #{tpu_custom_call.1} parent=35 // pred_check
          %p774 = pneg %p332
        $region78: #{tpu_custom_call.1} parent=35 // pred_check_branch
          %776 = sbr.rel (%p774) target = $region80
        $region79: #{tpu_custom_call.1} parent=35 // pred_region
          %s777 = sand.u32 %s52, 1
          %s778 = scalar_lea.sflag [#allocation18], %s777
          %s779 = sand.u32 %s322, 1
          %s780 = smul.addr %s779, 8
          %s781 = scalar_lea.vmem [#allocation17], %s780
          %s783 = ssub.s32 128, 128
          %784 = vsyncadd %s778, %s783
          %s785 = smul.addr %s52, 2
          %s786 = smul.addr %s785, 64
          %s787 = scalar_lea.hbm %s10, %s786
          %s789 = sshll.u32 %s781, 4
          %s790 = int_to_ptr.vmem [resolvable:$true] %s789
          %792 = dma.hbm_to_vmem [thread:$0]  %s787, 128, %s790, %s778
        $region80: #{tpu_custom_call.1} parent=35 // pred_fallthru
          _
        // Predicated region
        $region81: #{tpu_custom_call.1} parent=35 // pred_check
          %p793 = pneg %p358
        $region82: #{tpu_custom_call.1} parent=35 // pred_check_branch
          %795 = sbr.rel (%p793) target = $region84
        $region83: #{tpu_custom_call.1} parent=35 // pred_region
          %s796 = sand.u32 %s52, 1
          %s797 = scalar_lea.sflag [#allocation18], %s796
          %s798 = sand.u32 %s348, 1
          %s799 = smul.addr %s798, 8
          %s800 = scalar_lea.vmem [#allocation19], %s799
          %s802 = ssub.s32 128, 128
          %803 = vsyncadd %s797, %s802
          %s804 = smul.addr %s52, 2
          %s805 = smul.addr %s804, 64
          %s806 = scalar_lea.hbm %s11, %s805
          %s808 = sshll.u32 %s800, 4
          %s809 = int_to_ptr.vmem [resolvable:$true] %s808
          %811 = dma.hbm_to_vmem [thread:$0]  %s806, 128, %s809, %s797
        $region84: #{tpu_custom_call.1} parent=35 // pred_fallthru
          _
      $region36: #{tpu_custom_call.1} parent=5 // pred_fallthru
        _
      %p812 = scmp.le.s32.totalorder 1, %s52
      %p813 = scmp.lt.s32.totalorder %s52, 3
      %p814 = pnand %p812, %p813
      %p815 = pneg %p814
      // Predicated region
      $region85: #{tpu_custom_call.1} parent=5 // pred_check
        _
      $region86: #{tpu_custom_call.1} parent=5 // pred_check_branch
        %817 = sbr.rel (%p814) target = $region88
      $region87: #{tpu_custom_call.1} parent=5 // pred_region
        %s818 = ssub.s32 %s52, 1
        %s819 = sand.u32 %s65, 1
        %s820 = scalar_lea.sflag [#allocation6], %s819
        %s821 = sand.u32 %s65, 1
        %s822 = smul.addr %s821, 8
        %s823 = scalar_lea.vmem [#allocation5], %s822
        // Predicated region
        $region89: #{tpu_custom_call.1} parent=87 // pred_check
          %p824 = pneg %p78
        $region90: #{tpu_custom_call.1} parent=87 // pred_check_branch
          %826 = sbr.rel (%p824) target = $region92
        $region91: #{tpu_custom_call.1} parent=87 // pred_region
          %827 = dma.done %s820, 128
        $region92: #{tpu_custom_call.1} parent=87 // pred_fallthru
          _
        %s828 = sand.u32 %s57, 1
        %s829 = scalar_lea.sflag [#allocation9], %s828
        %s830 = sand.u32 %s117, 1
        %s831 = smul.addr %s830, 8
        %s832 = scalar_lea.vmem [#allocation8], %s831
        // Predicated region
        $region93: #{tpu_custom_call.1} parent=87 // pred_check
          %p833 = pneg %p130
        $region94: #{tpu_custom_call.1} parent=87 // pred_check_branch
          %835 = sbr.rel (%p833) target = $region96
        $region95: #{tpu_custom_call.1} parent=87 // pred_region
          %836 = dma.done %s829, 128
        $region96: #{tpu_custom_call.1} parent=87 // pred_fallthru
          _
        %s837 = sand.u32 %s57, 1
        %s838 = scalar_lea.sflag [#allocation9], %s837
        %s839 = sand.u32 %s143, 1
        %s840 = smul.addr %s839, 8
        %s841 = scalar_lea.vmem [#allocation10], %s840
        // Predicated region
        $region97: #{tpu_custom_call.1} parent=87 // pred_check
          %p842 = pneg %p156
        $region98: #{tpu_custom_call.1} parent=87 // pred_check_branch
          %844 = sbr.rel (%p842) target = $region100
        $region99: #{tpu_custom_call.1} parent=87 // pred_region
          %845 = dma.done %s838, 128
        $region100: #{tpu_custom_call.1} parent=87 // pred_fallthru
          _
        %s846 = sand.u32 %s57, 1
        %s847 = scalar_lea.sflag [#allocation12], %s846
        %s848 = sand.u32 %s169, 1
        %s849 = smul.addr %s848, 8
        %s850 = scalar_lea.vmem [#allocation11], %s849
        // Predicated region
        $region101: #{tpu_custom_call.1} parent=87 // pred_check
          %p851 = pneg %p182
        $region102: #{tpu_custom_call.1} parent=87 // pred_check_branch
          %853 = sbr.rel (%p851) target = $region104
        $region103: #{tpu_custom_call.1} parent=87 // pred_region
          %854 = dma.done %s847, 128
        $region104: #{tpu_custom_call.1} parent=87 // pred_fallthru
          _
        %s855 = sand.u32 %s57, 1
        %s856 = scalar_lea.sflag [#allocation12], %s855
        %s857 = sand.u32 %s221, 1
        %s858 = smul.addr %s857, 8
        %s859 = scalar_lea.vmem [#allocation13], %s858
        // Predicated region
        $region105: #{tpu_custom_call.1} parent=87 // pred_check
          %p860 = pneg %p234
        $region106: #{tpu_custom_call.1} parent=87 // pred_check_branch
          %862 = sbr.rel (%p860) target = $region108
        $region107: #{tpu_custom_call.1} parent=87 // pred_region
          %863 = dma.done %s856, 128
        $region108: #{tpu_custom_call.1} parent=87 // pred_fallthru
          _
        %s864 = sand.u32 %s57, 1
        %s865 = scalar_lea.sflag [#allocation15], %s864
        %s866 = sand.u32 %s247, 1
        %s867 = smul.addr %s866, 8
        %s868 = scalar_lea.vmem [#allocation14], %s867
        // Predicated region
        $region109: #{tpu_custom_call.1} parent=87 // pred_check
          %p869 = pneg %p260
        $region110: #{tpu_custom_call.1} parent=87 // pred_check_branch
          %871 = sbr.rel (%p869) target = $region112
        $region111: #{tpu_custom_call.1} parent=87 // pred_region
          %872 = dma.done %s865, 128
        $region112: #{tpu_custom_call.1} parent=87 // pred_fallthru
          _
        %s873 = sand.u32 %s57, 1
        %s874 = scalar_lea.sflag [#allocation15], %s873
        %s875 = sand.u32 %s273, 1
        %s876 = smul.addr %s875, 8
        %s877 = scalar_lea.vmem [#allocation16], %s876
        // Predicated region
        $region113: #{tpu_custom_call.1} parent=87 // pred_check
          %p878 = pneg %p286
        $region114: #{tpu_custom_call.1} parent=87 // pred_check_branch
          %880 = sbr.rel (%p878) target = $region116
        $region115: #{tpu_custom_call.1} parent=87 // pred_region
          %881 = dma.done %s874, 128
        $region116: #{tpu_custom_call.1} parent=87 // pred_fallthru
          _
        %s882 = sand.u32 %s57, 1
        %s883 = scalar_lea.sflag [#allocation18], %s882
        %s884 = sand.u32 %s325, 1
        %s885 = smul.addr %s884, 8
        %s886 = scalar_lea.vmem [#allocation17], %s885
        // Predicated region
        $region117: #{tpu_custom_call.1} parent=87 // pred_check
          %p887 = pneg %p338
        $region118: #{tpu_custom_call.1} parent=87 // pred_check_branch
          %889 = sbr.rel (%p887) target = $region120
        $region119: #{tpu_custom_call.1} parent=87 // pred_region
          %890 = dma.done %s883, 128
        $region120: #{tpu_custom_call.1} parent=87 // pred_fallthru
          _
        %s891 = sand.u32 %s57, 1
        %s892 = scalar_lea.sflag [#allocation18], %s891
        %s893 = sand.u32 %s351, 1
        %s894 = smul.addr %s893, 8
        %s895 = scalar_lea.vmem [#allocation19], %s894
        // Predicated region
        $region121: #{tpu_custom_call.1} parent=87 // pred_check
          %p896 = pneg %p364
        $region122: #{tpu_custom_call.1} parent=87 // pred_check_branch
          %898 = sbr.rel (%p896) target = $region124
        $region123: #{tpu_custom_call.1} parent=87 // pred_region
          %899 = dma.done %s892, 128
        $region124: #{tpu_custom_call.1} parent=87 // pred_fallthru
          _
        // Predicated region
        $region125: #{tpu_custom_call.1} parent=87 // pred_check
          %p900 = pneg %p385
        $region126: #{tpu_custom_call.1} parent=87 // pred_check_branch
          %902 = sbr.rel (%p900) target = $region128
        $region127: #{tpu_custom_call.1} parent=87 // pred_region
          %903 = dma.done [#allocation21], 2304
        $region128: #{tpu_custom_call.1} parent=87 // pred_fallthru
          _
        %s904 = sand.u32 %s65, 1
        %s905 = scalar_lea.sflag [#allocation6], %s904
        %s906 = sand.u32 %s65, 1
        %s907 = smul.addr %s906, 8
        %s908 = scalar_lea.vmem [#allocation5], %s907
        %p909 = pneg %p78
        %p910 = pneg %p75
        %p911 = scmp.lt.s32.totalorder %s57, 1
        %s912 = scalar_select %p911, %s57, 1
        %s913 = smul.addr %s912, 2
        %s914 = smul.addr %s913, 4
        %s915 = scalar_lea.vmem %s1, %s914
        %p916 = pneg %p104
        %p917 = pneg %p101
        %s918 = sand.u32 %s57, 1
        %s919 = scalar_lea.sflag [#allocation9], %s918
        %s920 = sand.u32 %s117, 1
        %s921 = smul.addr %s920, 8
        %s922 = scalar_lea.vmem [#allocation8], %s921
        %p923 = pneg %p130
        %p924 = pneg %p127
        %s925 = sand.u32 %s57, 1
        %s926 = scalar_lea.sflag [#allocation9], %s925
        %s927 = sand.u32 %s143, 1
        %s928 = smul.addr %s927, 8
        %s929 = scalar_lea.vmem [#allocation10], %s928
        %p930 = pneg %p156
        %p931 = pneg %p153
        %s932 = sand.u32 %s57, 1
        %s933 = scalar_lea.sflag [#allocation12], %s932
        %s934 = sand.u32 %s169, 1
        %s935 = smul.addr %s934, 8
        %s936 = scalar_lea.vmem [#allocation11], %s935
        %p937 = pneg %p182
        %p938 = pneg %p179
        %p939 = scmp.lt.s32.totalorder %s57, 1
        %s940 = scalar_select %p939, %s57, 1
        %s941 = smul.addr %s940, 2
        %s942 = smul.addr %s941, 4
        %s943 = scalar_lea.vmem %s5, %s942
        %p944 = pneg %p208
        %p945 = pneg %p205
        %s946 = sand.u32 %s57, 1
        %s947 = scalar_lea.sflag [#allocation12], %s946
        %s948 = sand.u32 %s221, 1
        %s949 = smul.addr %s948, 8
        %s950 = scalar_lea.vmem [#allocation13], %s949
        %p951 = pneg %p234
        %p952 = pneg %p231
        %s953 = sand.u32 %s57, 1
        %s954 = scalar_lea.sflag [#allocation15], %s953
        %s955 = sand.u32 %s247, 1
        %s956 = smul.addr %s955, 8
        %s957 = scalar_lea.vmem [#allocation14], %s956
        %p958 = pneg %p260
        %p959 = pneg %p257
        %s960 = sand.u32 %s57, 1
        %s961 = scalar_lea.sflag [#allocation15], %s960
        %s962 = sand.u32 %s273, 1
        %s963 = smul.addr %s962, 8
        %s964 = scalar_lea.vmem [#allocation16], %s963
        %p965 = pneg %p286
        %p966 = pneg %p283
        %p967 = scmp.lt.s32.totalorder %s57, 1
        %s968 = scalar_select %p967, %s57, 1
        %s969 = smul.addr %s968, 2
        %s970 = smul.addr %s969, 4
        %s971 = scalar_lea.vmem %s9, %s970
        %p972 = pneg %p312
        %p973 = pneg %p309
        %s974 = sand.u32 %s57, 1
        %s975 = scalar_lea.sflag [#allocation18], %s974
        %s976 = sand.u32 %s325, 1
        %s977 = smul.addr %s976, 8
        %s978 = scalar_lea.vmem [#allocation17], %s977
        %p979 = pneg %p338
        %p980 = pneg %p335
        %s981 = sand.u32 %s57, 1
        %s982 = scalar_lea.sflag [#allocation18], %s981
        %s983 = sand.u32 %s351, 1
        %s984 = smul.addr %s983, 8
        %s985 = scalar_lea.vmem [#allocation19], %s984
        %p986 = pneg %p364
        %p987 = pneg %p361
        %p988 = pneg %p385
        %p989 = pneg %p382
        %p990 = pneg %p406
        %p991 = pneg %p403
        %p992 = pneg %p427
        %p993 = pneg %p424
        %p994 = pneg %p448
        %p995 = pneg %p445
        %p996 = pneg %p469
        %p997 = pneg %p466
        %p998 = pneg %p495
        %p999 = pneg %p492
        %s1000 = sand.u32 %s482, 1
        %s1001 = scalar_lea.sflag [#allocation7], %s1000
        %s1002 = sand.u32 %s482, 1
        %s1003 = smul.addr %s1002, 16
        %s1004 = scalar_lea.vmem [#allocation22], %s1003
        %p1005 = pneg %p521
        %p1006 = pneg %p518
        %s1007 = sand.u32 %s57, 1
        %s1008 = scalar_lea.sflag [#allocation24], %s1007
        %s1009 = sand.u32 %s508, 1
        %s1010 = smul.addr %s1009, 16
        %s1011 = scalar_lea.vmem [#allocation23], %s1010
        %p1012 = pneg %p547
        %p1013 = pneg %p544
        %s1014 = sand.u32 %s57, 1
        %s1015 = scalar_lea.sflag [#allocation24], %s1014
        %s1016 = sand.u32 %s534, 1
        %s1017 = smul.addr %s1016, 16
        %s1018 = scalar_lea.vmem [#allocation25], %s1017
        %p1019 = pneg %p573
        %p1020 = pneg %p570
        %s1021 = sand.u32 %s560, 1
        %s1022 = scalar_lea.sflag [#allocation27], %s1021
        %s1023 = sand.u32 %s560, 1
        %s1024 = smul.addr %s1023, 16
        %s1025 = scalar_lea.vmem [#allocation26], %s1024
        %p1026 = scmp.lt.s32.totalorder %s57, 1
        %s1027 = scalar_select %p1026, %s57, 1
        %s1028 = smul.addr %s1027, 2
        %s1029 = smul.addr %s1028, 4
        %s1030 = scalar_lea.vmem %s1, %s1029
        %p1031 = scmp.lt.s32.totalorder %s57, 1
        %s1032 = scalar_select %p1031, %s57, 1
        %s1033 = smul.addr %s1032, 2
        %s1034 = smul.addr %s1033, 4
        %s1035 = scalar_lea.vmem %s5, %s1034
        %p1036 = scmp.lt.s32.totalorder %s57, 1
        %s1037 = scalar_select %p1036, %s57, 1
        %s1038 = smul.addr %s1037, 2
        %s1039 = smul.addr %s1038, 4
        %s1040 = scalar_lea.vmem %s9, %s1039
        %v1041 = vld [vmem:[#allocation20] sm:$0xff]
        %v1042 = vld [vmem:[#allocation20 + $0x8] sm:$0xff]
        %v1043 = vld [vmem:[#allocation20 + $0x10] sm:$0xff]
        %v1044 = vld [vmem:[#allocation20 + $0x18] sm:$0xff]
        %v1045 = vld [vmem:[#allocation20 + $0x20] sm:$0xff]
        %v1046 = vld [vmem:[#allocation20 + $0x28] sm:$0xff]
        %v1047 = vld [vmem:[#allocation20 + $0x30] sm:$0xff]
        %v1048 = vld [vmem:[#allocation20 + $0x38] sm:$0xff]
        %v1049 = vld [vmem:[#allocation20 + $0x50] sm:$0xff]
        %v1050 = vld [vmem:[#allocation20 + $0x58] sm:$0xff]
        %v1051 = vld [vmem:[#allocation20 + $0x60] sm:$0xff]
        %v1052 = vld [vmem:[#allocation20 + $0x68] sm:$0xff]
        %v1053 = vld [vmem:[#allocation20 + $0x70] sm:$0xff]
        %v1054 = vld [vmem:[#allocation20 + $0x78] sm:$0xff]
        %v1055 = vld [vmem:[#allocation20 + $0x80] sm:$0xff]
        %v1056 = vld [vmem:[#allocation20 + $0x88] sm:$0xff]
        %v1057 = vld [vmem:[%s823] sm:$0xff]
        %v1058 = vld [vmem:[%s850] sm:$0xff]
        %v1059 = vadd.f32 %v1057, %v1058
        %1060 = vst [vmem:[#allocation2] sm:$0xff] %v1059
        %v1061 = vld [vmem:[%s1030] sm:$0xff]
        %v1062 = vld [vmem:[%s1035] sm:$0xff]
        %v1063 = vadd.f32 %v1061, %v1062
        %1064 = vst [vmem:[#allocation2 + $0x8] sm:$0xff] %v1063
        %v1065 = vld [vmem:[%s832] sm:$0xff]
        %v1066 = vld [vmem:[%s859] sm:$0xff]
        %v1067 = vadd.f32 %v1065, %v1066
        %1068 = vst [vmem:[#allocation2 + $0x10] sm:$0xff] %v1067
        %v1069 = vld [vmem:[%s841] sm:$0xff]
        %v1070 = vld [vmem:[%s868] sm:$0xff]
        %v1071 = vadd.f32 %v1069, %v1070
        %1072 = vst [vmem:[#allocation2 + $0x18] sm:$0xff] %v1071
        %v1073 = vld [vmem:[%s850] sm:$0xff]
        %v1074 = vld [vmem:[%s877] sm:$0xff]
        %v1075 = vadd.f32 %v1073, %v1074
        %1076 = vst [vmem:[#allocation2 + $0x20] sm:$0xff] %v1075
        %v1077 = vld [vmem:[%s1035] sm:$0xff]
        %v1078 = vld [vmem:[%s1040] sm:$0xff]
        %v1079 = vadd.f32 %v1077, %v1078
        %1080 = vst [vmem:[#allocation2 + $0x28] sm:$0xff] %v1079
        %v1081 = vld [vmem:[%s859] sm:$0xff]
        %v1082 = vld [vmem:[%s886] sm:$0xff]
        %v1083 = vadd.f32 %v1081, %v1082
        %1084 = vst [vmem:[#allocation2 + $0x30] sm:$0xff] %v1083
        %v1085 = vld [vmem:[%s868] sm:$0xff]
        %v1086 = vld [vmem:[%s895] sm:$0xff]
        %v1087 = vadd.f32 %v1085, %v1086
        %1088 = vst [vmem:[#allocation2 + $0x38] sm:$0xff] %v1087
        %v1089 = vld [vmem:[#allocation2] sm:$0xff]
        %v1090 = vld [vmem:[#allocation2 + $0x8] sm:$0xff]
        %v1091 = vld [vmem:[#allocation2 + $0x10] sm:$0xff]
        %v1092 = vld [vmem:[#allocation2 + $0x18] sm:$0xff]
        %v1093 = vld [vmem:[#allocation2 + $0x20] sm:$0xff]
        %v1094 = vld [vmem:[#allocation2 + $0x28] sm:$0xff]
        %v1095 = vld [vmem:[#allocation2 + $0x30] sm:$0xff]
        %v1096 = vld [vmem:[#allocation2 + $0x38] sm:$0xff]
        %v1105 = vcombine.high %v1089, %v1089
        %v1106 = vcombine.high %v1090, %v1090
        %v1107 = vcombine.high %v1091, %v1091
        %v1108 = vcombine.high %v1092, %v1092
        %v1109 = vcombine.high %v1093, %v1093
        %v1110 = vcombine.high %v1094, %v1094
        %v1111 = vcombine.high %v1095, %v1095
        %v1112 = vcombine.high %v1096, %v1096
        %1121 = vrot.lane.b32.xlu0 %v1089, 17
        %v1122 = vpop.permute.xlu0 %1121
        %1123 = vrot.lane.b32.xlu0 %v1105, 17
        %v1124 = vpop.permute.xlu0 %1123
        %1125 = vrot.lane.b32.xlu0 %v1090, 17
        %v1126 = vpop.permute.xlu0 %1125
        %1127 = vrot.lane.b32.xlu0 %v1106, 17
        %v1128 = vpop.permute.xlu0 %1127
        %1129 = vrot.lane.b32.xlu0 %v1091, 17
        %v1130 = vpop.permute.xlu0 %1129
        %1131 = vrot.lane.b32.xlu0 %v1107, 17
        %v1132 = vpop.permute.xlu0 %1131
        %1133 = vrot.lane.b32.xlu0 %v1092, 17
        %v1134 = vpop.permute.xlu0 %1133
        %1135 = vrot.lane.b32.xlu0 %v1108, 17
        %v1136 = vpop.permute.xlu0 %1135
        %1137 = vrot.lane.b32.xlu0 %v1093, 17
        %v1138 = vpop.permute.xlu0 %1137
        %1139 = vrot.lane.b32.xlu0 %v1109, 17
        %v1140 = vpop.permute.xlu0 %1139
        %1141 = vrot.lane.b32.xlu0 %v1094, 17
        %v1142 = vpop.permute.xlu0 %1141
        %1143 = vrot.lane.b32.xlu0 %v1110, 17
        %v1144 = vpop.permute.xlu0 %1143
        %1145 = vrot.lane.b32.xlu0 %v1095, 17
        %v1146 = vpop.permute.xlu0 %1145
        %1147 = vrot.lane.b32.xlu0 %v1111, 17
        %v1148 = vpop.permute.xlu0 %1147
        %1149 = vrot.lane.b32.xlu0 %v1096, 17
        %v1150 = vpop.permute.xlu0 %1149
        %1151 = vrot.lane.b32.xlu0 %v1112, 17
        %v1152 = vpop.permute.xlu0 %1151
        %v1153 = vlaneseq
        %v1154 = vand.u32 %v1153, 127
        %vm1155 = vcmp.lt.s32.totalorder %v1154, 17
        %v1156 = vsel %vm1155, %v1150, %v1152
        %v1157 = vsel %vm1155, %v1148, %v1150
        %v1158 = vsel %vm1155, %v1146, %v1148
        %v1159 = vsel %vm1155, %v1144, %v1146
        %v1160 = vsel %vm1155, %v1142, %v1144
        %v1161 = vsel %vm1155, %v1140, %v1142
        %v1162 = vsel %vm1155, %v1138, %v1140
        %v1163 = vsel %vm1155, %v1136, %v1138
        %v1164 = vsel %vm1155, %v1134, %v1136
        %v1165 = vsel %vm1155, %v1132, %v1134
        %v1166 = vsel %vm1155, %v1130, %v1132
        %v1167 = vsel %vm1155, %v1128, %v1130
        %v1168 = vsel %vm1155, %v1126, %v1128
        %v1169 = vsel %vm1155, %v1124, %v1126
        %v1170 = vsel %vm1155, %v1122, %v1124
        %v1171 = vsel %vm1155, %v1152, %v1122
        %v1174 = vlaneseq
        %v1175 = vshrl.u32 %v1174, 7
        %v1176 = vsub.s32 0, %v1175
        %v1177 = vrot.slane %v1041, %v1176
        %v1178 = vlaneseq
        %v1179 = vshrl.u32 %v1178, 7
        %v1180 = vsub.s32 1, %v1179
        %v1181 = vrot.slane %v1041, %v1180
        %v1182 = vlaneseq
        %v1183 = vshrl.u32 %v1182, 7
        %v1184 = vsub.s32 2, %v1183
        %v1185 = vrot.slane %v1041, %v1184
        %v1186 = vlaneseq
        %v1187 = vshrl.u32 %v1186, 7
        %v1188 = vsub.s32 3, %v1187
        %v1189 = vrot.slane %v1041, %v1188
        %v1190 = vlaneseq
        %v1191 = vshrl.u32 %v1190, 7
        %v1192 = vsub.s32 4, %v1191
        %v1193 = vrot.slane %v1041, %v1192
        %v1194 = vlaneseq
        %v1195 = vshrl.u32 %v1194, 7
        %v1196 = vsub.s32 5, %v1195
        %v1197 = vrot.slane %v1041, %v1196
        %v1198 = vlaneseq
        %v1199 = vshrl.u32 %v1198, 7
        %v1200 = vsub.s32 6, %v1199
        %v1201 = vrot.slane %v1041, %v1200
        %v1202 = vlaneseq
        %v1203 = vshrl.u32 %v1202, 7
        %v1204 = vsub.s32 7, %v1203
        %v1205 = vrot.slane %v1041, %v1204
        %v1206 = vlaneseq
        %v1207 = vshrl.u32 %v1206, 7
        %v1208 = vsub.s32 0, %v1207
        %v1209 = vrot.slane %v1042, %v1208
        %v1210 = vlaneseq
        %v1211 = vshrl.u32 %v1210, 7
        %v1212 = vsub.s32 1, %v1211
        %v1213 = vrot.slane %v1042, %v1212
        %v1214 = vlaneseq
        %v1215 = vshrl.u32 %v1214, 7
        %v1216 = vsub.s32 2, %v1215
        %v1217 = vrot.slane %v1042, %v1216
        %v1218 = vlaneseq
        %v1219 = vshrl.u32 %v1218, 7
        %v1220 = vsub.s32 3, %v1219
        %v1221 = vrot.slane %v1042, %v1220
        %v1222 = vlaneseq
        %v1223 = vshrl.u32 %v1222, 7
        %v1224 = vsub.s32 4, %v1223
        %v1225 = vrot.slane %v1042, %v1224
        %v1226 = vlaneseq
        %v1227 = vshrl.u32 %v1226, 7
        %v1228 = vsub.s32 5, %v1227
        %v1229 = vrot.slane %v1042, %v1228
        %v1230 = vlaneseq
        %v1231 = vshrl.u32 %v1230, 7
        %v1232 = vsub.s32 6, %v1231
        %v1233 = vrot.slane %v1042, %v1232
        %v1234 = vlaneseq
        %v1235 = vshrl.u32 %v1234, 7
        %v1236 = vsub.s32 7, %v1235
        %v1237 = vrot.slane %v1042, %v1236
        %v1254 = vmul.f32 %v1171, %v1177
        %v1255 = vmul.f32 %v1170, %v1181
        %v1256 = vmul.f32 %v1169, %v1185
        %v1257 = vmul.f32 %v1168, %v1189
        %v1258 = vmul.f32 %v1167, %v1193
        %v1259 = vmul.f32 %v1166, %v1197
        %v1260 = vmul.f32 %v1165, %v1201
        %v1261 = vmul.f32 %v1164, %v1205
        %v1262 = vmul.f32 %v1163, %v1209
        %v1263 = vmul.f32 %v1162, %v1213
        %v1264 = vmul.f32 %v1161, %v1217
        %v1265 = vmul.f32 %v1160, %v1221
        %v1266 = vmul.f32 %v1159, %v1225
        %v1267 = vmul.f32 %v1158, %v1229
        %v1268 = vmul.f32 %v1157, %v1233
        %v1269 = vmul.f32 %v1156, %v1237
        %1270 = vst [vmem:[#allocation3] sm:$0xf] %v1254
        %1271 = vst [vmem:[#allocation3 + $0x8] sm:$0xf] %v1255
        %1272 = vst [vmem:[#allocation3 + $0x10] sm:$0xf] %v1256
        %1273 = vst [vmem:[#allocation3 + $0x18] sm:$0xf] %v1257
        %1274 = vst [vmem:[#allocation3 + $0x20] sm:$0xf] %v1258
        %1275 = vst [vmem:[#allocation3 + $0x28] sm:$0xf] %v1259
        %1276 = vst [vmem:[#allocation3 + $0x30] sm:$0xf] %v1260
        %1277 = vst [vmem:[#allocation3 + $0x38] sm:$0xf] %v1261
        %1278 = vst [vmem:[#allocation3 + $0x40] sm:$0xf] %v1262
        %1279 = vst [vmem:[#allocation3 + $0x48] sm:$0xf] %v1263
        %1280 = vst [vmem:[#allocation3 + $0x50] sm:$0xf] %v1264
        %1281 = vst [vmem:[#allocation3 + $0x58] sm:$0xf] %v1265
        %1282 = vst [vmem:[#allocation3 + $0x60] sm:$0xf] %v1266
        %1283 = vst [vmem:[#allocation3 + $0x68] sm:$0xf] %v1267
        %1284 = vst [vmem:[#allocation3 + $0x70] sm:$0xf] %v1268
        %1285 = vst [vmem:[#allocation3 + $0x78] sm:$0xf] %v1269
        %1286 = vrot.lane.b32.xlu0 %v1089, 16
        %v1287 = vpop.permute.xlu0 %1286
        %1288 = vrot.lane.b32.xlu0 %v1105, 16
        %v1289 = vpop.permute.xlu0 %1288
        %1290 = vrot.lane.b32.xlu0 %v1090, 16
        %v1291 = vpop.permute.xlu0 %1290
        %1292 = vrot.lane.b32.xlu0 %v1106, 16
        %v1293 = vpop.permute.xlu0 %1292
        %1294 = vrot.lane.b32.xlu0 %v1091, 16
        %v1295 = vpop.permute.xlu0 %1294
        %1296 = vrot.lane.b32.xlu0 %v1107, 16
        %v1297 = vpop.permute.xlu0 %1296
        %1298 = vrot.lane.b32.xlu0 %v1092, 16
        %v1299 = vpop.permute.xlu0 %1298
        %1300 = vrot.lane.b32.xlu0 %v1108, 16
        %v1301 = vpop.permute.xlu0 %1300
        %1302 = vrot.lane.b32.xlu0 %v1093, 16
        %v1303 = vpop.permute.xlu0 %1302
        %1304 = vrot.lane.b32.xlu0 %v1109, 16
        %v1305 = vpop.permute.xlu0 %1304
        %1306 = vrot.lane.b32.xlu0 %v1094, 16
        %v1307 = vpop.permute.xlu0 %1306
        %1308 = vrot.lane.b32.xlu0 %v1110, 16
        %v1309 = vpop.permute.xlu0 %1308
        %1310 = vrot.lane.b32.xlu0 %v1095, 16
        %v1311 = vpop.permute.xlu0 %1310
        %1312 = vrot.lane.b32.xlu0 %v1111, 16
        %v1313 = vpop.permute.xlu0 %1312
        %1314 = vrot.lane.b32.xlu0 %v1096, 16
        %v1315 = vpop.permute.xlu0 %1314
        %1316 = vrot.lane.b32.xlu0 %v1112, 16
        %v1317 = vpop.permute.xlu0 %1316
        %vm1318 = vcmp.lt.s32.totalorder %v1154, 16
        %v1319 = vsel %vm1318, %v1315, %v1317
        %v1320 = vsel %vm1318, %v1313, %v1315
        %v1321 = vsel %vm1318, %v1311, %v1313
        %v1322 = vsel %vm1318, %v1309, %v1311
        %v1323 = vsel %vm1318, %v1307, %v1309
        %v1324 = vsel %vm1318, %v1305, %v1307
        %v1325 = vsel %vm1318, %v1303, %v1305
        %v1326 = vsel %vm1318, %v1301, %v1303
        %v1327 = vsel %vm1318, %v1299, %v1301
        %v1328 = vsel %vm1318, %v1297, %v1299
        %v1329 = vsel %vm1318, %v1295, %v1297
        %v1330 = vsel %vm1318, %v1293, %v1295
        %v1331 = vsel %vm1318, %v1291, %v1293
        %v1332 = vsel %vm1318, %v1289, %v1291
        %v1333 = vsel %vm1318, %v1287, %v1289
        %v1334 = vsel %vm1318, %v1317, %v1287
        %v1337 = vlaneseq
        %v1338 = vshrl.u32 %v1337, 7
        %v1339 = vsub.s32 0, %v1338
        %v1340 = vrot.slane %v1043, %v1339
        %v1341 = vlaneseq
        %v1342 = vshrl.u32 %v1341, 7
        %v1343 = vsub.s32 1, %v1342
        %v1344 = vrot.slane %v1043, %v1343
        %v1345 = vlaneseq
        %v1346 = vshrl.u32 %v1345, 7
        %v1347 = vsub.s32 2, %v1346
        %v1348 = vrot.slane %v1043, %v1347
        %v1349 = vlaneseq
        %v1350 = vshrl.u32 %v1349, 7
        %v1351 = vsub.s32 3, %v1350
        %v1352 = vrot.slane %v1043, %v1351
        %v1353 = vlaneseq
        %v1354 = vshrl.u32 %v1353, 7
        %v1355 = vsub.s32 4, %v1354
        %v1356 = vrot.slane %v1043, %v1355
        %v1357 = vlaneseq
        %v1358 = vshrl.u32 %v1357, 7
        %v1359 = vsub.s32 5, %v1358
        %v1360 = vrot.slane %v1043, %v1359
        %v1361 = vlaneseq
        %v1362 = vshrl.u32 %v1361, 7
        %v1363 = vsub.s32 6, %v1362
        %v1364 = vrot.slane %v1043, %v1363
        %v1365 = vlaneseq
        %v1366 = vshrl.u32 %v1365, 7
        %v1367 = vsub.s32 7, %v1366
        %v1368 = vrot.slane %v1043, %v1367
        %v1369 = vlaneseq
        %v1370 = vshrl.u32 %v1369, 7
        %v1371 = vsub.s32 0, %v1370
        %v1372 = vrot.slane %v1044, %v1371
        %v1373 = vlaneseq
        %v1374 = vshrl.u32 %v1373, 7
        %v1375 = vsub.s32 1, %v1374
        %v1376 = vrot.slane %v1044, %v1375
        %v1377 = vlaneseq
        %v1378 = vshrl.u32 %v1377, 7
        %v1379 = vsub.s32 2, %v1378
        %v1380 = vrot.slane %v1044, %v1379
        %v1381 = vlaneseq
        %v1382 = vshrl.u32 %v1381, 7
        %v1383 = vsub.s32 3, %v1382
        %v1384 = vrot.slane %v1044, %v1383
        %v1385 = vlaneseq
        %v1386 = vshrl.u32 %v1385, 7
        %v1387 = vsub.s32 4, %v1386
        %v1388 = vrot.slane %v1044, %v1387
        %v1389 = vlaneseq
        %v1390 = vshrl.u32 %v1389, 7
        %v1391 = vsub.s32 5, %v1390
        %v1392 = vrot.slane %v1044, %v1391
        %v1393 = vlaneseq
        %v1394 = vshrl.u32 %v1393, 7
        %v1395 = vsub.s32 6, %v1394
        %v1396 = vrot.slane %v1044, %v1395
        %v1397 = vlaneseq
        %v1398 = vshrl.u32 %v1397, 7
        %v1399 = vsub.s32 7, %v1398
        %v1400 = vrot.slane %v1044, %v1399
        %v1417 = vmul.f32 %v1334, %v1340
        %v1418 = vmul.f32 %v1333, %v1344
        %v1419 = vmul.f32 %v1332, %v1348
        %v1420 = vmul.f32 %v1331, %v1352
        %v1421 = vmul.f32 %v1330, %v1356
        %v1422 = vmul.f32 %v1329, %v1360
        %v1423 = vmul.f32 %v1328, %v1364
        %v1424 = vmul.f32 %v1327, %v1368
        %v1425 = vmul.f32 %v1326, %v1372
        %v1426 = vmul.f32 %v1325, %v1376
        %v1427 = vmul.f32 %v1324, %v1380
        %v1428 = vmul.f32 %v1323, %v1384
        %v1429 = vmul.f32 %v1322, %v1388
        %v1430 = vmul.f32 %v1321, %v1392
        %v1431 = vmul.f32 %v1320, %v1396
        %v1432 = vmul.f32 %v1319, %v1400
        %v1449 = vrot.slane %v1417, 4
        %v1450 = vrot.slane %v1418, 4
        %v1451 = vrot.slane %v1419, 4
        %v1452 = vrot.slane %v1420, 4
        %v1453 = vrot.slane %v1421, 4
        %v1454 = vrot.slane %v1422, 4
        %v1455 = vrot.slane %v1423, 4
        %v1456 = vrot.slane %v1424, 4
        %v1457 = vrot.slane %v1425, 4
        %v1458 = vrot.slane %v1426, 4
        %v1459 = vrot.slane %v1427, 4
        %v1460 = vrot.slane %v1428, 4
        %v1461 = vrot.slane %v1429, 4
        %v1462 = vrot.slane %v1430, 4
        %v1463 = vrot.slane %v1431, 4
        %v1464 = vrot.slane %v1432, 4
        %1481 = vst [vmem:[#allocation3] sm:$0xf0] %v1449
        %1482 = vst [vmem:[#allocation3 + $0x8] sm:$0xf0] %v1450
        %1483 = vst [vmem:[#allocation3 + $0x10] sm:$0xf0] %v1451
        %1484 = vst [vmem:[#allocation3 + $0x18] sm:$0xf0] %v1452
        %1485 = vst [vmem:[#allocation3 + $0x20] sm:$0xf0] %v1453
        %1486 = vst [vmem:[#allocation3 + $0x28] sm:$0xf0] %v1454
        %1487 = vst [vmem:[#allocation3 + $0x30] sm:$0xf0] %v1455
        %1488 = vst [vmem:[#allocation3 + $0x38] sm:$0xf0] %v1456
        %1489 = vst [vmem:[#allocation3 + $0x40] sm:$0xf0] %v1457
        %1490 = vst [vmem:[#allocation3 + $0x48] sm:$0xf0] %v1458
        %1491 = vst [vmem:[#allocation3 + $0x50] sm:$0xf0] %v1459
        %1492 = vst [vmem:[#allocation3 + $0x58] sm:$0xf0] %v1460
        %1493 = vst [vmem:[#allocation3 + $0x60] sm:$0xf0] %v1461
        %1494 = vst [vmem:[#allocation3 + $0x68] sm:$0xf0] %v1462
        %1495 = vst [vmem:[#allocation3 + $0x70] sm:$0xf0] %v1463
        %1496 = vst [vmem:[#allocation3 + $0x78] sm:$0xf0] %v1464
        %1497 = vrot.lane.b32.xlu0 %v1089, 15
        %v1498 = vpop.permute.xlu0 %1497
        %1499 = vrot.lane.b32.xlu0 %v1105, 15
        %v1500 = vpop.permute.xlu0 %1499
        %1501 = vrot.lane.b32.xlu0 %v1090, 15
        %v1502 = vpop.permute.xlu0 %1501
        %1503 = vrot.lane.b32.xlu0 %v1106, 15
        %v1504 = vpop.permute.xlu0 %1503
        %1505 = vrot.lane.b32.xlu0 %v1091, 15
        %v1506 = vpop.permute.xlu0 %1505
        %1507 = vrot.lane.b32.xlu0 %v1107, 15
        %v1508 = vpop.permute.xlu0 %1507
        %1509 = vrot.lane.b32.xlu0 %v1092, 15
        %v1510 = vpop.permute.xlu0 %1509
        %1511 = vrot.lane.b32.xlu0 %v1108, 15
        %v1512 = vpop.permute.xlu0 %1511
        %1513 = vrot.lane.b32.xlu0 %v1093, 15
        %v1514 = vpop.permute.xlu0 %1513
        %1515 = vrot.lane.b32.xlu0 %v1109, 15
        %v1516 = vpop.permute.xlu0 %1515
        %1517 = vrot.lane.b32.xlu0 %v1094, 15
        %v1518 = vpop.permute.xlu0 %1517
        %1519 = vrot.lane.b32.xlu0 %v1110, 15
        %v1520 = vpop.permute.xlu0 %1519
        %1521 = vrot.lane.b32.xlu0 %v1095, 15
        %v1522 = vpop.permute.xlu0 %1521
        %1523 = vrot.lane.b32.xlu0 %v1111, 15
        %v1524 = vpop.permute.xlu0 %1523
        %1525 = vrot.lane.b32.xlu0 %v1096, 15
        %v1526 = vpop.permute.xlu0 %1525
        %1527 = vrot.lane.b32.xlu0 %v1112, 15
        %v1528 = vpop.permute.xlu0 %1527
        %vm1529 = vcmp.lt.s32.totalorder %v1154, 15
        %v1530 = vsel %vm1529, %v1526, %v1528
        %v1531 = vsel %vm1529, %v1524, %v1526
        %v1532 = vsel %vm1529, %v1522, %v1524
        %v1533 = vsel %vm1529, %v1520, %v1522
        %v1534 = vsel %vm1529, %v1518, %v1520
        %v1535 = vsel %vm1529, %v1516, %v1518
        %v1536 = vsel %vm1529, %v1514, %v1516
        %v1537 = vsel %vm1529, %v1512, %v1514
        %v1538 = vsel %vm1529, %v1510, %v1512
        %v1539 = vsel %vm1529, %v1508, %v1510
        %v1540 = vsel %vm1529, %v1506, %v1508
        %v1541 = vsel %vm1529, %v1504, %v1506
        %v1542 = vsel %vm1529, %v1502, %v1504
        %v1543 = vsel %vm1529, %v1500, %v1502
        %v1544 = vsel %vm1529, %v1498, %v1500
        %v1545 = vsel %vm1529, %v1528, %v1498
        %v1548 = vlaneseq
        %v1549 = vshrl.u32 %v1548, 7
        %v1550 = vsub.s32 0, %v1549
        %v1551 = vrot.slane %v1045, %v1550
        %v1552 = vlaneseq
        %v1553 = vshrl.u32 %v1552, 7
        %v1554 = vsub.s32 1, %v1553
        %v1555 = vrot.slane %v1045, %v1554
        %v1556 = vlaneseq
        %v1557 = vshrl.u32 %v1556, 7
        %v1558 = vsub.s32 2, %v1557
        %v1559 = vrot.slane %v1045, %v1558
        %v1560 = vlaneseq
        %v1561 = vshrl.u32 %v1560, 7
        %v1562 = vsub.s32 3, %v1561
        %v1563 = vrot.slane %v1045, %v1562
        %v1564 = vlaneseq
        %v1565 = vshrl.u32 %v1564, 7
        %v1566 = vsub.s32 4, %v1565
        %v1567 = vrot.slane %v1045, %v1566
        %v1568 = vlaneseq
        %v1569 = vshrl.u32 %v1568, 7
        %v1570 = vsub.s32 5, %v1569
        %v1571 = vrot.slane %v1045, %v1570
        %v1572 = vlaneseq
        %v1573 = vshrl.u32 %v1572, 7
        %v1574 = vsub.s32 6, %v1573
        %v1575 = vrot.slane %v1045, %v1574
        %v1576 = vlaneseq
        %v1577 = vshrl.u32 %v1576, 7
        %v1578 = vsub.s32 7, %v1577
        %v1579 = vrot.slane %v1045, %v1578
        %v1580 = vlaneseq
        %v1581 = vshrl.u32 %v1580, 7
        %v1582 = vsub.s32 0, %v1581
        %v1583 = vrot.slane %v1046, %v1582
        %v1584 = vlaneseq
        %v1585 = vshrl.u32 %v1584, 7
        %v1586 = vsub.s32 1, %v1585
        %v1587 = vrot.slane %v1046, %v1586
        %v1588 = vlaneseq
        %v1589 = vshrl.u32 %v1588, 7
        %v1590 = vsub.s32 2, %v1589
        %v1591 = vrot.slane %v1046, %v1590
        %v1592 = vlaneseq
        %v1593 = vshrl.u32 %v1592, 7
        %v1594 = vsub.s32 3, %v1593
        %v1595 = vrot.slane %v1046, %v1594
        %v1596 = vlaneseq
        %v1597 = vshrl.u32 %v1596, 7
        %v1598 = vsub.s32 4, %v1597
        %v1599 = vrot.slane %v1046, %v1598
        %v1600 = vlaneseq
        %v1601 = vshrl.u32 %v1600, 7
        %v1602 = vsub.s32 5, %v1601
        %v1603 = vrot.slane %v1046, %v1602
        %v1604 = vlaneseq
        %v1605 = vshrl.u32 %v1604, 7
        %v1606 = vsub.s32 6, %v1605
        %v1607 = vrot.slane %v1046, %v1606
        %v1608 = vlaneseq
        %v1609 = vshrl.u32 %v1608, 7
        %v1610 = vsub.s32 7, %v1609
        %v1611 = vrot.slane %v1046, %v1610
        %v1628 = vmul.f32 %v1545, %v1551
        %v1629 = vmul.f32 %v1544, %v1555
        %v1630 = vmul.f32 %v1543, %v1559
        %v1631 = vmul.f32 %v1542, %v1563
        %v1632 = vmul.f32 %v1541, %v1567
        %v1633 = vmul.f32 %v1540, %v1571
        %v1634 = vmul.f32 %v1539, %v1575
        %v1635 = vmul.f32 %v1538, %v1579
        %v1636 = vmul.f32 %v1537, %v1583
        %v1637 = vmul.f32 %v1536, %v1587
        %v1638 = vmul.f32 %v1535, %v1591
        %v1639 = vmul.f32 %v1534, %v1595
        %v1640 = vmul.f32 %v1533, %v1599
        %v1641 = vmul.f32 %v1532, %v1603
        %v1642 = vmul.f32 %v1531, %v1607
        %v1643 = vmul.f32 %v1530, %v1611
        %1644 = vst [vmem:[#allocation3 + $0x80] sm:$0xf] %v1628
        %1645 = vst [vmem:[#allocation3 + $0x88] sm:$0xf] %v1629
        %1646 = vst [vmem:[#allocation3 + $0x90] sm:$0xf] %v1630
        %1647 = vst [vmem:[#allocation3 + $0x98] sm:$0xf] %v1631
        %1648 = vst [vmem:[#allocation3 + $0xa0] sm:$0xf] %v1632
        %1649 = vst [vmem:[#allocation3 + $0xa8] sm:$0xf] %v1633
        %1650 = vst [vmem:[#allocation3 + $0xb0] sm:$0xf] %v1634
        %1651 = vst [vmem:[#allocation3 + $0xb8] sm:$0xf] %v1635
        %1652 = vst [vmem:[#allocation3 + $0xc0] sm:$0xf] %v1636
        %1653 = vst [vmem:[#allocation3 + $0xc8] sm:$0xf] %v1637
        %1654 = vst [vmem:[#allocation3 + $0xd0] sm:$0xf] %v1638
        %1655 = vst [vmem:[#allocation3 + $0xd8] sm:$0xf] %v1639
        %1656 = vst [vmem:[#allocation3 + $0xe0] sm:$0xf] %v1640
        %1657 = vst [vmem:[#allocation3 + $0xe8] sm:$0xf] %v1641
        %1658 = vst [vmem:[#allocation3 + $0xf0] sm:$0xf] %v1642
        %1659 = vst [vmem:[#allocation3 + $0xf8] sm:$0xf] %v1643
        %1660 = vrot.lane.b32.xlu0 %v1089, 1
        %v1661 = vpop.permute.xlu0 %1660
        %1662 = vrot.lane.b32.xlu0 %v1105, 1
        %v1663 = vpop.permute.xlu0 %1662
        %1664 = vrot.lane.b32.xlu0 %v1090, 1
        %v1665 = vpop.permute.xlu0 %1664
        %1666 = vrot.lane.b32.xlu0 %v1106, 1
        %v1667 = vpop.permute.xlu0 %1666
        %1668 = vrot.lane.b32.xlu0 %v1091, 1
        %v1669 = vpop.permute.xlu0 %1668
        %1670 = vrot.lane.b32.xlu0 %v1107, 1
        %v1671 = vpop.permute.xlu0 %1670
        %1672 = vrot.lane.b32.xlu0 %v1092, 1
        %v1673 = vpop.permute.xlu0 %1672
        %1674 = vrot.lane.b32.xlu0 %v1108, 1
        %v1675 = vpop.permute.xlu0 %1674
        %1676 = vrot.lane.b32.xlu0 %v1093, 1
        %v1677 = vpop.permute.xlu0 %1676
        %1678 = vrot.lane.b32.xlu0 %v1109, 1
        %v1679 = vpop.permute.xlu0 %1678
        %1680 = vrot.lane.b32.xlu0 %v1094, 1
        %v1681 = vpop.permute.xlu0 %1680
        %1682 = vrot.lane.b32.xlu0 %v1110, 1
        %v1683 = vpop.permute.xlu0 %1682
        %1684 = vrot.lane.b32.xlu0 %v1095, 1
        %v1685 = vpop.permute.xlu0 %1684
        %1686 = vrot.lane.b32.xlu0 %v1111, 1
        %v1687 = vpop.permute.xlu0 %1686
        %1688 = vrot.lane.b32.xlu0 %v1096, 1
        %v1689 = vpop.permute.xlu0 %1688
        %1690 = vrot.lane.b32.xlu0 %v1112, 1
        %v1691 = vpop.permute.xlu0 %1690
        %vm1692 = vcmp.lt.s32.totalorder %v1154, 1
        %v1693 = vsel %vm1692, %v1689, %v1691
        %v1694 = vsel %vm1692, %v1687, %v1689
        %v1695 = vsel %vm1692, %v1685, %v1687
        %v1696 = vsel %vm1692, %v1683, %v1685
        %v1697 = vsel %vm1692, %v1681, %v1683
        %v1698 = vsel %vm1692, %v1679, %v1681
        %v1699 = vsel %vm1692, %v1677, %v1679
        %v1700 = vsel %vm1692, %v1675, %v1677
        %v1701 = vsel %vm1692, %v1673, %v1675
        %v1702 = vsel %vm1692, %v1671, %v1673
        %v1703 = vsel %vm1692, %v1669, %v1671
        %v1704 = vsel %vm1692, %v1667, %v1669
        %v1705 = vsel %vm1692, %v1665, %v1667
        %v1706 = vsel %vm1692, %v1663, %v1665
        %v1707 = vsel %vm1692, %v1661, %v1663
        %v1708 = vsel %vm1692, %v1691, %v1661
        %v1711 = vlaneseq
        %v1712 = vshrl.u32 %v1711, 7
        %v1713 = vsub.s32 0, %v1712
        %v1714 = vrot.slane %v1047, %v1713
        %v1715 = vlaneseq
        %v1716 = vshrl.u32 %v1715, 7
        %v1717 = vsub.s32 1, %v1716
        %v1718 = vrot.slane %v1047, %v1717
        %v1719 = vlaneseq
        %v1720 = vshrl.u32 %v1719, 7
        %v1721 = vsub.s32 2, %v1720
        %v1722 = vrot.slane %v1047, %v1721
        %v1723 = vlaneseq
        %v1724 = vshrl.u32 %v1723, 7
        %v1725 = vsub.s32 3, %v1724
        %v1726 = vrot.slane %v1047, %v1725
        %v1727 = vlaneseq
        %v1728 = vshrl.u32 %v1727, 7
        %v1729 = vsub.s32 4, %v1728
        %v1730 = vrot.slane %v1047, %v1729
        %v1731 = vlaneseq
        %v1732 = vshrl.u32 %v1731, 7
        %v1733 = vsub.s32 5, %v1732
        %v1734 = vrot.slane %v1047, %v1733
        %v1735 = vlaneseq
        %v1736 = vshrl.u32 %v1735, 7
        %v1737 = vsub.s32 6, %v1736
        %v1738 = vrot.slane %v1047, %v1737
        %v1739 = vlaneseq
        %v1740 = vshrl.u32 %v1739, 7
        %v1741 = vsub.s32 7, %v1740
        %v1742 = vrot.slane %v1047, %v1741
        %v1743 = vlaneseq
        %v1744 = vshrl.u32 %v1743, 7
        %v1745 = vsub.s32 0, %v1744
        %v1746 = vrot.slane %v1048, %v1745
        %v1747 = vlaneseq
        %v1748 = vshrl.u32 %v1747, 7
        %v1749 = vsub.s32 1, %v1748
        %v1750 = vrot.slane %v1048, %v1749
        %v1751 = vlaneseq
        %v1752 = vshrl.u32 %v1751, 7
        %v1753 = vsub.s32 2, %v1752
        %v1754 = vrot.slane %v1048, %v1753
        %v1755 = vlaneseq
        %v1756 = vshrl.u32 %v1755, 7
        %v1757 = vsub.s32 3, %v1756
        %v1758 = vrot.slane %v1048, %v1757
        %v1759 = vlaneseq
        %v1760 = vshrl.u32 %v1759, 7
        %v1761 = vsub.s32 4, %v1760
        %v1762 = vrot.slane %v1048, %v1761
        %v1763 = vlaneseq
        %v1764 = vshrl.u32 %v1763, 7
        %v1765 = vsub.s32 5, %v1764
        %v1766 = vrot.slane %v1048, %v1765
        %v1767 = vlaneseq
        %v1768 = vshrl.u32 %v1767, 7
        %v1769 = vsub.s32 6, %v1768
        %v1770 = vrot.slane %v1048, %v1769
        %v1771 = vlaneseq
        %v1772 = vshrl.u32 %v1771, 7
        %v1773 = vsub.s32 7, %v1772
        %v1774 = vrot.slane %v1048, %v1773
        %v1791 = vmul.f32 %v1708, %v1714
        %v1792 = vmul.f32 %v1707, %v1718
        %v1793 = vmul.f32 %v1706, %v1722
        %v1794 = vmul.f32 %v1705, %v1726
        %v1795 = vmul.f32 %v1704, %v1730
        %v1796 = vmul.f32 %v1703, %v1734
        %v1797 = vmul.f32 %v1702, %v1738
        %v1798 = vmul.f32 %v1701, %v1742
        %v1799 = vmul.f32 %v1700, %v1746
        %v1800 = vmul.f32 %v1699, %v1750
        %v1801 = vmul.f32 %v1698, %v1754
        %v1802 = vmul.f32 %v1697, %v1758
        %v1803 = vmul.f32 %v1696, %v1762
        %v1804 = vmul.f32 %v1695, %v1766
        %v1805 = vmul.f32 %v1694, %v1770
        %v1806 = vmul.f32 %v1693, %v1774
        %v1823 = vrot.slane %v1791, 4
        %v1824 = vrot.slane %v1792, 4
        %v1825 = vrot.slane %v1793, 4
        %v1826 = vrot.slane %v1794, 4
        %v1827 = vrot.slane %v1795, 4
        %v1828 = vrot.slane %v1796, 4
        %v1829 = vrot.slane %v1797, 4
        %v1830 = vrot.slane %v1798, 4
        %v1831 = vrot.slane %v1799, 4
        %v1832 = vrot.slane %v1800, 4
        %v1833 = vrot.slane %v1801, 4
        %v1834 = vrot.slane %v1802, 4
        %v1835 = vrot.slane %v1803, 4
        %v1836 = vrot.slane %v1804, 4
        %v1837 = vrot.slane %v1805, 4
        %v1838 = vrot.slane %v1806, 4
        %1855 = vst [vmem:[#allocation3 + $0x80] sm:$0xf0] %v1823
        %1856 = vst [vmem:[#allocation3 + $0x88] sm:$0xf0] %v1824
        %1857 = vst [vmem:[#allocation3 + $0x90] sm:$0xf0] %v1825
        %1858 = vst [vmem:[#allocation3 + $0x98] sm:$0xf0] %v1826
        %1859 = vst [vmem:[#allocation3 + $0xa0] sm:$0xf0] %v1827
        %1860 = vst [vmem:[#allocation3 + $0xa8] sm:$0xf0] %v1828
        %1861 = vst [vmem:[#allocation3 + $0xb0] sm:$0xf0] %v1829
        %1862 = vst [vmem:[#allocation3 + $0xb8] sm:$0xf0] %v1830
        %1863 = vst [vmem:[#allocation3 + $0xc0] sm:$0xf0] %v1831
        %1864 = vst [vmem:[#allocation3 + $0xc8] sm:$0xf0] %v1832
        %1865 = vst [vmem:[#allocation3 + $0xd0] sm:$0xf0] %v1833
        %1866 = vst [vmem:[#allocation3 + $0xd8] sm:$0xf0] %v1834
        %1867 = vst [vmem:[#allocation3 + $0xe0] sm:$0xf0] %v1835
        %1868 = vst [vmem:[#allocation3 + $0xe8] sm:$0xf0] %v1836
        %1869 = vst [vmem:[#allocation3 + $0xf0] sm:$0xf0] %v1837
        %1870 = vst [vmem:[#allocation3 + $0xf8] sm:$0xf0] %v1838
        %1871 = vst [vmem:[#allocation3 + $0x100] sm:$0xf] %v1089
        %1872 = vst [vmem:[#allocation3 + $0x108] sm:$0xf] %v1105
        %1873 = vst [vmem:[#allocation3 + $0x110] sm:$0xf] %v1090
        %1874 = vst [vmem:[#allocation3 + $0x118] sm:$0xf] %v1106
        %1875 = vst [vmem:[#allocation3 + $0x120] sm:$0xf] %v1091
        %1876 = vst [vmem:[#allocation3 + $0x128] sm:$0xf] %v1107
        %1877 = vst [vmem:[#allocation3 + $0x130] sm:$0xf] %v1092
        %1878 = vst [vmem:[#allocation3 + $0x138] sm:$0xf] %v1108
        %1879 = vst [vmem:[#allocation3 + $0x140] sm:$0xf] %v1093
        %1880 = vst [vmem:[#allocation3 + $0x148] sm:$0xf] %v1109
        %1881 = vst [vmem:[#allocation3 + $0x150] sm:$0xf] %v1094
        %1882 = vst [vmem:[#allocation3 + $0x158] sm:$0xf] %v1110
        %1883 = vst [vmem:[#allocation3 + $0x160] sm:$0xf] %v1095
        %1884 = vst [vmem:[#allocation3 + $0x168] sm:$0xf] %v1111
        %1885 = vst [vmem:[#allocation3 + $0x170] sm:$0xf] %v1096
        %1886 = vst [vmem:[#allocation3 + $0x178] sm:$0xf] %v1112
        %1887 = vrot.lane.b32.xlu0 %v1089, 127
        %v1888 = vpop.permute.xlu0 %1887
        %1889 = vrot.lane.b32.xlu0 %v1105, 127
        %v1890 = vpop.permute.xlu0 %1889
        %1891 = vrot.lane.b32.xlu0 %v1090, 127
        %v1892 = vpop.permute.xlu0 %1891
        %1893 = vrot.lane.b32.xlu0 %v1106, 127
        %v1894 = vpop.permute.xlu0 %1893
        %1895 = vrot.lane.b32.xlu0 %v1091, 127
        %v1896 = vpop.permute.xlu0 %1895
        %1897 = vrot.lane.b32.xlu0 %v1107, 127
        %v1898 = vpop.permute.xlu0 %1897
        %1899 = vrot.lane.b32.xlu0 %v1092, 127
        %v1900 = vpop.permute.xlu0 %1899
        %1901 = vrot.lane.b32.xlu0 %v1108, 127
        %v1902 = vpop.permute.xlu0 %1901
        %1903 = vrot.lane.b32.xlu0 %v1093, 127
        %v1904 = vpop.permute.xlu0 %1903
        %1905 = vrot.lane.b32.xlu0 %v1109, 127
        %v1906 = vpop.permute.xlu0 %1905
        %1907 = vrot.lane.b32.xlu0 %v1094, 127
        %v1908 = vpop.permute.xlu0 %1907
        %1909 = vrot.lane.b32.xlu0 %v1110, 127
        %v1910 = vpop.permute.xlu0 %1909
        %1911 = vrot.lane.b32.xlu0 %v1095, 127
        %v1912 = vpop.permute.xlu0 %1911
        %1913 = vrot.lane.b32.xlu0 %v1111, 127
        %v1914 = vpop.permute.xlu0 %1913
        %1915 = vrot.lane.b32.xlu0 %v1096, 127
        %v1916 = vpop.permute.xlu0 %1915
        %1917 = vrot.lane.b32.xlu0 %v1112, 127
        %v1918 = vpop.permute.xlu0 %1917
        %vm1919 = vcmp.lt.s32.totalorder %v1154, 127
        %v1920 = vsel %vm1919, %v1916, %v1918
        %v1921 = vsel %vm1919, %v1914, %v1916
        %v1922 = vsel %vm1919, %v1912, %v1914
        %v1923 = vsel %vm1919, %v1910, %v1912
        %v1924 = vsel %vm1919, %v1908, %v1910
        %v1925 = vsel %vm1919, %v1906, %v1908
        %v1926 = vsel %vm1919, %v1904, %v1906
        %v1927 = vsel %vm1919, %v1902, %v1904
        %v1928 = vsel %vm1919, %v1900, %v1902
        %v1929 = vsel %vm1919, %v1898, %v1900
        %v1930 = vsel %vm1919, %v1896, %v1898
        %v1931 = vsel %vm1919, %v1894, %v1896
        %v1932 = vsel %vm1919, %v1892, %v1894
        %v1933 = vsel %vm1919, %v1890, %v1892
        %v1934 = vsel %vm1919, %v1888, %v1890
        %v1935 = vsel %vm1919, %v1918, %v1888
        %v1938 = vlaneseq
        %v1939 = vshrl.u32 %v1938, 7
        %v1940 = vsub.s32 0, %v1939
        %v1941 = vrot.slane %v1049, %v1940
        %v1942 = vlaneseq
        %v1943 = vshrl.u32 %v1942, 7
        %v1944 = vsub.s32 1, %v1943
        %v1945 = vrot.slane %v1049, %v1944
        %v1946 = vlaneseq
        %v1947 = vshrl.u32 %v1946, 7
        %v1948 = vsub.s32 2, %v1947
        %v1949 = vrot.slane %v1049, %v1948
        %v1950 = vlaneseq
        %v1951 = vshrl.u32 %v1950, 7
        %v1952 = vsub.s32 3, %v1951
        %v1953 = vrot.slane %v1049, %v1952
        %v1954 = vlaneseq
        %v1955 = vshrl.u32 %v1954, 7
        %v1956 = vsub.s32 4, %v1955
        %v1957 = vrot.slane %v1049, %v1956
        %v1958 = vlaneseq
        %v1959 = vshrl.u32 %v1958, 7
        %v1960 = vsub.s32 5, %v1959
        %v1961 = vrot.slane %v1049, %v1960
        %v1962 = vlaneseq
        %v1963 = vshrl.u32 %v1962, 7
        %v1964 = vsub.s32 6, %v1963
        %v1965 = vrot.slane %v1049, %v1964
        %v1966 = vlaneseq
        %v1967 = vshrl.u32 %v1966, 7
        %v1968 = vsub.s32 7, %v1967
        %v1969 = vrot.slane %v1049, %v1968
        %v1970 = vlaneseq
        %v1971 = vshrl.u32 %v1970, 7
        %v1972 = vsub.s32 0, %v1971
        %v1973 = vrot.slane %v1050, %v1972
        %v1974 = vlaneseq
        %v1975 = vshrl.u32 %v1974, 7
        %v1976 = vsub.s32 1, %v1975
        %v1977 = vrot.slane %v1050, %v1976
        %v1978 = vlaneseq
        %v1979 = vshrl.u32 %v1978, 7
        %v1980 = vsub.s32 2, %v1979
        %v1981 = vrot.slane %v1050, %v1980
        %v1982 = vlaneseq
        %v1983 = vshrl.u32 %v1982, 7
        %v1984 = vsub.s32 3, %v1983
        %v1985 = vrot.slane %v1050, %v1984
        %v1986 = vlaneseq
        %v1987 = vshrl.u32 %v1986, 7
        %v1988 = vsub.s32 4, %v1987
        %v1989 = vrot.slane %v1050, %v1988
        %v1990 = vlaneseq
        %v1991 = vshrl.u32 %v1990, 7
        %v1992 = vsub.s32 5, %v1991
        %v1993 = vrot.slane %v1050, %v1992
        %v1994 = vlaneseq
        %v1995 = vshrl.u32 %v1994, 7
        %v1996 = vsub.s32 6, %v1995
        %v1997 = vrot.slane %v1050, %v1996
        %v1998 = vlaneseq
        %v1999 = vshrl.u32 %v1998, 7
        %v2000 = vsub.s32 7, %v1999
        %v2001 = vrot.slane %v1050, %v2000
        %v2018 = vmul.f32 %v1934, %v1941
        %v2019 = vmul.f32 %v1933, %v1945
        %v2020 = vmul.f32 %v1932, %v1949
        %v2021 = vmul.f32 %v1931, %v1953
        %v2022 = vmul.f32 %v1930, %v1957
        %v2023 = vmul.f32 %v1929, %v1961
        %v2024 = vmul.f32 %v1928, %v1965
        %v2025 = vmul.f32 %v1927, %v1969
        %v2026 = vmul.f32 %v1926, %v1973
        %v2027 = vmul.f32 %v1925, %v1977
        %v2028 = vmul.f32 %v1924, %v1981
        %v2029 = vmul.f32 %v1923, %v1985
        %v2030 = vmul.f32 %v1922, %v1989
        %v2031 = vmul.f32 %v1921, %v1993
        %v2032 = vmul.f32 %v1920, %v1997
        %v2033 = vmul.f32 %v1935, %v2001
        %v2050 = vrot.slane %v2018, 4
        %v2051 = vrot.slane %v2019, 4
        %v2052 = vrot.slane %v2020, 4
        %v2053 = vrot.slane %v2021, 4
        %v2054 = vrot.slane %v2022, 4
        %v2055 = vrot.slane %v2023, 4
        %v2056 = vrot.slane %v2024, 4
        %v2057 = vrot.slane %v2025, 4
        %v2058 = vrot.slane %v2026, 4
        %v2059 = vrot.slane %v2027, 4
        %v2060 = vrot.slane %v2028, 4
        %v2061 = vrot.slane %v2029, 4
        %v2062 = vrot.slane %v2030, 4
        %v2063 = vrot.slane %v2031, 4
        %v2064 = vrot.slane %v2032, 4
        %v2065 = vrot.slane %v2033, 4
        %2082 = vst [vmem:[#allocation3 + $0x100] sm:$0xf0] %v2050
        %2083 = vst [vmem:[#allocation3 + $0x108] sm:$0xf0] %v2051
        %2084 = vst [vmem:[#allocation3 + $0x110] sm:$0xf0] %v2052
        %2085 = vst [vmem:[#allocation3 + $0x118] sm:$0xf0] %v2053
        %2086 = vst [vmem:[#allocation3 + $0x120] sm:$0xf0] %v2054
        %2087 = vst [vmem:[#allocation3 + $0x128] sm:$0xf0] %v2055
        %2088 = vst [vmem:[#allocation3 + $0x130] sm:$0xf0] %v2056
        %2089 = vst [vmem:[#allocation3 + $0x138] sm:$0xf0] %v2057
        %2090 = vst [vmem:[#allocation3 + $0x140] sm:$0xf0] %v2058
        %2091 = vst [vmem:[#allocation3 + $0x148] sm:$0xf0] %v2059
        %2092 = vst [vmem:[#allocation3 + $0x150] sm:$0xf0] %v2060
        %2093 = vst [vmem:[#allocation3 + $0x158] sm:$0xf0] %v2061
        %2094 = vst [vmem:[#allocation3 + $0x160] sm:$0xf0] %v2062
        %2095 = vst [vmem:[#allocation3 + $0x168] sm:$0xf0] %v2063
        %2096 = vst [vmem:[#allocation3 + $0x170] sm:$0xf0] %v2064
        %2097 = vst [vmem:[#allocation3 + $0x178] sm:$0xf0] %v2065
        %2098 = vrot.lane.b32.xlu0 %v1089, 113
        %v2099 = vpop.permute.xlu0 %2098
        %2100 = vrot.lane.b32.xlu0 %v1105, 113
        %v2101 = vpop.permute.xlu0 %2100
        %2102 = vrot.lane.b32.xlu0 %v1090, 113
        %v2103 = vpop.permute.xlu0 %2102
        %2104 = vrot.lane.b32.xlu0 %v1106, 113
        %v2105 = vpop.permute.xlu0 %2104
        %2106 = vrot.lane.b32.xlu0 %v1091, 113
        %v2107 = vpop.permute.xlu0 %2106
        %2108 = vrot.lane.b32.xlu0 %v1107, 113
        %v2109 = vpop.permute.xlu0 %2108
        %2110 = vrot.lane.b32.xlu0 %v1092, 113
        %v2111 = vpop.permute.xlu0 %2110
        %2112 = vrot.lane.b32.xlu0 %v1108, 113
        %v2113 = vpop.permute.xlu0 %2112
        %2114 = vrot.lane.b32.xlu0 %v1093, 113
        %v2115 = vpop.permute.xlu0 %2114
        %2116 = vrot.lane.b32.xlu0 %v1109, 113
        %v2117 = vpop.permute.xlu0 %2116
        %2118 = vrot.lane.b32.xlu0 %v1094, 113
        %v2119 = vpop.permute.xlu0 %2118
        %2120 = vrot.lane.b32.xlu0 %v1110, 113
        %v2121 = vpop.permute.xlu0 %2120
        %2122 = vrot.lane.b32.xlu0 %v1095, 113
        %v2123 = vpop.permute.xlu0 %2122
        %2124 = vrot.lane.b32.xlu0 %v1111, 113
        %v2125 = vpop.permute.xlu0 %2124
        %2126 = vrot.lane.b32.xlu0 %v1096, 113
        %v2127 = vpop.permute.xlu0 %2126
        %2128 = vrot.lane.b32.xlu0 %v1112, 113
        %v2129 = vpop.permute.xlu0 %2128
        %vm2130 = vcmp.lt.s32.totalorder %v1154, 113
        %v2131 = vsel %vm2130, %v2127, %v2129
        %v2132 = vsel %vm2130, %v2125, %v2127
        %v2133 = vsel %vm2130, %v2123, %v2125
        %v2134 = vsel %vm2130, %v2121, %v2123
        %v2135 = vsel %vm2130, %v2119, %v2121
        %v2136 = vsel %vm2130, %v2117, %v2119
        %v2137 = vsel %vm2130, %v2115, %v2117
        %v2138 = vsel %vm2130, %v2113, %v2115
        %v2139 = vsel %vm2130, %v2111, %v2113
        %v2140 = vsel %vm2130, %v2109, %v2111
        %v2141 = vsel %vm2130, %v2107, %v2109
        %v2142 = vsel %vm2130, %v2105, %v2107
        %v2143 = vsel %vm2130, %v2103, %v2105
        %v2144 = vsel %vm2130, %v2101, %v2103
        %v2145 = vsel %vm2130, %v2099, %v2101
        %v2146 = vsel %vm2130, %v2129, %v2099
        %v2149 = vlaneseq
        %v2150 = vshrl.u32 %v2149, 7
        %v2151 = vsub.s32 0, %v2150
        %v2152 = vrot.slane %v1051, %v2151
        %v2153 = vlaneseq
        %v2154 = vshrl.u32 %v2153, 7
        %v2155 = vsub.s32 1, %v2154
        %v2156 = vrot.slane %v1051, %v2155
        %v2157 = vlaneseq
        %v2158 = vshrl.u32 %v2157, 7
        %v2159 = vsub.s32 2, %v2158
        %v2160 = vrot.slane %v1051, %v2159
        %v2161 = vlaneseq
        %v2162 = vshrl.u32 %v2161, 7
        %v2163 = vsub.s32 3, %v2162
        %v2164 = vrot.slane %v1051, %v2163
        %v2165 = vlaneseq
        %v2166 = vshrl.u32 %v2165, 7
        %v2167 = vsub.s32 4, %v2166
        %v2168 = vrot.slane %v1051, %v2167
        %v2169 = vlaneseq
        %v2170 = vshrl.u32 %v2169, 7
        %v2171 = vsub.s32 5, %v2170
        %v2172 = vrot.slane %v1051, %v2171
        %v2173 = vlaneseq
        %v2174 = vshrl.u32 %v2173, 7
        %v2175 = vsub.s32 6, %v2174
        %v2176 = vrot.slane %v1051, %v2175
        %v2177 = vlaneseq
        %v2178 = vshrl.u32 %v2177, 7
        %v2179 = vsub.s32 7, %v2178
        %v2180 = vrot.slane %v1051, %v2179
        %v2181 = vlaneseq
        %v2182 = vshrl.u32 %v2181, 7
        %v2183 = vsub.s32 0, %v2182
        %v2184 = vrot.slane %v1052, %v2183
        %v2185 = vlaneseq
        %v2186 = vshrl.u32 %v2185, 7
        %v2187 = vsub.s32 1, %v2186
        %v2188 = vrot.slane %v1052, %v2187
        %v2189 = vlaneseq
        %v2190 = vshrl.u32 %v2189, 7
        %v2191 = vsub.s32 2, %v2190
        %v2192 = vrot.slane %v1052, %v2191
        %v2193 = vlaneseq
        %v2194 = vshrl.u32 %v2193, 7
        %v2195 = vsub.s32 3, %v2194
        %v2196 = vrot.slane %v1052, %v2195
        %v2197 = vlaneseq
        %v2198 = vshrl.u32 %v2197, 7
        %v2199 = vsub.s32 4, %v2198
        %v2200 = vrot.slane %v1052, %v2199
        %v2201 = vlaneseq
        %v2202 = vshrl.u32 %v2201, 7
        %v2203 = vsub.s32 5, %v2202
        %v2204 = vrot.slane %v1052, %v2203
        %v2205 = vlaneseq
        %v2206 = vshrl.u32 %v2205, 7
        %v2207 = vsub.s32 6, %v2206
        %v2208 = vrot.slane %v1052, %v2207
        %v2209 = vlaneseq
        %v2210 = vshrl.u32 %v2209, 7
        %v2211 = vsub.s32 7, %v2210
        %v2212 = vrot.slane %v1052, %v2211
        %v2229 = vmul.f32 %v2145, %v2152
        %v2230 = vmul.f32 %v2144, %v2156
        %v2231 = vmul.f32 %v2143, %v2160
        %v2232 = vmul.f32 %v2142, %v2164
        %v2233 = vmul.f32 %v2141, %v2168
        %v2234 = vmul.f32 %v2140, %v2172
        %v2235 = vmul.f32 %v2139, %v2176
        %v2236 = vmul.f32 %v2138, %v2180
        %v2237 = vmul.f32 %v2137, %v2184
        %v2238 = vmul.f32 %v2136, %v2188
        %v2239 = vmul.f32 %v2135, %v2192
        %v2240 = vmul.f32 %v2134, %v2196
        %v2241 = vmul.f32 %v2133, %v2200
        %v2242 = vmul.f32 %v2132, %v2204
        %v2243 = vmul.f32 %v2131, %v2208
        %v2244 = vmul.f32 %v2146, %v2212
        %2245 = vst [vmem:[#allocation3 + $0x180] sm:$0xf] %v2229
        %2246 = vst [vmem:[#allocation3 + $0x188] sm:$0xf] %v2230
        %2247 = vst [vmem:[#allocation3 + $0x190] sm:$0xf] %v2231
        %2248 = vst [vmem:[#allocation3 + $0x198] sm:$0xf] %v2232
        %2249 = vst [vmem:[#allocation3 + $0x1a0] sm:$0xf] %v2233
        %2250 = vst [vmem:[#allocation3 + $0x1a8] sm:$0xf] %v2234
        %2251 = vst [vmem:[#allocation3 + $0x1b0] sm:$0xf] %v2235
        %2252 = vst [vmem:[#allocation3 + $0x1b8] sm:$0xf] %v2236
        %2253 = vst [vmem:[#allocation3 + $0x1c0] sm:$0xf] %v2237
        %2254 = vst [vmem:[#allocation3 + $0x1c8] sm:$0xf] %v2238
        %2255 = vst [vmem:[#allocation3 + $0x1d0] sm:$0xf] %v2239
        %2256 = vst [vmem:[#allocation3 + $0x1d8] sm:$0xf] %v2240
        %2257 = vst [vmem:[#allocation3 + $0x1e0] sm:$0xf] %v2241
        %2258 = vst [vmem:[#allocation3 + $0x1e8] sm:$0xf] %v2242
        %2259 = vst [vmem:[#allocation3 + $0x1f0] sm:$0xf] %v2243
        %2260 = vst [vmem:[#allocation3 + $0x1f8] sm:$0xf] %v2244
        %2261 = vrot.lane.b32.xlu0 %v1089, 112
        %v2262 = vpop.permute.xlu0 %2261
        %2263 = vrot.lane.b32.xlu0 %v1105, 112
        %v2264 = vpop.permute.xlu0 %2263
        %2265 = vrot.lane.b32.xlu0 %v1090, 112
        %v2266 = vpop.permute.xlu0 %2265
        %2267 = vrot.lane.b32.xlu0 %v1106, 112
        %v2268 = vpop.permute.xlu0 %2267
        %2269 = vrot.lane.b32.xlu0 %v1091, 112
        %v2270 = vpop.permute.xlu0 %2269
        %2271 = vrot.lane.b32.xlu0 %v1107, 112
        %v2272 = vpop.permute.xlu0 %2271
        %2273 = vrot.lane.b32.xlu0 %v1092, 112
        %v2274 = vpop.permute.xlu0 %2273
        %2275 = vrot.lane.b32.xlu0 %v1108, 112
        %v2276 = vpop.permute.xlu0 %2275
        %2277 = vrot.lane.b32.xlu0 %v1093, 112
        %v2278 = vpop.permute.xlu0 %2277
        %2279 = vrot.lane.b32.xlu0 %v1109, 112
        %v2280 = vpop.permute.xlu0 %2279
        %2281 = vrot.lane.b32.xlu0 %v1094, 112
        %v2282 = vpop.permute.xlu0 %2281
        %2283 = vrot.lane.b32.xlu0 %v1110, 112
        %v2284 = vpop.permute.xlu0 %2283
        %2285 = vrot.lane.b32.xlu0 %v1095, 112
        %v2286 = vpop.permute.xlu0 %2285
        %2287 = vrot.lane.b32.xlu0 %v1111, 112
        %v2288 = vpop.permute.xlu0 %2287
        %2289 = vrot.lane.b32.xlu0 %v1096, 112
        %v2290 = vpop.permute.xlu0 %2289
        %2291 = vrot.lane.b32.xlu0 %v1112, 112
        %v2292 = vpop.permute.xlu0 %2291
        %vm2293 = vcmp.lt.s32.totalorder %v1154, 112
        %v2294 = vsel %vm2293, %v2290, %v2292
        %v2295 = vsel %vm2293, %v2288, %v2290
        %v2296 = vsel %vm2293, %v2286, %v2288
        %v2297 = vsel %vm2293, %v2284, %v2286
        %v2298 = vsel %vm2293, %v2282, %v2284
        %v2299 = vsel %vm2293, %v2280, %v2282
        %v2300 = vsel %vm2293, %v2278, %v2280
        %v2301 = vsel %vm2293, %v2276, %v2278
        %v2302 = vsel %vm2293, %v2274, %v2276
        %v2303 = vsel %vm2293, %v2272, %v2274
        %v2304 = vsel %vm2293, %v2270, %v2272
        %v2305 = vsel %vm2293, %v2268, %v2270
        %v2306 = vsel %vm2293, %v2266, %v2268
        %v2307 = vsel %vm2293, %v2264, %v2266
        %v2308 = vsel %vm2293, %v2262, %v2264
        %v2309 = vsel %vm2293, %v2292, %v2262
        %v2312 = vlaneseq
        %v2313 = vshrl.u32 %v2312, 7
        %v2314 = vsub.s32 0, %v2313
        %v2315 = vrot.slane %v1053, %v2314
        %v2316 = vlaneseq
        %v2317 = vshrl.u32 %v2316, 7
        %v2318 = vsub.s32 1, %v2317
        %v2319 = vrot.slane %v1053, %v2318
        %v2320 = vlaneseq
        %v2321 = vshrl.u32 %v2320, 7
        %v2322 = vsub.s32 2, %v2321
        %v2323 = vrot.slane %v1053, %v2322
        %v2324 = vlaneseq
        %v2325 = vshrl.u32 %v2324, 7
        %v2326 = vsub.s32 3, %v2325
        %v2327 = vrot.slane %v1053, %v2326
        %v2328 = vlaneseq
        %v2329 = vshrl.u32 %v2328, 7
        %v2330 = vsub.s32 4, %v2329
        %v2331 = vrot.slane %v1053, %v2330
        %v2332 = vlaneseq
        %v2333 = vshrl.u32 %v2332, 7
        %v2334 = vsub.s32 5, %v2333
        %v2335 = vrot.slane %v1053, %v2334
        %v2336 = vlaneseq
        %v2337 = vshrl.u32 %v2336, 7
        %v2338 = vsub.s32 6, %v2337
        %v2339 = vrot.slane %v1053, %v2338
        %v2340 = vlaneseq
        %v2341 = vshrl.u32 %v2340, 7
        %v2342 = vsub.s32 7, %v2341
        %v2343 = vrot.slane %v1053, %v2342
        %v2344 = vlaneseq
        %v2345 = vshrl.u32 %v2344, 7
        %v2346 = vsub.s32 0, %v2345
        %v2347 = vrot.slane %v1054, %v2346
        %v2348 = vlaneseq
        %v2349 = vshrl.u32 %v2348, 7
        %v2350 = vsub.s32 1, %v2349
        %v2351 = vrot.slane %v1054, %v2350
        %v2352 = vlaneseq
        %v2353 = vshrl.u32 %v2352, 7
        %v2354 = vsub.s32 2, %v2353
        %v2355 = vrot.slane %v1054, %v2354
        %v2356 = vlaneseq
        %v2357 = vshrl.u32 %v2356, 7
        %v2358 = vsub.s32 3, %v2357
        %v2359 = vrot.slane %v1054, %v2358
        %v2360 = vlaneseq
        %v2361 = vshrl.u32 %v2360, 7
        %v2362 = vsub.s32 4, %v2361
        %v2363 = vrot.slane %v1054, %v2362
        %v2364 = vlaneseq
        %v2365 = vshrl.u32 %v2364, 7
        %v2366 = vsub.s32 5, %v2365
        %v2367 = vrot.slane %v1054, %v2366
        %v2368 = vlaneseq
        %v2369 = vshrl.u32 %v2368, 7
        %v2370 = vsub.s32 6, %v2369
        %v2371 = vrot.slane %v1054, %v2370
        %v2372 = vlaneseq
        %v2373 = vshrl.u32 %v2372, 7
        %v2374 = vsub.s32 7, %v2373
        %v2375 = vrot.slane %v1054, %v2374
        %v2392 = vmul.f32 %v2308, %v2315
        %v2393 = vmul.f32 %v2307, %v2319
        %v2394 = vmul.f32 %v2306, %v2323
        %v2395 = vmul.f32 %v2305, %v2327
        %v2396 = vmul.f32 %v2304, %v2331
        %v2397 = vmul.f32 %v2303, %v2335
        %v2398 = vmul.f32 %v2302, %v2339
        %v2399 = vmul.f32 %v2301, %v2343
        %v2400 = vmul.f32 %v2300, %v2347
        %v2401 = vmul.f32 %v2299, %v2351
        %v2402 = vmul.f32 %v2298, %v2355
        %v2403 = vmul.f32 %v2297, %v2359
        %v2404 = vmul.f32 %v2296, %v2363
        %v2405 = vmul.f32 %v2295, %v2367
        %v2406 = vmul.f32 %v2294, %v2371
        %v2407 = vmul.f32 %v2309, %v2375
        %v2424 = vrot.slane %v2392, 4
        %v2425 = vrot.slane %v2393, 4
        %v2426 = vrot.slane %v2394, 4
        %v2427 = vrot.slane %v2395, 4
        %v2428 = vrot.slane %v2396, 4
        %v2429 = vrot.slane %v2397, 4
        %v2430 = vrot.slane %v2398, 4
        %v2431 = vrot.slane %v2399, 4
        %v2432 = vrot.slane %v2400, 4
        %v2433 = vrot.slane %v2401, 4
        %v2434 = vrot.slane %v2402, 4
        %v2435 = vrot.slane %v2403, 4
        %v2436 = vrot.slane %v2404, 4
        %v2437 = vrot.slane %v2405, 4
        %v2438 = vrot.slane %v2406, 4
        %v2439 = vrot.slane %v2407, 4
        %2456 = vst [vmem:[#allocation3 + $0x180] sm:$0xf0] %v2424
        %2457 = vst [vmem:[#allocation3 + $0x188] sm:$0xf0] %v2425
        %2458 = vst [vmem:[#allocation3 + $0x190] sm:$0xf0] %v2426
        %2459 = vst [vmem:[#allocation3 + $0x198] sm:$0xf0] %v2427
        %2460 = vst [vmem:[#allocation3 + $0x1a0] sm:$0xf0] %v2428
        %2461 = vst [vmem:[#allocation3 + $0x1a8] sm:$0xf0] %v2429
        %2462 = vst [vmem:[#allocation3 + $0x1b0] sm:$0xf0] %v2430
        %2463 = vst [vmem:[#allocation3 + $0x1b8] sm:$0xf0] %v2431
        %2464 = vst [vmem:[#allocation3 + $0x1c0] sm:$0xf0] %v2432
        %2465 = vst [vmem:[#allocation3 + $0x1c8] sm:$0xf0] %v2433
        %2466 = vst [vmem:[#allocation3 + $0x1d0] sm:$0xf0] %v2434
        %2467 = vst [vmem:[#allocation3 + $0x1d8] sm:$0xf0] %v2435
        %2468 = vst [vmem:[#allocation3 + $0x1e0] sm:$0xf0] %v2436
        %2469 = vst [vmem:[#allocation3 + $0x1e8] sm:$0xf0] %v2437
        %2470 = vst [vmem:[#allocation3 + $0x1f0] sm:$0xf0] %v2438
        %2471 = vst [vmem:[#allocation3 + $0x1f8] sm:$0xf0] %v2439
        %2472 = vrot.lane.b32.xlu0 %v1089, 111
        %v2473 = vpop.permute.xlu0 %2472
        %2474 = vrot.lane.b32.xlu0 %v1105, 111
        %v2475 = vpop.permute.xlu0 %2474
        %2476 = vrot.lane.b32.xlu0 %v1090, 111
        %v2477 = vpop.permute.xlu0 %2476
        %2478 = vrot.lane.b32.xlu0 %v1106, 111
        %v2479 = vpop.permute.xlu0 %2478
        %2480 = vrot.lane.b32.xlu0 %v1091, 111
        %v2481 = vpop.permute.xlu0 %2480
        %2482 = vrot.lane.b32.xlu0 %v1107, 111
        %v2483 = vpop.permute.xlu0 %2482
        %2484 = vrot.lane.b32.xlu0 %v1092, 111
        %v2485 = vpop.permute.xlu0 %2484
        %2486 = vrot.lane.b32.xlu0 %v1108, 111
        %v2487 = vpop.permute.xlu0 %2486
        %2488 = vrot.lane.b32.xlu0 %v1093, 111
        %v2489 = vpop.permute.xlu0 %2488
        %2490 = vrot.lane.b32.xlu0 %v1109, 111
        %v2491 = vpop.permute.xlu0 %2490
        %2492 = vrot.lane.b32.xlu0 %v1094, 111
        %v2493 = vpop.permute.xlu0 %2492
        %2494 = vrot.lane.b32.xlu0 %v1110, 111
        %v2495 = vpop.permute.xlu0 %2494
        %2496 = vrot.lane.b32.xlu0 %v1095, 111
        %v2497 = vpop.permute.xlu0 %2496
        %2498 = vrot.lane.b32.xlu0 %v1111, 111
        %v2499 = vpop.permute.xlu0 %2498
        %2500 = vrot.lane.b32.xlu0 %v1096, 111
        %v2501 = vpop.permute.xlu0 %2500
        %2502 = vrot.lane.b32.xlu0 %v1112, 111
        %v2503 = vpop.permute.xlu0 %2502
        %vm2504 = vcmp.lt.s32.totalorder %v1154, 111
        %v2505 = vsel %vm2504, %v2501, %v2503
        %v2506 = vsel %vm2504, %v2499, %v2501
        %v2507 = vsel %vm2504, %v2497, %v2499
        %v2508 = vsel %vm2504, %v2495, %v2497
        %v2509 = vsel %vm2504, %v2493, %v2495
        %v2510 = vsel %vm2504, %v2491, %v2493
        %v2511 = vsel %vm2504, %v2489, %v2491
        %v2512 = vsel %vm2504, %v2487, %v2489
        %v2513 = vsel %vm2504, %v2485, %v2487
        %v2514 = vsel %vm2504, %v2483, %v2485
        %v2515 = vsel %vm2504, %v2481, %v2483
        %v2516 = vsel %vm2504, %v2479, %v2481
        %v2517 = vsel %vm2504, %v2477, %v2479
        %v2518 = vsel %vm2504, %v2475, %v2477
        %v2519 = vsel %vm2504, %v2473, %v2475
        %v2520 = vsel %vm2504, %v2503, %v2473
        %v2523 = vlaneseq
        %v2524 = vshrl.u32 %v2523, 7
        %v2525 = vsub.s32 0, %v2524
        %v2526 = vrot.slane %v1055, %v2525
        %v2527 = vlaneseq
        %v2528 = vshrl.u32 %v2527, 7
        %v2529 = vsub.s32 1, %v2528
        %v2530 = vrot.slane %v1055, %v2529
        %v2531 = vlaneseq
        %v2532 = vshrl.u32 %v2531, 7
        %v2533 = vsub.s32 2, %v2532
        %v2534 = vrot.slane %v1055, %v2533
        %v2535 = vlaneseq
        %v2536 = vshrl.u32 %v2535, 7
        %v2537 = vsub.s32 3, %v2536
        %v2538 = vrot.slane %v1055, %v2537
        %v2539 = vlaneseq
        %v2540 = vshrl.u32 %v2539, 7
        %v2541 = vsub.s32 4, %v2540
        %v2542 = vrot.slane %v1055, %v2541
        %v2543 = vlaneseq
        %v2544 = vshrl.u32 %v2543, 7
        %v2545 = vsub.s32 5, %v2544
        %v2546 = vrot.slane %v1055, %v2545
        %v2547 = vlaneseq
        %v2548 = vshrl.u32 %v2547, 7
        %v2549 = vsub.s32 6, %v2548
        %v2550 = vrot.slane %v1055, %v2549
        %v2551 = vlaneseq
        %v2552 = vshrl.u32 %v2551, 7
        %v2553 = vsub.s32 7, %v2552
        %v2554 = vrot.slane %v1055, %v2553
        %v2555 = vlaneseq
        %v2556 = vshrl.u32 %v2555, 7
        %v2557 = vsub.s32 0, %v2556
        %v2558 = vrot.slane %v1056, %v2557
        %v2559 = vlaneseq
        %v2560 = vshrl.u32 %v2559, 7
        %v2561 = vsub.s32 1, %v2560
        %v2562 = vrot.slane %v1056, %v2561
        %v2563 = vlaneseq
        %v2564 = vshrl.u32 %v2563, 7
        %v2565 = vsub.s32 2, %v2564
        %v2566 = vrot.slane %v1056, %v2565
        %v2567 = vlaneseq
        %v2568 = vshrl.u32 %v2567, 7
        %v2569 = vsub.s32 3, %v2568
        %v2570 = vrot.slane %v1056, %v2569
        %v2571 = vlaneseq
        %v2572 = vshrl.u32 %v2571, 7
        %v2573 = vsub.s32 4, %v2572
        %v2574 = vrot.slane %v1056, %v2573
        %v2575 = vlaneseq
        %v2576 = vshrl.u32 %v2575, 7
        %v2577 = vsub.s32 5, %v2576
        %v2578 = vrot.slane %v1056, %v2577
        %v2579 = vlaneseq
        %v2580 = vshrl.u32 %v2579, 7
        %v2581 = vsub.s32 6, %v2580
        %v2582 = vrot.slane %v1056, %v2581
        %v2583 = vlaneseq
        %v2584 = vshrl.u32 %v2583, 7
        %v2585 = vsub.s32 7, %v2584
        %v2586 = vrot.slane %v1056, %v2585
        %v2603 = vmul.f32 %v2519, %v2526
        %v2604 = vmul.f32 %v2518, %v2530
        %v2605 = vmul.f32 %v2517, %v2534
        %v2606 = vmul.f32 %v2516, %v2538
        %v2607 = vmul.f32 %v2515, %v2542
        %v2608 = vmul.f32 %v2514, %v2546
        %v2609 = vmul.f32 %v2513, %v2550
        %v2610 = vmul.f32 %v2512, %v2554
        %v2611 = vmul.f32 %v2511, %v2558
        %v2612 = vmul.f32 %v2510, %v2562
        %v2613 = vmul.f32 %v2509, %v2566
        %v2614 = vmul.f32 %v2508, %v2570
        %v2615 = vmul.f32 %v2507, %v2574
        %v2616 = vmul.f32 %v2506, %v2578
        %v2617 = vmul.f32 %v2505, %v2582
        %v2618 = vmul.f32 %v2520, %v2586
        %2619 = vst [vmem:[#allocation3 + $0x200] sm:$0xf] %v2603
        %2620 = vst [vmem:[#allocation3 + $0x208] sm:$0xf] %v2604
        %2621 = vst [vmem:[#allocation3 + $0x210] sm:$0xf] %v2605
        %2622 = vst [vmem:[#allocation3 + $0x218] sm:$0xf] %v2606
        %2623 = vst [vmem:[#allocation3 + $0x220] sm:$0xf] %v2607
        %2624 = vst [vmem:[#allocation3 + $0x228] sm:$0xf] %v2608
        %2625 = vst [vmem:[#allocation3 + $0x230] sm:$0xf] %v2609
        %2626 = vst [vmem:[#allocation3 + $0x238] sm:$0xf] %v2610
        %2627 = vst [vmem:[#allocation3 + $0x240] sm:$0xf] %v2611
        %2628 = vst [vmem:[#allocation3 + $0x248] sm:$0xf] %v2612
        %2629 = vst [vmem:[#allocation3 + $0x250] sm:$0xf] %v2613
        %2630 = vst [vmem:[#allocation3 + $0x258] sm:$0xf] %v2614
        %2631 = vst [vmem:[#allocation3 + $0x260] sm:$0xf] %v2615
        %2632 = vst [vmem:[#allocation3 + $0x268] sm:$0xf] %v2616
        %2633 = vst [vmem:[#allocation3 + $0x270] sm:$0xf] %v2617
        %2634 = vst [vmem:[#allocation3 + $0x278] sm:$0xf] %v2618
        %v2635 = vld [vmem:[%s13] sm:$0xf]
        %v2636 = vld [vmem:[#allocation3] sm:$0xff]
        %v2637 = vld [vmem:[#allocation3 + $0x8] sm:$0xff]
        %v2638 = vld [vmem:[#allocation3 + $0x10] sm:$0xff]
        %v2639 = vld [vmem:[#allocation3 + $0x18] sm:$0xff]
        %v2640 = vld [vmem:[#allocation3 + $0x20] sm:$0xff]
        %v2641 = vld [vmem:[#allocation3 + $0x28] sm:$0xff]
        %v2642 = vld [vmem:[#allocation3 + $0x30] sm:$0xff]
        %v2643 = vld [vmem:[#allocation3 + $0x38] sm:$0xff]
        %v2644 = vld [vmem:[#allocation3 + $0x40] sm:$0xff]
        %v2645 = vld [vmem:[#allocation3 + $0x48] sm:$0xff]
        %v2646 = vld [vmem:[#allocation3 + $0x50] sm:$0xff]
        %v2647 = vld [vmem:[#allocation3 + $0x58] sm:$0xff]
        %v2648 = vld [vmem:[#allocation3 + $0x60] sm:$0xff]
        %v2649 = vld [vmem:[#allocation3 + $0x68] sm:$0xff]
        %v2650 = vld [vmem:[#allocation3 + $0x70] sm:$0xff]
        %v2651 = vld [vmem:[#allocation3 + $0x78] sm:$0xff]
        %v2652 = vld [vmem:[#allocation3 + $0x80] sm:$0xff]
        %v2653 = vld [vmem:[#allocation3 + $0x88] sm:$0xff]
        %v2654 = vld [vmem:[#allocation3 + $0x90] sm:$0xff]
        %v2655 = vld [vmem:[#allocation3 + $0x98] sm:$0xff]
        %v2656 = vld [vmem:[#allocation3 + $0xa0] sm:$0xff]
        %v2657 = vld [vmem:[#allocation3 + $0xa8] sm:$0xff]
        %v2658 = vld [vmem:[#allocation3 + $0xb0] sm:$0xff]
        %v2659 = vld [vmem:[#allocation3 + $0xb8] sm:$0xff]
        %v2660 = vld [vmem:[#allocation3 + $0xc0] sm:$0xff]
        %v2661 = vld [vmem:[#allocation3 + $0xc8] sm:$0xff]
        %v2662 = vld [vmem:[#allocation3 + $0xd0] sm:$0xff]
        %v2663 = vld [vmem:[#allocation3 + $0xd8] sm:$0xff]
        %v2664 = vld [vmem:[#allocation3 + $0xe0] sm:$0xff]
        %v2665 = vld [vmem:[#allocation3 + $0xe8] sm:$0xff]
        %v2666 = vld [vmem:[#allocation3 + $0xf0] sm:$0xff]
        %v2667 = vld [vmem:[#allocation3 + $0xf8] sm:$0xff]
        %v2668 = vld [vmem:[#allocation3 + $0x100] sm:$0xff]
        %v2669 = vld [vmem:[#allocation3 + $0x108] sm:$0xff]
        %v2670 = vld [vmem:[#allocation3 + $0x110] sm:$0xff]
        %v2671 = vld [vmem:[#allocation3 + $0x118] sm:$0xff]
        %v2672 = vld [vmem:[#allocation3 + $0x120] sm:$0xff]
        %v2673 = vld [vmem:[#allocation3 + $0x128] sm:$0xff]
        %v2674 = vld [vmem:[#allocation3 + $0x130] sm:$0xff]
        %v2675 = vld [vmem:[#allocation3 + $0x138] sm:$0xff]
        %v2676 = vld [vmem:[#allocation3 + $0x140] sm:$0xff]
        %v2677 = vld [vmem:[#allocation3 + $0x148] sm:$0xff]
        %v2678 = vld [vmem:[#allocation3 + $0x150] sm:$0xff]
        %v2679 = vld [vmem:[#allocation3 + $0x158] sm:$0xff]
        %v2680 = vld [vmem:[#allocation3 + $0x160] sm:$0xff]
        %v2681 = vld [vmem:[#allocation3 + $0x168] sm:$0xff]
        %v2682 = vld [vmem:[#allocation3 + $0x170] sm:$0xff]
        %v2683 = vld [vmem:[#allocation3 + $0x178] sm:$0xff]
        %v2684 = vld [vmem:[#allocation3 + $0x180] sm:$0xff]
        %v2685 = vld [vmem:[#allocation3 + $0x188] sm:$0xff]
        %v2686 = vld [vmem:[#allocation3 + $0x190] sm:$0xff]
        %v2687 = vld [vmem:[#allocation3 + $0x198] sm:$0xff]
        %v2688 = vld [vmem:[#allocation3 + $0x1a0] sm:$0xff]
        %v2689 = vld [vmem:[#allocation3 + $0x1a8] sm:$0xff]
        %v2690 = vld [vmem:[#allocation3 + $0x1b0] sm:$0xff]
        %v2691 = vld [vmem:[#allocation3 + $0x1b8] sm:$0xff]
        %v2692 = vld [vmem:[#allocation3 + $0x1c0] sm:$0xff]
        %v2693 = vld [vmem:[#allocation3 + $0x1c8] sm:$0xff]
        %v2694 = vld [vmem:[#allocation3 + $0x1d0] sm:$0xff]
        %v2695 = vld [vmem:[#allocation3 + $0x1d8] sm:$0xff]
        %v2696 = vld [vmem:[#allocation3 + $0x1e0] sm:$0xff]
        %v2697 = vld [vmem:[#allocation3 + $0x1e8] sm:$0xff]
        %v2698 = vld [vmem:[#allocation3 + $0x1f0] sm:$0xff]
        %v2699 = vld [vmem:[#allocation3 + $0x1f8] sm:$0xff]
        %v2700 = vld [vmem:[#allocation3 + $0x200] sm:$0xf]
        %v2701 = vld [vmem:[#allocation3 + $0x208] sm:$0xf]
        %v2702 = vld [vmem:[#allocation3 + $0x210] sm:$0xf]
        %v2703 = vld [vmem:[#allocation3 + $0x218] sm:$0xf]
        %v2704 = vld [vmem:[#allocation3 + $0x220] sm:$0xf]
        %v2705 = vld [vmem:[#allocation3 + $0x228] sm:$0xf]
        %v2706 = vld [vmem:[#allocation3 + $0x230] sm:$0xf]
        %v2707 = vld [vmem:[#allocation3 + $0x238] sm:$0xf]
        %v2708 = vld [vmem:[#allocation3 + $0x240] sm:$0xf]
        %v2709 = vld [vmem:[#allocation3 + $0x248] sm:$0xf]
        %v2710 = vld [vmem:[#allocation3 + $0x250] sm:$0xf]
        %v2711 = vld [vmem:[#allocation3 + $0x258] sm:$0xf]
        %v2712 = vld [vmem:[#allocation3 + $0x260] sm:$0xf]
        %v2713 = vld [vmem:[#allocation3 + $0x268] sm:$0xf]
        %v2714 = vld [vmem:[#allocation3 + $0x270] sm:$0xf]
        %v2715 = vld [vmem:[#allocation3 + $0x278] sm:$0xf]
        %v2716 = vld [vmem:[%s15] sm:$0xf]
        %2718 = vset.pattern.permute.xlu0 0
        %2719 = vperm.xlu0 %2718, %v2716
        %v2720 = vpop.permute.xlu0 %2719
        %vm2722 = vcmask 293888
        %v2724 = vsel %vm2722, %v2635, 0
        %vm2726 = vcmask 1043456
        %v2728 = vsel %vm2726, %v2700, 0
        %v2731 = vsel %vm2726, %v2701, 0
        %v2734 = vsel %vm2726, %v2702, 0
        %v2737 = vsel %vm2726, %v2703, 0
        %v2740 = vsel %vm2726, %v2704, 0
        %v2743 = vsel %vm2726, %v2705, 0
        %v2746 = vsel %vm2726, %v2706, 0
        %v2749 = vsel %vm2726, %v2707, 0
        %v2752 = vsel %vm2726, %v2708, 0
        %v2755 = vsel %vm2726, %v2709, 0
        %v2758 = vsel %vm2726, %v2710, 0
        %v2761 = vsel %vm2726, %v2711, 0
        %v2764 = vsel %vm2726, %v2712, 0
        %v2767 = vsel %vm2726, %v2713, 0
        %v2770 = vsel %vm2726, %v2714, 0
        %v2773 = vsel %vm2726, %v2715, 0
        %2775 = vmatprep.subr.mxu0 %v2637
        %2776 = vmatpush1.msra.mxu0 %v2636
        %2777 = vmatprep.subr.mxu0 %v2653
        %2778 = vmatpush1.msra.mxu0 %v2652
        %2779 = vmatprep.subr.mxu0 %v2669
        %2780 = vmatpush1.msra.mxu0 %v2668
        %2781 = vmatprep.subr.mxu0 %v2685
        %2782 = vmatpush1.msra.mxu0 %v2684
        %2783 = vmatprep.subr.mxu0 %v2731
        %2784 = vmatpush1.msra.mxu0 %v2728
        %2785 = vmatprep.subr.mxu0 0.0
        %2786 = vmatpush1.msra.mxu0 0.0
        %2787 = vmatprep.subr.mxu0 0.0
        %2788 = vmatpush1.msra.mxu0 0.0
        %2789 = vmatprep.subr.mxu0 0.0
        %2790 = vmatpush1.msra.mxu0 0.0
        %2791 = vmatprep.subr.mxu0 0.0
        %2792 = vmatpush1.msra.mxu0 0.0
        %2793 = vmatprep.subr.mxu0 0.0
        %2794 = vmatpush1.msra.mxu0 0.0
        %2795 = vmatprep.subr.mxu0 0.0
        %2796 = vmatpush1.msra.mxu0 0.0
        %2797 = vmatprep.subr.mxu0 0.0
        %2798 = vmatpush1.msra.mxu0 0.0
        %2799 = vmatprep.subr.mxu0 0.0
        %2800 = vmatpush1.msra.mxu0 0.0
        %2801 = vmatprep.subr.mxu0 0.0
        %2802 = vmatpush1.msra.mxu0 0.0
        %2803 = vmatprep.subr.mxu0 0.0
        %2804 = vmatpush1.msra.mxu0 0.0
        %2805 = vmatprep.subr.mxu0 0.0
        %2806 = vmatpush1.msra.mxu0 0.0
        %2807 = vmatprep.subr.mxu0 0.0
        %2808 = vmatpush1.msra.mxu0 0.0
        %2809 = vmatprep.subr.mxu0 0.0
        %2810 = vmatpush1.msra.mxu0 0.0
        %2811 = vmatprep.subr.mxu0 0.0
        %2812 = vmatpush1.msra.mxu0 0.0
        %2813 = vmatprep.subr.mxu0 0.0
        %2814 = vmatpush1.msra.mxu0 0.0
        %2815 = vmatprep.subr.mxu0 0.0
        %2816 = vmatpush1.msra.mxu0 0.0
        %2817 = vmatprep.subr.mxu0 0.0
        %2818 = vmatpush1.msra.mxu0 0.0
        %2819 = vmatprep.subr.mxu0 0.0
        %2820 = vmatpush1.msra.mxu0 0.0
        %2821 = vmatprep.subr.mxu0 0.0
        %2822 = vmatpush1.msra.mxu0 0.0
        %2823 = vmatprep.subr.mxu0 0.0
        %2824 = vmatpush1.msra.mxu0 0.0
        %2825 = vmatprep.subr.mxu0 0.0
        %2826 = vmatpush1.msra.mxu0 0.0
        %2827 = vmatprep.subr.mxu0 0.0
        %2828 = vmatpush1.msra.mxu0 0.0
        %2829 = vmatprep.subr.mxu0 0.0
        %2830 = vmatpush1.msra.mxu0 0.0
        %2831 = vmatprep.subr.mxu0 0.0
        %2832 = vmatpush1.msra.mxu0 0.0
        %2833 = vmatprep.subr.mxu0 0.0
        %2834 = vmatpush1.msra.mxu0 0.0
        %2835 = vmatprep.subr.mxu0 0.0
        %2836 = vmatpush1.msra.mxu0 0.0
        %2837 = vmatprep.subr.mxu0 0.0
        %2838 = vmatpush1.msra.mxu0 0.0
        %2839 = vmatprep.mubr.f32.mxu0 0.0
        %2840 = vmatmul.mubr.f32.gmra.mrb[0].mxu0 %v2724
        %v2841 = vpop.f32.mrb[0].mxu0
        %v2842 = vadd.f32 %v2720, %v2841
        %v2843 = vpop.f32.mrb[0].mxu0
        %v2844 = vadd.f32 %v2720, %v2843
        %2845 = vdwg.mxu0
        %2846 = vmatprep.subr.mxu0 %v2639
        %2847 = vmatpush1.msra.mxu0 %v2638
        %2848 = vmatprep.subr.mxu0 %v2655
        %2849 = vmatpush1.msra.mxu0 %v2654
        %2850 = vmatprep.subr.mxu0 %v2671
        %2851 = vmatpush1.msra.mxu0 %v2670
        %2852 = vmatprep.subr.mxu0 %v2687
        %2853 = vmatpush1.msra.mxu0 %v2686
        %2854 = vmatprep.subr.mxu0 %v2737
        %2855 = vmatpush1.msra.mxu0 %v2734
        %2856 = vmatprep.subr.mxu0 0.0
        %2857 = vmatpush1.msra.mxu0 0.0
        %2858 = vmatprep.subr.mxu0 0.0
        %2859 = vmatpush1.msra.mxu0 0.0
        %2860 = vmatprep.subr.mxu0 0.0
        %2861 = vmatpush1.msra.mxu0 0.0
        %2862 = vmatprep.subr.mxu0 0.0
        %2863 = vmatpush1.msra.mxu0 0.0
        %2864 = vmatprep.subr.mxu0 0.0
        %2865 = vmatpush1.msra.mxu0 0.0
        %2866 = vmatprep.subr.mxu0 0.0
        %2867 = vmatpush1.msra.mxu0 0.0
        %2868 = vmatprep.subr.mxu0 0.0
        %2869 = vmatpush1.msra.mxu0 0.0
        %2870 = vmatprep.subr.mxu0 0.0
        %2871 = vmatpush1.msra.mxu0 0.0
        %2872 = vmatprep.subr.mxu0 0.0
        %2873 = vmatpush1.msra.mxu0 0.0
        %2874 = vmatprep.subr.mxu0 0.0
        %2875 = vmatpush1.msra.mxu0 0.0
        %2876 = vmatprep.subr.mxu0 0.0
        %2877 = vmatpush1.msra.mxu0 0.0
        %2878 = vmatprep.subr.mxu0 0.0
        %2879 = vmatpush1.msra.mxu0 0.0
        %2880 = vmatprep.subr.mxu0 0.0
        %2881 = vmatpush1.msra.mxu0 0.0
        %2882 = vmatprep.subr.mxu0 0.0
        %2883 = vmatpush1.msra.mxu0 0.0
        %2884 = vmatprep.subr.mxu0 0.0
        %2885 = vmatpush1.msra.mxu0 0.0
        %2886 = vmatprep.subr.mxu0 0.0
        %2887 = vmatpush1.msra.mxu0 0.0
        %2888 = vmatprep.subr.mxu0 0.0
        %2889 = vmatpush1.msra.mxu0 0.0
        %2890 = vmatprep.subr.mxu0 0.0
        %2891 = vmatpush1.msra.mxu0 0.0
        %2892 = vmatprep.subr.mxu0 0.0
        %2893 = vmatpush1.msra.mxu0 0.0
        %2894 = vmatprep.subr.mxu0 0.0
        %2895 = vmatpush1.msra.mxu0 0.0
        %2896 = vmatprep.subr.mxu0 0.0
        %2897 = vmatpush1.msra.mxu0 0.0
        %2898 = vmatprep.subr.mxu0 0.0
        %2899 = vmatpush1.msra.mxu0 0.0
        %2900 = vmatprep.subr.mxu0 0.0
        %2901 = vmatpush1.msra.mxu0 0.0
        %2902 = vmatprep.subr.mxu0 0.0
        %2903 = vmatpush1.msra.mxu0 0.0
        %2904 = vmatprep.subr.mxu0 0.0
        %2905 = vmatpush1.msra.mxu0 0.0
        %2906 = vmatprep.subr.mxu0 0.0
        %2907 = vmatpush1.msra.mxu0 0.0
        %2908 = vmatprep.subr.mxu0 0.0
        %2909 = vmatpush1.msra.mxu0 0.0
        %2910 = vmatprep.mubr.f32.mxu0 0.0
        %2911 = vmatmul.mubr.f32.gmra.mrb[0].mxu0 %v2724
        %v2912 = vpop.f32.mrb[0].mxu0
        %v2913 = vadd.f32 %v2720, %v2912
        %v2914 = vpop.f32.mrb[0].mxu0
        %v2915 = vadd.f32 %v2720, %v2914
        %2916 = vdwg.mxu0
        %2917 = vmatprep.subr.mxu0 %v2641
        %2918 = vmatpush1.msra.mxu0 %v2640
        %2919 = vmatprep.subr.mxu0 %v2657
        %2920 = vmatpush1.msra.mxu0 %v2656
        %2921 = vmatprep.subr.mxu0 %v2673
        %2922 = vmatpush1.msra.mxu0 %v2672
        %2923 = vmatprep.subr.mxu0 %v2689
        %2924 = vmatpush1.msra.mxu0 %v2688
        %2925 = vmatprep.subr.mxu0 %v2743
        %2926 = vmatpush1.msra.mxu0 %v2740
        %2927 = vmatprep.subr.mxu0 0.0
        %2928 = vmatpush1.msra.mxu0 0.0
        %2929 = vmatprep.subr.mxu0 0.0
        %2930 = vmatpush1.msra.mxu0 0.0
        %2931 = vmatprep.subr.mxu0 0.0
        %2932 = vmatpush1.msra.mxu0 0.0
        %2933 = vmatprep.subr.mxu0 0.0
        %2934 = vmatpush1.msra.mxu0 0.0
        %2935 = vmatprep.subr.mxu0 0.0
        %2936 = vmatpush1.msra.mxu0 0.0
        %2937 = vmatprep.subr.mxu0 0.0
        %2938 = vmatpush1.msra.mxu0 0.0
        %2939 = vmatprep.subr.mxu0 0.0
        %2940 = vmatpush1.msra.mxu0 0.0
        %2941 = vmatprep.subr.mxu0 0.0
        %2942 = vmatpush1.msra.mxu0 0.0
        %2943 = vmatprep.subr.mxu0 0.0
        %2944 = vmatpush1.msra.mxu0 0.0
        %2945 = vmatprep.subr.mxu0 0.0
        %2946 = vmatpush1.msra.mxu0 0.0
        %2947 = vmatprep.subr.mxu0 0.0
        %2948 = vmatpush1.msra.mxu0 0.0
        %2949 = vmatprep.subr.mxu0 0.0
        %2950 = vmatpush1.msra.mxu0 0.0
        %2951 = vmatprep.subr.mxu0 0.0
        %2952 = vmatpush1.msra.mxu0 0.0
        %2953 = vmatprep.subr.mxu0 0.0
        %2954 = vmatpush1.msra.mxu0 0.0
        %2955 = vmatprep.subr.mxu0 0.0
        %2956 = vmatpush1.msra.mxu0 0.0
        %2957 = vmatprep.subr.mxu0 0.0
        %2958 = vmatpush1.msra.mxu0 0.0
        %2959 = vmatprep.subr.mxu0 0.0
        %2960 = vmatpush1.msra.mxu0 0.0
        %2961 = vmatprep.subr.mxu0 0.0
        %2962 = vmatpush1.msra.mxu0 0.0
        %2963 = vmatprep.subr.mxu0 0.0
        %2964 = vmatpush1.msra.mxu0 0.0
        %2965 = vmatprep.subr.mxu0 0.0
        %2966 = vmatpush1.msra.mxu0 0.0
        %2967 = vmatprep.subr.mxu0 0.0
        %2968 = vmatpush1.msra.mxu0 0.0
        %2969 = vmatprep.subr.mxu0 0.0
        %2970 = vmatpush1.msra.mxu0 0.0
        %2971 = vmatprep.subr.mxu0 0.0
        %2972 = vmatpush1.msra.mxu0 0.0
        %2973 = vmatprep.subr.mxu0 0.0
        %2974 = vmatpush1.msra.mxu0 0.0
        %2975 = vmatprep.subr.mxu0 0.0
        %2976 = vmatpush1.msra.mxu0 0.0
        %2977 = vmatprep.subr.mxu0 0.0
        %2978 = vmatpush1.msra.mxu0 0.0
        %2979 = vmatprep.subr.mxu0 0.0
        %2980 = vmatpush1.msra.mxu0 0.0
        %2981 = vmatprep.mubr.f32.mxu0 0.0
        %2982 = vmatmul.mubr.f32.gmra.mrb[0].mxu0 %v2724
        %v2983 = vpop.f32.mrb[0].mxu0
        %v2984 = vadd.f32 %v2720, %v2983
        %v2985 = vpop.f32.mrb[0].mxu0
        %v2986 = vadd.f32 %v2720, %v2985
        %2987 = vdwg.mxu0
        %2988 = vmatprep.subr.mxu0 %v2643
        %2989 = vmatpush1.msra.mxu0 %v2642
        %2990 = vmatprep.subr.mxu0 %v2659
        %2991 = vmatpush1.msra.mxu0 %v2658
        %2992 = vmatprep.subr.mxu0 %v2675
        %2993 = vmatpush1.msra.mxu0 %v2674
        %2994 = vmatprep.subr.mxu0 %v2691
        %2995 = vmatpush1.msra.mxu0 %v2690
        %2996 = vmatprep.subr.mxu0 %v2749
        %2997 = vmatpush1.msra.mxu0 %v2746
        %2998 = vmatprep.subr.mxu0 0.0
        %2999 = vmatpush1.msra.mxu0 0.0
        %3000 = vmatprep.subr.mxu0 0.0
        %3001 = vmatpush1.msra.mxu0 0.0
        %3002 = vmatprep.subr.mxu0 0.0
        %3003 = vmatpush1.msra.mxu0 0.0
        %3004 = vmatprep.subr.mxu0 0.0
        %3005 = vmatpush1.msra.mxu0 0.0
        %3006 = vmatprep.subr.mxu0 0.0
        %3007 = vmatpush1.msra.mxu0 0.0
        %3008 = vmatprep.subr.mxu0 0.0
        %3009 = vmatpush1.msra.mxu0 0.0
        %3010 = vmatprep.subr.mxu0 0.0
        %3011 = vmatpush1.msra.mxu0 0.0
        %3012 = vmatprep.subr.mxu0 0.0
        %3013 = vmatpush1.msra.mxu0 0.0
        %3014 = vmatprep.subr.mxu0 0.0
        %3015 = vmatpush1.msra.mxu0 0.0
        %3016 = vmatprep.subr.mxu0 0.0
        %3017 = vmatpush1.msra.mxu0 0.0
        %3018 = vmatprep.subr.mxu0 0.0
        %3019 = vmatpush1.msra.mxu0 0.0
        %3020 = vmatprep.subr.mxu0 0.0
        %3021 = vmatpush1.msra.mxu0 0.0
        %3022 = vmatprep.subr.mxu0 0.0
        %3023 = vmatpush1.msra.mxu0 0.0
        %3024 = vmatprep.subr.mxu0 0.0
        %3025 = vmatpush1.msra.mxu0 0.0
        %3026 = vmatprep.subr.mxu0 0.0
        %3027 = vmatpush1.msra.mxu0 0.0
        %3028 = vmatprep.subr.mxu0 0.0
        %3029 = vmatpush1.msra.mxu0 0.0
        %3030 = vmatprep.subr.mxu0 0.0
        %3031 = vmatpush1.msra.mxu0 0.0
        %3032 = vmatprep.subr.mxu0 0.0
        %3033 = vmatpush1.msra.mxu0 0.0
        %3034 = vmatprep.subr.mxu0 0.0
        %3035 = vmatpush1.msra.mxu0 0.0
        %3036 = vmatprep.subr.mxu0 0.0
        %3037 = vmatpush1.msra.mxu0 0.0
        %3038 = vmatprep.subr.mxu0 0.0
        %3039 = vmatpush1.msra.mxu0 0.0
        %3040 = vmatprep.subr.mxu0 0.0
        %3041 = vmatpush1.msra.mxu0 0.0
        %3042 = vmatprep.subr.mxu0 0.0
        %3043 = vmatpush1.msra.mxu0 0.0
        %3044 = vmatprep.subr.mxu0 0.0
        %3045 = vmatpush1.msra.mxu0 0.0
        %3046 = vmatprep.subr.mxu0 0.0
        %3047 = vmatpush1.msra.mxu0 0.0
        %3048 = vmatprep.subr.mxu0 0.0
        %3049 = vmatpush1.msra.mxu0 0.0
        %3050 = vmatprep.subr.mxu0 0.0
        %3051 = vmatpush1.msra.mxu0 0.0
        %3052 = vmatprep.mubr.f32.mxu0 0.0
        %3053 = vmatmul.mubr.f32.gmra.mrb[0].mxu0 %v2724
        %v3054 = vpop.f32.mrb[0].mxu0
        %v3055 = vadd.f32 %v2720, %v3054
        %v3056 = vpop.f32.mrb[0].mxu0
        %v3057 = vadd.f32 %v2720, %v3056
        %3058 = vdwg.mxu0
        %3059 = vmatprep.subr.mxu0 %v2645
        %3060 = vmatpush1.msra.mxu0 %v2644
        %3061 = vmatprep.subr.mxu0 %v2661
        %3062 = vmatpush1.msra.mxu0 %v2660
        %3063 = vmatprep.subr.mxu0 %v2677
        %3064 = vmatpush1.msra.mxu0 %v2676
        %3065 = vmatprep.subr.mxu0 %v2693
        %3066 = vmatpush1.msra.mxu0 %v2692
        %3067 = vmatprep.subr.mxu0 %v2755
        %3068 = vmatpush1.msra.mxu0 %v2752
        %3069 = vmatprep.subr.mxu0 0.0
        %3070 = vmatpush1.msra.mxu0 0.0
        %3071 = vmatprep.subr.mxu0 0.0
        %3072 = vmatpush1.msra.mxu0 0.0
        %3073 = vmatprep.subr.mxu0 0.0
        %3074 = vmatpush1.msra.mxu0 0.0
        %3075 = vmatprep.subr.mxu0 0.0
        %3076 = vmatpush1.msra.mxu0 0.0
        %3077 = vmatprep.subr.mxu0 0.0
        %3078 = vmatpush1.msra.mxu0 0.0
        %3079 = vmatprep.subr.mxu0 0.0
        %3080 = vmatpush1.msra.mxu0 0.0
        %3081 = vmatprep.subr.mxu0 0.0
        %3082 = vmatpush1.msra.mxu0 0.0
        %3083 = vmatprep.subr.mxu0 0.0
        %3084 = vmatpush1.msra.mxu0 0.0
        %3085 = vmatprep.subr.mxu0 0.0
        %3086 = vmatpush1.msra.mxu0 0.0
        %3087 = vmatprep.subr.mxu0 0.0
        %3088 = vmatpush1.msra.mxu0 0.0
        %3089 = vmatprep.subr.mxu0 0.0
        %3090 = vmatpush1.msra.mxu0 0.0
        %3091 = vmatprep.subr.mxu0 0.0
        %3092 = vmatpush1.msra.mxu0 0.0
        %3093 = vmatprep.subr.mxu0 0.0
        %3094 = vmatpush1.msra.mxu0 0.0
        %3095 = vmatprep.subr.mxu0 0.0
        %3096 = vmatpush1.msra.mxu0 0.0
        %3097 = vmatprep.subr.mxu0 0.0
        %3098 = vmatpush1.msra.mxu0 0.0
        %3099 = vmatprep.subr.mxu0 0.0
        %3100 = vmatpush1.msra.mxu0 0.0
        %3101 = vmatprep.subr.mxu0 0.0
        %3102 = vmatpush1.msra.mxu0 0.0
        %3103 = vmatprep.subr.mxu0 0.0
        %3104 = vmatpush1.msra.mxu0 0.0
        %3105 = vmatprep.subr.mxu0 0.0
        %3106 = vmatpush1.msra.mxu0 0.0
        %3107 = vmatprep.subr.mxu0 0.0
        %3108 = vmatpush1.msra.mxu0 0.0
        %3109 = vmatprep.subr.mxu0 0.0
        %3110 = vmatpush1.msra.mxu0 0.0
        %3111 = vmatprep.subr.mxu0 0.0
        %3112 = vmatpush1.msra.mxu0 0.0
        %3113 = vmatprep.subr.mxu0 0.0
        %3114 = vmatpush1.msra.mxu0 0.0
        %3115 = vmatprep.subr.mxu0 0.0
        %3116 = vmatpush1.msra.mxu0 0.0
        %3117 = vmatprep.subr.mxu0 0.0
        %3118 = vmatpush1.msra.mxu0 0.0
        %3119 = vmatprep.subr.mxu0 0.0
        %3120 = vmatpush1.msra.mxu0 0.0
        %3121 = vmatprep.subr.mxu0 0.0
        %3122 = vmatpush1.msra.mxu0 0.0
        %3123 = vmatprep.mubr.f32.mxu0 0.0
        %3124 = vmatmul.mubr.f32.gmra.mrb[0].mxu0 %v2724
        %v3125 = vpop.f32.mrb[0].mxu0
        %v3126 = vadd.f32 %v2720, %v3125
        %v3127 = vpop.f32.mrb[0].mxu0
        %v3128 = vadd.f32 %v2720, %v3127
        %3129 = vdwg.mxu0
        %3130 = vmatprep.subr.mxu0 %v2647
        %3131 = vmatpush1.msra.mxu0 %v2646
        %3132 = vmatprep.subr.mxu0 %v2663
        %3133 = vmatpush1.msra.mxu0 %v2662
        %3134 = vmatprep.subr.mxu0 %v2679
        %3135 = vmatpush1.msra.mxu0 %v2678
        %3136 = vmatprep.subr.mxu0 %v2695
        %3137 = vmatpush1.msra.mxu0 %v2694
        %3138 = vmatprep.subr.mxu0 %v2761
        %3139 = vmatpush1.msra.mxu0 %v2758
        %3140 = vmatprep.subr.mxu0 0.0
        %3141 = vmatpush1.msra.mxu0 0.0
        %3142 = vmatprep.subr.mxu0 0.0
        %3143 = vmatpush1.msra.mxu0 0.0
        %3144 = vmatprep.subr.mxu0 0.0
        %3145 = vmatpush1.msra.mxu0 0.0
        %3146 = vmatprep.subr.mxu0 0.0
        %3147 = vmatpush1.msra.mxu0 0.0
        %3148 = vmatprep.subr.mxu0 0.0
        %3149 = vmatpush1.msra.mxu0 0.0
        %3150 = vmatprep.subr.mxu0 0.0
        %3151 = vmatpush1.msra.mxu0 0.0
        %3152 = vmatprep.subr.mxu0 0.0
        %3153 = vmatpush1.msra.mxu0 0.0
        %3154 = vmatprep.subr.mxu0 0.0
        %3155 = vmatpush1.msra.mxu0 0.0
        %3156 = vmatprep.subr.mxu0 0.0
        %3157 = vmatpush1.msra.mxu0 0.0
        %3158 = vmatprep.subr.mxu0 0.0
        %3159 = vmatpush1.msra.mxu0 0.0
        %3160 = vmatprep.subr.mxu0 0.0
        %3161 = vmatpush1.msra.mxu0 0.0
        %3162 = vmatprep.subr.mxu0 0.0
        %3163 = vmatpush1.msra.mxu0 0.0
        %3164 = vmatprep.subr.mxu0 0.0
        %3165 = vmatpush1.msra.mxu0 0.0
        %3166 = vmatprep.subr.mxu0 0.0
        %3167 = vmatpush1.msra.mxu0 0.0
        %3168 = vmatprep.subr.mxu0 0.0
        %3169 = vmatpush1.msra.mxu0 0.0
        %3170 = vmatprep.subr.mxu0 0.0
        %3171 = vmatpush1.msra.mxu0 0.0
        %3172 = vmatprep.subr.mxu0 0.0
        %3173 = vmatpush1.msra.mxu0 0.0
        %3174 = vmatprep.subr.mxu0 0.0
        %3175 = vmatpush1.msra.mxu0 0.0
        %3176 = vmatprep.subr.mxu0 0.0
        %3177 = vmatpush1.msra.mxu0 0.0
        %3178 = vmatprep.subr.mxu0 0.0
        %3179 = vmatpush1.msra.mxu0 0.0
        %3180 = vmatprep.subr.mxu0 0.0
        %3181 = vmatpush1.msra.mxu0 0.0
        %3182 = vmatprep.subr.mxu0 0.0
        %3183 = vmatpush1.msra.mxu0 0.0
        %3184 = vmatprep.subr.mxu0 0.0
        %3185 = vmatpush1.msra.mxu0 0.0
        %3186 = vmatprep.subr.mxu0 0.0
        %3187 = vmatpush1.msra.mxu0 0.0
        %3188 = vmatprep.subr.mxu0 0.0
        %3189 = vmatpush1.msra.mxu0 0.0
        %3190 = vmatprep.subr.mxu0 0.0
        %3191 = vmatpush1.msra.mxu0 0.0
        %3192 = vmatprep.subr.mxu0 0.0
        %3193 = vmatpush1.msra.mxu0 0.0
        %3194 = vmatprep.mubr.f32.mxu0 0.0
        %3195 = vmatmul.mubr.f32.gmra.mrb[0].mxu0 %v2724
        %v3196 = vpop.f32.mrb[0].mxu0
        %v3197 = vadd.f32 %v2720, %v3196
        %v3198 = vpop.f32.mrb[0].mxu0
        %v3199 = vadd.f32 %v2720, %v3198
        %3200 = vdwg.mxu0
        %3201 = vmatprep.subr.mxu0 %v2649
        %3202 = vmatpush1.msra.mxu0 %v2648
        %3203 = vmatprep.subr.mxu0 %v2665
        %3204 = vmatpush1.msra.mxu0 %v2664
        %3205 = vmatprep.subr.mxu0 %v2681
        %3206 = vmatpush1.msra.mxu0 %v2680
        %3207 = vmatprep.subr.mxu0 %v2697
        %3208 = vmatpush1.msra.mxu0 %v2696
        %3209 = vmatprep.subr.mxu0 %v2767
        %3210 = vmatpush1.msra.mxu0 %v2764
        %3211 = vmatprep.subr.mxu0 0.0
        %3212 = vmatpush1.msra.mxu0 0.0
        %3213 = vmatprep.subr.mxu0 0.0
        %3214 = vmatpush1.msra.mxu0 0.0
        %3215 = vmatprep.subr.mxu0 0.0
        %3216 = vmatpush1.msra.mxu0 0.0
        %3217 = vmatprep.subr.mxu0 0.0
        %3218 = vmatpush1.msra.mxu0 0.0
        %3219 = vmatprep.subr.mxu0 0.0
        %3220 = vmatpush1.msra.mxu0 0.0
        %3221 = vmatprep.subr.mxu0 0.0
        %3222 = vmatpush1.msra.mxu0 0.0
        %3223 = vmatprep.subr.mxu0 0.0
        %3224 = vmatpush1.msra.mxu0 0.0
        %3225 = vmatprep.subr.mxu0 0.0
        %3226 = vmatpush1.msra.mxu0 0.0
        %3227 = vmatprep.subr.mxu0 0.0
        %3228 = vmatpush1.msra.mxu0 0.0
        %3229 = vmatprep.subr.mxu0 0.0
        %3230 = vmatpush1.msra.mxu0 0.0
        %3231 = vmatprep.subr.mxu0 0.0
        %3232 = vmatpush1.msra.mxu0 0.0
        %3233 = vmatprep.subr.mxu0 0.0
        %3234 = vmatpush1.msra.mxu0 0.0
        %3235 = vmatprep.subr.mxu0 0.0
        %3236 = vmatpush1.msra.mxu0 0.0
        %3237 = vmatprep.subr.mxu0 0.0
        %3238 = vmatpush1.msra.mxu0 0.0
        %3239 = vmatprep.subr.mxu0 0.0
        %3240 = vmatpush1.msra.mxu0 0.0
        %3241 = vmatprep.subr.mxu0 0.0
        %3242 = vmatpush1.msra.mxu0 0.0
        %3243 = vmatprep.subr.mxu0 0.0
        %3244 = vmatpush1.msra.mxu0 0.0
        %3245 = vmatprep.subr.mxu0 0.0
        %3246 = vmatpush1.msra.mxu0 0.0
        %3247 = vmatprep.subr.mxu0 0.0
        %3248 = vmatpush1.msra.mxu0 0.0
        %3249 = vmatprep.subr.mxu0 0.0
        %3250 = vmatpush1.msra.mxu0 0.0
        %3251 = vmatprep.subr.mxu0 0.0
        %3252 = vmatpush1.msra.mxu0 0.0
        %3253 = vmatprep.subr.mxu0 0.0
        %3254 = vmatpush1.msra.mxu0 0.0
        %3255 = vmatprep.subr.mxu0 0.0
        %3256 = vmatpush1.msra.mxu0 0.0
        %3257 = vmatprep.subr.mxu0 0.0
        %3258 = vmatpush1.msra.mxu0 0.0
        %3259 = vmatprep.subr.mxu0 0.0
        %3260 = vmatpush1.msra.mxu0 0.0
        %3261 = vmatprep.subr.mxu0 0.0
        %3262 = vmatpush1.msra.mxu0 0.0
        %3263 = vmatprep.subr.mxu0 0.0
        %3264 = vmatpush1.msra.mxu0 0.0
        %3265 = vmatprep.mubr.f32.mxu0 0.0
        %3266 = vmatmul.mubr.f32.gmra.mrb[0].mxu0 %v2724
        %v3267 = vpop.f32.mrb[0].mxu0
        %v3268 = vadd.f32 %v2720, %v3267
        %v3269 = vpop.f32.mrb[0].mxu0
        %v3270 = vadd.f32 %v2720, %v3269
        %3271 = vdwg.mxu0
        %3272 = vmatprep.subr.mxu0 %v2651
        %3273 = vmatpush1.msra.mxu0 %v2650
        %3274 = vmatprep.subr.mxu0 %v2667
        %3275 = vmatpush1.msra.mxu0 %v2666
        %3276 = vmatprep.subr.mxu0 %v2683
        %3277 = vmatpush1.msra.mxu0 %v2682
        %3278 = vmatprep.subr.mxu0 %v2699
        %3279 = vmatpush1.msra.mxu0 %v2698
        %3280 = vmatprep.subr.mxu0 %v2773
        %3281 = vmatpush1.msra.mxu0 %v2770
        %3282 = vmatprep.subr.mxu0 0.0
        %3283 = vmatpush1.msra.mxu0 0.0
        %3284 = vmatprep.subr.mxu0 0.0
        %3285 = vmatpush1.msra.mxu0 0.0
        %3286 = vmatprep.subr.mxu0 0.0
        %3287 = vmatpush1.msra.mxu0 0.0
        %3288 = vmatprep.subr.mxu0 0.0
        %3289 = vmatpush1.msra.mxu0 0.0
        %3290 = vmatprep.subr.mxu0 0.0
        %3291 = vmatpush1.msra.mxu0 0.0
        %3292 = vmatprep.subr.mxu0 0.0
        %3293 = vmatpush1.msra.mxu0 0.0
        %3294 = vmatprep.subr.mxu0 0.0
        %3295 = vmatpush1.msra.mxu0 0.0
        %3296 = vmatprep.subr.mxu0 0.0
        %3297 = vmatpush1.msra.mxu0 0.0
        %3298 = vmatprep.subr.mxu0 0.0
        %3299 = vmatpush1.msra.mxu0 0.0
        %3300 = vmatprep.subr.mxu0 0.0
        %3301 = vmatpush1.msra.mxu0 0.0
        %3302 = vmatprep.subr.mxu0 0.0
        %3303 = vmatpush1.msra.mxu0 0.0
        %3304 = vmatprep.subr.mxu0 0.0
        %3305 = vmatpush1.msra.mxu0 0.0
        %3306 = vmatprep.subr.mxu0 0.0
        %3307 = vmatpush1.msra.mxu0 0.0
        %3308 = vmatprep.subr.mxu0 0.0
        %3309 = vmatpush1.msra.mxu0 0.0
        %3310 = vmatprep.subr.mxu0 0.0
        %3311 = vmatpush1.msra.mxu0 0.0
        %3312 = vmatprep.subr.mxu0 0.0
        %3313 = vmatpush1.msra.mxu0 0.0
        %3314 = vmatprep.subr.mxu0 0.0
        %3315 = vmatpush1.msra.mxu0 0.0
        %3316 = vmatprep.subr.mxu0 0.0
        %3317 = vmatpush1.msra.mxu0 0.0
        %3318 = vmatprep.subr.mxu0 0.0
        %3319 = vmatpush1.msra.mxu0 0.0
        %3320 = vmatprep.subr.mxu0 0.0
        %3321 = vmatpush1.msra.mxu0 0.0
        %3322 = vmatprep.subr.mxu0 0.0
        %3323 = vmatpush1.msra.mxu0 0.0
        %3324 = vmatprep.subr.mxu0 0.0
        %3325 = vmatpush1.msra.mxu0 0.0
        %3326 = vmatprep.subr.mxu0 0.0
        %3327 = vmatpush1.msra.mxu0 0.0
        %3328 = vmatprep.subr.mxu0 0.0
        %3329 = vmatpush1.msra.mxu0 0.0
        %3330 = vmatprep.subr.mxu0 0.0
        %3331 = vmatpush1.msra.mxu0 0.0
        %3332 = vmatprep.subr.mxu0 0.0
        %3333 = vmatpush1.msra.mxu0 0.0
        %3334 = vmatprep.subr.mxu0 0.0
        %3335 = vmatpush1.msra.mxu0 0.0
        %3336 = vmatprep.mubr.f32.mxu0 0.0
        %3337 = vmatmul.mubr.f32.gmra.mrb[0].mxu0 %v2724
        %v3338 = vpop.f32.mrb[0].mxu0
        %v3339 = vadd.f32 %v2720, %v3338
        %v3340 = vpop.f32.mrb[0].mxu0
        %v3341 = vadd.f32 %v2720, %v3340
        %3342 = vdwg.mxu0
        %v3343 = vmax.f32 %v2842, 0.0
        %v3344 = vmax.f32 %v2844, 0.0
        %v3345 = vmax.f32 %v2913, 0.0
        %v3346 = vmax.f32 %v2915, 0.0
        %v3347 = vmax.f32 %v2984, 0.0
        %v3348 = vmax.f32 %v2986, 0.0
        %v3349 = vmax.f32 %v3055, 0.0
        %v3350 = vmax.f32 %v3057, 0.0
        %v3351 = vmax.f32 %v3126, 0.0
        %v3352 = vmax.f32 %v3128, 0.0
        %v3353 = vmax.f32 %v3197, 0.0
        %v3354 = vmax.f32 %v3199, 0.0
        %v3355 = vmax.f32 %v3268, 0.0
        %v3356 = vmax.f32 %v3270, 0.0
        %v3357 = vmax.f32 %v3339, 0.0
        %v3358 = vmax.f32 %v3341, 0.0
        %3359 = vrot.lane.b32.xlu0 %v3343, 17
        %v3360 = vpop.permute.xlu0 %3359
        %3361 = vrot.lane.b32.xlu0 %v3344, 17
        %v3362 = vpop.permute.xlu0 %3361
        %3363 = vrot.lane.b32.xlu0 %v3345, 17
        %v3364 = vpop.permute.xlu0 %3363
        %3365 = vrot.lane.b32.xlu0 %v3346, 17
        %v3366 = vpop.permute.xlu0 %3365
        %3367 = vrot.lane.b32.xlu0 %v3347, 17
        %v3368 = vpop.permute.xlu0 %3367
        %3369 = vrot.lane.b32.xlu0 %v3348, 17
        %v3370 = vpop.permute.xlu0 %3369
        %3371 = vrot.lane.b32.xlu0 %v3349, 17
        %v3372 = vpop.permute.xlu0 %3371
        %3373 = vrot.lane.b32.xlu0 %v3350, 17
        %v3374 = vpop.permute.xlu0 %3373
        %3375 = vrot.lane.b32.xlu0 %v3351, 17
        %v3376 = vpop.permute.xlu0 %3375
        %3377 = vrot.lane.b32.xlu0 %v3352, 17
        %v3378 = vpop.permute.xlu0 %3377
        %3379 = vrot.lane.b32.xlu0 %v3353, 17
        %v3380 = vpop.permute.xlu0 %3379
        %3381 = vrot.lane.b32.xlu0 %v3354, 17
        %v3382 = vpop.permute.xlu0 %3381
        %3383 = vrot.lane.b32.xlu0 %v3355, 17
        %v3384 = vpop.permute.xlu0 %3383
        %3385 = vrot.lane.b32.xlu0 %v3356, 17
        %v3386 = vpop.permute.xlu0 %3385
        %3387 = vrot.lane.b32.xlu0 %v3357, 17
        %v3388 = vpop.permute.xlu0 %3387
        %3389 = vrot.lane.b32.xlu0 %v3358, 17
        %v3390 = vpop.permute.xlu0 %3389
        %v3391 = vsel %vm1155, %v3388, %v3390
        %v3392 = vsel %vm1155, %v3386, %v3388
        %v3393 = vsel %vm1155, %v3384, %v3386
        %v3394 = vsel %vm1155, %v3382, %v3384
        %v3395 = vsel %vm1155, %v3380, %v3382
        %v3396 = vsel %vm1155, %v3378, %v3380
        %v3397 = vsel %vm1155, %v3376, %v3378
        %v3398 = vsel %vm1155, %v3374, %v3376
        %v3399 = vsel %vm1155, %v3372, %v3374
        %v3400 = vsel %vm1155, %v3370, %v3372
        %v3401 = vsel %vm1155, %v3368, %v3370
        %v3402 = vsel %vm1155, %v3366, %v3368
        %v3403 = vsel %vm1155, %v3364, %v3366
        %v3404 = vsel %vm1155, %v3362, %v3364
        %v3405 = vsel %vm1155, %v3360, %v3362
        %v3406 = vsel %vm1155, %v3390, %v3360
        %v3407 = vmul.f32 %v3406, %v1177
        %v3408 = vmul.f32 %v3405, %v1181
        %v3409 = vmul.f32 %v3404, %v1185
        %v3410 = vmul.f32 %v3403, %v1189
        %v3411 = vmul.f32 %v3402, %v1193
        %v3412 = vmul.f32 %v3401, %v1197
        %v3413 = vmul.f32 %v3400, %v1201
        %v3414 = vmul.f32 %v3399, %v1205
        %v3415 = vmul.f32 %v3398, %v1209
        %v3416 = vmul.f32 %v3397, %v1213
        %v3417 = vmul.f32 %v3396, %v1217
        %v3418 = vmul.f32 %v3395, %v1221
        %v3419 = vmul.f32 %v3394, %v1225
        %v3420 = vmul.f32 %v3393, %v1229
        %v3421 = vmul.f32 %v3392, %v1233
        %v3422 = vmul.f32 %v3391, %v1237
        %3423 = vst [vmem:[#allocation4] sm:$0xf] %v3407
        %3424 = vst [vmem:[#allocation4 + $0x8] sm:$0xf] %v3408
        %3425 = vst [vmem:[#allocation4 + $0x10] sm:$0xf] %v3409
        %3426 = vst [vmem:[#allocation4 + $0x18] sm:$0xf] %v3410
        %3427 = vst [vmem:[#allocation4 + $0x20] sm:$0xf] %v3411
        %3428 = vst [vmem:[#allocation4 + $0x28] sm:$0xf] %v3412
        %3429 = vst [vmem:[#allocation4 + $0x30] sm:$0xf] %v3413
        %3430 = vst [vmem:[#allocation4 + $0x38] sm:$0xf] %v3414
        %v3439 = vrot.slane %v3415, 4
        %v3440 = vrot.slane %v3416, 4
        %v3441 = vrot.slane %v3417, 4
        %v3442 = vrot.slane %v3418, 4
        %v3443 = vrot.slane %v3419, 4
        %v3444 = vrot.slane %v3420, 4
        %v3445 = vrot.slane %v3421, 4
        %v3446 = vrot.slane %v3422, 4
        %3455 = vst [vmem:[#allocation4] sm:$0xf0] %v3439
        %3456 = vst [vmem:[#allocation4 + $0x8] sm:$0xf0] %v3440
        %3457 = vst [vmem:[#allocation4 + $0x10] sm:$0xf0] %v3441
        %3458 = vst [vmem:[#allocation4 + $0x18] sm:$0xf0] %v3442
        %3459 = vst [vmem:[#allocation4 + $0x20] sm:$0xf0] %v3443
        %3460 = vst [vmem:[#allocation4 + $0x28] sm:$0xf0] %v3444
        %3461 = vst [vmem:[#allocation4 + $0x30] sm:$0xf0] %v3445
        %3462 = vst [vmem:[#allocation4 + $0x38] sm:$0xf0] %v3446
        %3463 = vrot.lane.b32.xlu0 %v3343, 16
        %v3464 = vpop.permute.xlu0 %3463
        %3465 = vrot.lane.b32.xlu0 %v3344, 16
        %v3466 = vpop.permute.xlu0 %3465
        %3467 = vrot.lane.b32.xlu0 %v3345, 16
        %v3468 = vpop.permute.xlu0 %3467
        %3469 = vrot.lane.b32.xlu0 %v3346, 16
        %v3470 = vpop.permute.xlu0 %3469
        %3471 = vrot.lane.b32.xlu0 %v3347, 16
        %v3472 = vpop.permute.xlu0 %3471
        %3473 = vrot.lane.b32.xlu0 %v3348, 16
        %v3474 = vpop.permute.xlu0 %3473
        %3475 = vrot.lane.b32.xlu0 %v3349, 16
        %v3476 = vpop.permute.xlu0 %3475
        %3477 = vrot.lane.b32.xlu0 %v3350, 16
        %v3478 = vpop.permute.xlu0 %3477
        %3479 = vrot.lane.b32.xlu0 %v3351, 16
        %v3480 = vpop.permute.xlu0 %3479
        %3481 = vrot.lane.b32.xlu0 %v3352, 16
        %v3482 = vpop.permute.xlu0 %3481
        %3483 = vrot.lane.b32.xlu0 %v3353, 16
        %v3484 = vpop.permute.xlu0 %3483
        %3485 = vrot.lane.b32.xlu0 %v3354, 16
        %v3486 = vpop.permute.xlu0 %3485
        %3487 = vrot.lane.b32.xlu0 %v3355, 16
        %v3488 = vpop.permute.xlu0 %3487
        %3489 = vrot.lane.b32.xlu0 %v3356, 16
        %v3490 = vpop.permute.xlu0 %3489
        %3491 = vrot.lane.b32.xlu0 %v3357, 16
        %v3492 = vpop.permute.xlu0 %3491
        %3493 = vrot.lane.b32.xlu0 %v3358, 16
        %v3494 = vpop.permute.xlu0 %3493
        %v3495 = vsel %vm1318, %v3492, %v3494
        %v3496 = vsel %vm1318, %v3490, %v3492
        %v3497 = vsel %vm1318, %v3488, %v3490
        %v3498 = vsel %vm1318, %v3486, %v3488
        %v3499 = vsel %vm1318, %v3484, %v3486
        %v3500 = vsel %vm1318, %v3482, %v3484
        %v3501 = vsel %vm1318, %v3480, %v3482
        %v3502 = vsel %vm1318, %v3478, %v3480
        %v3503 = vsel %vm1318, %v3476, %v3478
        %v3504 = vsel %vm1318, %v3474, %v3476
        %v3505 = vsel %vm1318, %v3472, %v3474
        %v3506 = vsel %vm1318, %v3470, %v3472
        %v3507 = vsel %vm1318, %v3468, %v3470
        %v3508 = vsel %vm1318, %v3466, %v3468
        %v3509 = vsel %vm1318, %v3464, %v3466
        %v3510 = vsel %vm1318, %v3494, %v3464
        %v3511 = vmul.f32 %v3510, %v1340
        %v3512 = vmul.f32 %v3509, %v1344
        %v3513 = vmul.f32 %v3508, %v1348
        %v3514 = vmul.f32 %v3507, %v1352
        %v3515 = vmul.f32 %v3506, %v1356
        %v3516 = vmul.f32 %v3505, %v1360
        %v3517 = vmul.f32 %v3504, %v1364
        %v3518 = vmul.f32 %v3503, %v1368
        %v3519 = vmul.f32 %v3502, %v1372
        %v3520 = vmul.f32 %v3501, %v1376
        %v3521 = vmul.f32 %v3500, %v1380
        %v3522 = vmul.f32 %v3499, %v1384
        %v3523 = vmul.f32 %v3498, %v1388
        %v3524 = vmul.f32 %v3497, %v1392
        %v3525 = vmul.f32 %v3496, %v1396
        %v3526 = vmul.f32 %v3495, %v1400
        %3527 = vst [vmem:[#allocation4 + $0x40] sm:$0xf] %v3511
        %3528 = vst [vmem:[#allocation4 + $0x48] sm:$0xf] %v3512
        %3529 = vst [vmem:[#allocation4 + $0x50] sm:$0xf] %v3513
        %3530 = vst [vmem:[#allocation4 + $0x58] sm:$0xf] %v3514
        %3531 = vst [vmem:[#allocation4 + $0x60] sm:$0xf] %v3515
        %3532 = vst [vmem:[#allocation4 + $0x68] sm:$0xf] %v3516
        %3533 = vst [vmem:[#allocation4 + $0x70] sm:$0xf] %v3517
        %3534 = vst [vmem:[#allocation4 + $0x78] sm:$0xf] %v3518
        %v3543 = vrot.slane %v3519, 4
        %v3544 = vrot.slane %v3520, 4
        %v3545 = vrot.slane %v3521, 4
        %v3546 = vrot.slane %v3522, 4
        %v3547 = vrot.slane %v3523, 4
        %v3548 = vrot.slane %v3524, 4
        %v3549 = vrot.slane %v3525, 4
        %v3550 = vrot.slane %v3526, 4
        %3559 = vst [vmem:[#allocation4 + $0x40] sm:$0xf0] %v3543
        %3560 = vst [vmem:[#allocation4 + $0x48] sm:$0xf0] %v3544
        %3561 = vst [vmem:[#allocation4 + $0x50] sm:$0xf0] %v3545
        %3562 = vst [vmem:[#allocation4 + $0x58] sm:$0xf0] %v3546
        %3563 = vst [vmem:[#allocation4 + $0x60] sm:$0xf0] %v3547
        %3564 = vst [vmem:[#allocation4 + $0x68] sm:$0xf0] %v3548
        %3565 = vst [vmem:[#allocation4 + $0x70] sm:$0xf0] %v3549
        %3566 = vst [vmem:[#allocation4 + $0x78] sm:$0xf0] %v3550
        %3567 = vrot.lane.b32.xlu0 %v3343, 15
        %v3568 = vpop.permute.xlu0 %3567
        %3569 = vrot.lane.b32.xlu0 %v3344, 15
        %v3570 = vpop.permute.xlu0 %3569
        %3571 = vrot.lane.b32.xlu0 %v3345, 15
        %v3572 = vpop.permute.xlu0 %3571
        %3573 = vrot.lane.b32.xlu0 %v3346, 15
        %v3574 = vpop.permute.xlu0 %3573
        %3575 = vrot.lane.b32.xlu0 %v3347, 15
        %v3576 = vpop.permute.xlu0 %3575
        %3577 = vrot.lane.b32.xlu0 %v3348, 15
        %v3578 = vpop.permute.xlu0 %3577
        %3579 = vrot.lane.b32.xlu0 %v3349, 15
        %v3580 = vpop.permute.xlu0 %3579
        %3581 = vrot.lane.b32.xlu0 %v3350, 15
        %v3582 = vpop.permute.xlu0 %3581
        %3583 = vrot.lane.b32.xlu0 %v3351, 15
        %v3584 = vpop.permute.xlu0 %3583
        %3585 = vrot.lane.b32.xlu0 %v3352, 15
        %v3586 = vpop.permute.xlu0 %3585
        %3587 = vrot.lane.b32.xlu0 %v3353, 15
        %v3588 = vpop.permute.xlu0 %3587
        %3589 = vrot.lane.b32.xlu0 %v3354, 15
        %v3590 = vpop.permute.xlu0 %3589
        %3591 = vrot.lane.b32.xlu0 %v3355, 15
        %v3592 = vpop.permute.xlu0 %3591
        %3593 = vrot.lane.b32.xlu0 %v3356, 15
        %v3594 = vpop.permute.xlu0 %3593
        %3595 = vrot.lane.b32.xlu0 %v3357, 15
        %v3596 = vpop.permute.xlu0 %3595
        %3597 = vrot.lane.b32.xlu0 %v3358, 15
        %v3598 = vpop.permute.xlu0 %3597
        %v3599 = vsel %vm1529, %v3596, %v3598
        %v3600 = vsel %vm1529, %v3594, %v3596
        %v3601 = vsel %vm1529, %v3592, %v3594
        %v3602 = vsel %vm1529, %v3590, %v3592
        %v3603 = vsel %vm1529, %v3588, %v3590
        %v3604 = vsel %vm1529, %v3586, %v3588
        %v3605 = vsel %vm1529, %v3584, %v3586
        %v3606 = vsel %vm1529, %v3582, %v3584
        %v3607 = vsel %vm1529, %v3580, %v3582
        %v3608 = vsel %vm1529, %v3578, %v3580
        %v3609 = vsel %vm1529, %v3576, %v3578
        %v3610 = vsel %vm1529, %v3574, %v3576
        %v3611 = vsel %vm1529, %v3572, %v3574
        %v3612 = vsel %vm1529, %v3570, %v3572
        %v3613 = vsel %vm1529, %v3568, %v3570
        %v3614 = vsel %vm1529, %v3598, %v3568
        %v3615 = vmul.f32 %v3614, %v1551
        %v3616 = vmul.f32 %v3613, %v1555
        %v3617 = vmul.f32 %v3612, %v1559
        %v3618 = vmul.f32 %v3611, %v1563
        %v3619 = vmul.f32 %v3610, %v1567
        %v3620 = vmul.f32 %v3609, %v1571
        %v3621 = vmul.f32 %v3608, %v1575
        %v3622 = vmul.f32 %v3607, %v1579
        %v3623 = vmul.f32 %v3606, %v1583
        %v3624 = vmul.f32 %v3605, %v1587
        %v3625 = vmul.f32 %v3604, %v1591
        %v3626 = vmul.f32 %v3603, %v1595
        %v3627 = vmul.f32 %v3602, %v1599
        %v3628 = vmul.f32 %v3601, %v1603
        %v3629 = vmul.f32 %v3600, %v1607
        %v3630 = vmul.f32 %v3599, %v1611
        %3631 = vst [vmem:[#allocation4 + $0x80] sm:$0xf] %v3615
        %3632 = vst [vmem:[#allocation4 + $0x88] sm:$0xf] %v3616
        %3633 = vst [vmem:[#allocation4 + $0x90] sm:$0xf] %v3617
        %3634 = vst [vmem:[#allocation4 + $0x98] sm:$0xf] %v3618
        %3635 = vst [vmem:[#allocation4 + $0xa0] sm:$0xf] %v3619
        %3636 = vst [vmem:[#allocation4 + $0xa8] sm:$0xf] %v3620
        %3637 = vst [vmem:[#allocation4 + $0xb0] sm:$0xf] %v3621
        %3638 = vst [vmem:[#allocation4 + $0xb8] sm:$0xf] %v3622
        %v3647 = vrot.slane %v3623, 4
        %v3648 = vrot.slane %v3624, 4
        %v3649 = vrot.slane %v3625, 4
        %v3650 = vrot.slane %v3626, 4
        %v3651 = vrot.slane %v3627, 4
        %v3652 = vrot.slane %v3628, 4
        %v3653 = vrot.slane %v3629, 4
        %v3654 = vrot.slane %v3630, 4
        %3663 = vst [vmem:[#allocation4 + $0x80] sm:$0xf0] %v3647
        %3664 = vst [vmem:[#allocation4 + $0x88] sm:$0xf0] %v3648
        %3665 = vst [vmem:[#allocation4 + $0x90] sm:$0xf0] %v3649
        %3666 = vst [vmem:[#allocation4 + $0x98] sm:$0xf0] %v3650
        %3667 = vst [vmem:[#allocation4 + $0xa0] sm:$0xf0] %v3651
        %3668 = vst [vmem:[#allocation4 + $0xa8] sm:$0xf0] %v3652
        %3669 = vst [vmem:[#allocation4 + $0xb0] sm:$0xf0] %v3653
        %3670 = vst [vmem:[#allocation4 + $0xb8] sm:$0xf0] %v3654
        %3671 = vrot.lane.b32.xlu0 %v3343, 1
        %v3672 = vpop.permute.xlu0 %3671
        %3673 = vrot.lane.b32.xlu0 %v3344, 1
        %v3674 = vpop.permute.xlu0 %3673
        %3675 = vrot.lane.b32.xlu0 %v3345, 1
        %v3676 = vpop.permute.xlu0 %3675
        %3677 = vrot.lane.b32.xlu0 %v3346, 1
        %v3678 = vpop.permute.xlu0 %3677
        %3679 = vrot.lane.b32.xlu0 %v3347, 1
        %v3680 = vpop.permute.xlu0 %3679
        %3681 = vrot.lane.b32.xlu0 %v3348, 1
        %v3682 = vpop.permute.xlu0 %3681
        %3683 = vrot.lane.b32.xlu0 %v3349, 1
        %v3684 = vpop.permute.xlu0 %3683
        %3685 = vrot.lane.b32.xlu0 %v3350, 1
        %v3686 = vpop.permute.xlu0 %3685
        %3687 = vrot.lane.b32.xlu0 %v3351, 1
        %v3688 = vpop.permute.xlu0 %3687
        %3689 = vrot.lane.b32.xlu0 %v3352, 1
        %v3690 = vpop.permute.xlu0 %3689
        %3691 = vrot.lane.b32.xlu0 %v3353, 1
        %v3692 = vpop.permute.xlu0 %3691
        %3693 = vrot.lane.b32.xlu0 %v3354, 1
        %v3694 = vpop.permute.xlu0 %3693
        %3695 = vrot.lane.b32.xlu0 %v3355, 1
        %v3696 = vpop.permute.xlu0 %3695
        %3697 = vrot.lane.b32.xlu0 %v3356, 1
        %v3698 = vpop.permute.xlu0 %3697
        %3699 = vrot.lane.b32.xlu0 %v3357, 1
        %v3700 = vpop.permute.xlu0 %3699
        %3701 = vrot.lane.b32.xlu0 %v3358, 1
        %v3702 = vpop.permute.xlu0 %3701
        %v3703 = vsel %vm1692, %v3700, %v3702
        %v3704 = vsel %vm1692, %v3698, %v3700
        %v3705 = vsel %vm1692, %v3696, %v3698
        %v3706 = vsel %vm1692, %v3694, %v3696
        %v3707 = vsel %vm1692, %v3692, %v3694
        %v3708 = vsel %vm1692, %v3690, %v3692
        %v3709 = vsel %vm1692, %v3688, %v3690
        %v3710 = vsel %vm1692, %v3686, %v3688
        %v3711 = vsel %vm1692, %v3684, %v3686
        %v3712 = vsel %vm1692, %v3682, %v3684
        %v3713 = vsel %vm1692, %v3680, %v3682
        %v3714 = vsel %vm1692, %v3678, %v3680
        %v3715 = vsel %vm1692, %v3676, %v3678
        %v3716 = vsel %vm1692, %v3674, %v3676
        %v3717 = vsel %vm1692, %v3672, %v3674
        %v3718 = vsel %vm1692, %v3702, %v3672
        %v3719 = vmul.f32 %v3718, %v1714
        %v3720 = vmul.f32 %v3717, %v1718
        %v3721 = vmul.f32 %v3716, %v1722
        %v3722 = vmul.f32 %v3715, %v1726
        %v3723 = vmul.f32 %v3714, %v1730
        %v3724 = vmul.f32 %v3713, %v1734
        %v3725 = vmul.f32 %v3712, %v1738
        %v3726 = vmul.f32 %v3711, %v1742
        %v3727 = vmul.f32 %v3710, %v1746
        %v3728 = vmul.f32 %v3709, %v1750
        %v3729 = vmul.f32 %v3708, %v1754
        %v3730 = vmul.f32 %v3707, %v1758
        %v3731 = vmul.f32 %v3706, %v1762
        %v3732 = vmul.f32 %v3705, %v1766
        %v3733 = vmul.f32 %v3704, %v1770
        %v3734 = vmul.f32 %v3703, %v1774
        %3735 = vst [vmem:[#allocation4 + $0xc0] sm:$0xf] %v3719
        %3736 = vst [vmem:[#allocation4 + $0xc8] sm:$0xf] %v3720
        %3737 = vst [vmem:[#allocation4 + $0xd0] sm:$0xf] %v3721
        %3738 = vst [vmem:[#allocation4 + $0xd8] sm:$0xf] %v3722
        %3739 = vst [vmem:[#allocation4 + $0xe0] sm:$0xf] %v3723
        %3740 = vst [vmem:[#allocation4 + $0xe8] sm:$0xf] %v3724
        %3741 = vst [vmem:[#allocation4 + $0xf0] sm:$0xf] %v3725
        %3742 = vst [vmem:[#allocation4 + $0xf8] sm:$0xf] %v3726
        %v3751 = vrot.slane %v3727, 4
        %v3752 = vrot.slane %v3728, 4
        %v3753 = vrot.slane %v3729, 4
        %v3754 = vrot.slane %v3730, 4
        %v3755 = vrot.slane %v3731, 4
        %v3756 = vrot.slane %v3732, 4
        %v3757 = vrot.slane %v3733, 4
        %v3758 = vrot.slane %v3734, 4
        %3767 = vst [vmem:[#allocation4 + $0xc0] sm:$0xf0] %v3751
        %3768 = vst [vmem:[#allocation4 + $0xc8] sm:$0xf0] %v3752
        %3769 = vst [vmem:[#allocation4 + $0xd0] sm:$0xf0] %v3753
        %3770 = vst [vmem:[#allocation4 + $0xd8] sm:$0xf0] %v3754
        %3771 = vst [vmem:[#allocation4 + $0xe0] sm:$0xf0] %v3755
        %3772 = vst [vmem:[#allocation4 + $0xe8] sm:$0xf0] %v3756
        %3773 = vst [vmem:[#allocation4 + $0xf0] sm:$0xf0] %v3757
        %3774 = vst [vmem:[#allocation4 + $0xf8] sm:$0xf0] %v3758
        %3775 = vst [vmem:[#allocation4 + $0x100] sm:$0xf] %v3343
        %3776 = vst [vmem:[#allocation4 + $0x108] sm:$0xf] %v3344
        %3777 = vst [vmem:[#allocation4 + $0x110] sm:$0xf] %v3345
        %3778 = vst [vmem:[#allocation4 + $0x118] sm:$0xf] %v3346
        %3779 = vst [vmem:[#allocation4 + $0x120] sm:$0xf] %v3347
        %3780 = vst [vmem:[#allocation4 + $0x128] sm:$0xf] %v3348
        %3781 = vst [vmem:[#allocation4 + $0x130] sm:$0xf] %v3349
        %3782 = vst [vmem:[#allocation4 + $0x138] sm:$0xf] %v3350
        %v3791 = vrot.slane %v3351, 4
        %v3792 = vrot.slane %v3352, 4
        %v3793 = vrot.slane %v3353, 4
        %v3794 = vrot.slane %v3354, 4
        %v3795 = vrot.slane %v3355, 4
        %v3796 = vrot.slane %v3356, 4
        %v3797 = vrot.slane %v3357, 4
        %v3798 = vrot.slane %v3358, 4
        %3807 = vst [vmem:[#allocation4 + $0x100] sm:$0xf0] %v3791
        %3808 = vst [vmem:[#allocation4 + $0x108] sm:$0xf0] %v3792
        %3809 = vst [vmem:[#allocation4 + $0x110] sm:$0xf0] %v3793
        %3810 = vst [vmem:[#allocation4 + $0x118] sm:$0xf0] %v3794
        %3811 = vst [vmem:[#allocation4 + $0x120] sm:$0xf0] %v3795
        %3812 = vst [vmem:[#allocation4 + $0x128] sm:$0xf0] %v3796
        %3813 = vst [vmem:[#allocation4 + $0x130] sm:$0xf0] %v3797
        %3814 = vst [vmem:[#allocation4 + $0x138] sm:$0xf0] %v3798
        %3815 = vrot.lane.b32.xlu0 %v3343, 127
        %v3816 = vpop.permute.xlu0 %3815
        %3817 = vrot.lane.b32.xlu0 %v3344, 127
        %v3818 = vpop.permute.xlu0 %3817
        %3819 = vrot.lane.b32.xlu0 %v3345, 127
        %v3820 = vpop.permute.xlu0 %3819
        %3821 = vrot.lane.b32.xlu0 %v3346, 127
        %v3822 = vpop.permute.xlu0 %3821
        %3823 = vrot.lane.b32.xlu0 %v3347, 127
        %v3824 = vpop.permute.xlu0 %3823
        %3825 = vrot.lane.b32.xlu0 %v3348, 127
        %v3826 = vpop.permute.xlu0 %3825
        %3827 = vrot.lane.b32.xlu0 %v3349, 127
        %v3828 = vpop.permute.xlu0 %3827
        %3829 = vrot.lane.b32.xlu0 %v3350, 127
        %v3830 = vpop.permute.xlu0 %3829
        %3831 = vrot.lane.b32.xlu0 %v3351, 127
        %v3832 = vpop.permute.xlu0 %3831
        %3833 = vrot.lane.b32.xlu0 %v3352, 127
        %v3834 = vpop.permute.xlu0 %3833
        %3835 = vrot.lane.b32.xlu0 %v3353, 127
        %v3836 = vpop.permute.xlu0 %3835
        %3837 = vrot.lane.b32.xlu0 %v3354, 127
        %v3838 = vpop.permute.xlu0 %3837
        %3839 = vrot.lane.b32.xlu0 %v3355, 127
        %v3840 = vpop.permute.xlu0 %3839
        %3841 = vrot.lane.b32.xlu0 %v3356, 127
        %v3842 = vpop.permute.xlu0 %3841
        %3843 = vrot.lane.b32.xlu0 %v3357, 127
        %v3844 = vpop.permute.xlu0 %3843
        %3845 = vrot.lane.b32.xlu0 %v3358, 127
        %v3846 = vpop.permute.xlu0 %3845
        %v3847 = vsel %vm1919, %v3844, %v3846
        %v3848 = vsel %vm1919, %v3842, %v3844
        %v3849 = vsel %vm1919, %v3840, %v3842
        %v3850 = vsel %vm1919, %v3838, %v3840
        %v3851 = vsel %vm1919, %v3836, %v3838
        %v3852 = vsel %vm1919, %v3834, %v3836
        %v3853 = vsel %vm1919, %v3832, %v3834
        %v3854 = vsel %vm1919, %v3830, %v3832
        %v3855 = vsel %vm1919, %v3828, %v3830
        %v3856 = vsel %vm1919, %v3826, %v3828
        %v3857 = vsel %vm1919, %v3824, %v3826
        %v3858 = vsel %vm1919, %v3822, %v3824
        %v3859 = vsel %vm1919, %v3820, %v3822
        %v3860 = vsel %vm1919, %v3818, %v3820
        %v3861 = vsel %vm1919, %v3816, %v3818
        %v3862 = vsel %vm1919, %v3846, %v3816
        %v3863 = vmul.f32 %v3861, %v1941
        %v3864 = vmul.f32 %v3860, %v1945
        %v3865 = vmul.f32 %v3859, %v1949
        %v3866 = vmul.f32 %v3858, %v1953
        %v3867 = vmul.f32 %v3857, %v1957
        %v3868 = vmul.f32 %v3856, %v1961
        %v3869 = vmul.f32 %v3855, %v1965
        %v3870 = vmul.f32 %v3854, %v1969
        %v3871 = vmul.f32 %v3853, %v1973
        %v3872 = vmul.f32 %v3852, %v1977
        %v3873 = vmul.f32 %v3851, %v1981
        %v3874 = vmul.f32 %v3850, %v1985
        %v3875 = vmul.f32 %v3849, %v1989
        %v3876 = vmul.f32 %v3848, %v1993
        %v3877 = vmul.f32 %v3847, %v1997
        %v3878 = vmul.f32 %v3862, %v2001
        %3879 = vst [vmem:[#allocation4 + $0x140] sm:$0xf] %v3863
        %3880 = vst [vmem:[#allocation4 + $0x148] sm:$0xf] %v3864
        %3881 = vst [vmem:[#allocation4 + $0x150] sm:$0xf] %v3865
        %3882 = vst [vmem:[#allocation4 + $0x158] sm:$0xf] %v3866
        %3883 = vst [vmem:[#allocation4 + $0x160] sm:$0xf] %v3867
        %3884 = vst [vmem:[#allocation4 + $0x168] sm:$0xf] %v3868
        %3885 = vst [vmem:[#allocation4 + $0x170] sm:$0xf] %v3869
        %3886 = vst [vmem:[#allocation4 + $0x178] sm:$0xf] %v3870
        %v3895 = vrot.slane %v3871, 4
        %v3896 = vrot.slane %v3872, 4
        %v3897 = vrot.slane %v3873, 4
        %v3898 = vrot.slane %v3874, 4
        %v3899 = vrot.slane %v3875, 4
        %v3900 = vrot.slane %v3876, 4
        %v3901 = vrot.slane %v3877, 4
        %v3902 = vrot.slane %v3878, 4
        %3911 = vst [vmem:[#allocation4 + $0x140] sm:$0xf0] %v3895
        %3912 = vst [vmem:[#allocation4 + $0x148] sm:$0xf0] %v3896
        %3913 = vst [vmem:[#allocation4 + $0x150] sm:$0xf0] %v3897
        %3914 = vst [vmem:[#allocation4 + $0x158] sm:$0xf0] %v3898
        %3915 = vst [vmem:[#allocation4 + $0x160] sm:$0xf0] %v3899
        %3916 = vst [vmem:[#allocation4 + $0x168] sm:$0xf0] %v3900
        %3917 = vst [vmem:[#allocation4 + $0x170] sm:$0xf0] %v3901
        %3918 = vst [vmem:[#allocation4 + $0x178] sm:$0xf0] %v3902
        %3919 = vrot.lane.b32.xlu0 %v3343, 113
        %v3920 = vpop.permute.xlu0 %3919
        %3921 = vrot.lane.b32.xlu0 %v3344, 113
        %v3922 = vpop.permute.xlu0 %3921
        %3923 = vrot.lane.b32.xlu0 %v3345, 113
        %v3924 = vpop.permute.xlu0 %3923
        %3925 = vrot.lane.b32.xlu0 %v3346, 113
        %v3926 = vpop.permute.xlu0 %3925
        %3927 = vrot.lane.b32.xlu0 %v3347, 113
        %v3928 = vpop.permute.xlu0 %3927
        %3929 = vrot.lane.b32.xlu0 %v3348, 113
        %v3930 = vpop.permute.xlu0 %3929
        %3931 = vrot.lane.b32.xlu0 %v3349, 113
        %v3932 = vpop.permute.xlu0 %3931
        %3933 = vrot.lane.b32.xlu0 %v3350, 113
        %v3934 = vpop.permute.xlu0 %3933
        %3935 = vrot.lane.b32.xlu0 %v3351, 113
        %v3936 = vpop.permute.xlu0 %3935
        %3937 = vrot.lane.b32.xlu0 %v3352, 113
        %v3938 = vpop.permute.xlu0 %3937
        %3939 = vrot.lane.b32.xlu0 %v3353, 113
        %v3940 = vpop.permute.xlu0 %3939
        %3941 = vrot.lane.b32.xlu0 %v3354, 113
        %v3942 = vpop.permute.xlu0 %3941
        %3943 = vrot.lane.b32.xlu0 %v3355, 113
        %v3944 = vpop.permute.xlu0 %3943
        %3945 = vrot.lane.b32.xlu0 %v3356, 113
        %v3946 = vpop.permute.xlu0 %3945
        %3947 = vrot.lane.b32.xlu0 %v3357, 113
        %v3948 = vpop.permute.xlu0 %3947
        %3949 = vrot.lane.b32.xlu0 %v3358, 113
        %v3950 = vpop.permute.xlu0 %3949
        %v3951 = vsel %vm2130, %v3948, %v3950
        %v3952 = vsel %vm2130, %v3946, %v3948
        %v3953 = vsel %vm2130, %v3944, %v3946
        %v3954 = vsel %vm2130, %v3942, %v3944
        %v3955 = vsel %vm2130, %v3940, %v3942
        %v3956 = vsel %vm2130, %v3938, %v3940
        %v3957 = vsel %vm2130, %v3936, %v3938
        %v3958 = vsel %vm2130, %v3934, %v3936
        %v3959 = vsel %vm2130, %v3932, %v3934
        %v3960 = vsel %vm2130, %v3930, %v3932
        %v3961 = vsel %vm2130, %v3928, %v3930
        %v3962 = vsel %vm2130, %v3926, %v3928
        %v3963 = vsel %vm2130, %v3924, %v3926
        %v3964 = vsel %vm2130, %v3922, %v3924
        %v3965 = vsel %vm2130, %v3920, %v3922
        %v3966 = vsel %vm2130, %v3950, %v3920
        %v3967 = vmul.f32 %v3965, %v2152
        %v3968 = vmul.f32 %v3964, %v2156
        %v3969 = vmul.f32 %v3963, %v2160
        %v3970 = vmul.f32 %v3962, %v2164
        %v3971 = vmul.f32 %v3961, %v2168
        %v3972 = vmul.f32 %v3960, %v2172
        %v3973 = vmul.f32 %v3959, %v2176
        %v3974 = vmul.f32 %v3958, %v2180
        %v3975 = vmul.f32 %v3957, %v2184
        %v3976 = vmul.f32 %v3956, %v2188
        %v3977 = vmul.f32 %v3955, %v2192
        %v3978 = vmul.f32 %v3954, %v2196
        %v3979 = vmul.f32 %v3953, %v2200
        %v3980 = vmul.f32 %v3952, %v2204
        %v3981 = vmul.f32 %v3951, %v2208
        %v3982 = vmul.f32 %v3966, %v2212
        %3983 = vst [vmem:[#allocation4 + $0x180] sm:$0xf] %v3967
        %3984 = vst [vmem:[#allocation4 + $0x188] sm:$0xf] %v3968
        %3985 = vst [vmem:[#allocation4 + $0x190] sm:$0xf] %v3969
        %3986 = vst [vmem:[#allocation4 + $0x198] sm:$0xf] %v3970
        %3987 = vst [vmem:[#allocation4 + $0x1a0] sm:$0xf] %v3971
        %3988 = vst [vmem:[#allocation4 + $0x1a8] sm:$0xf] %v3972
        %3989 = vst [vmem:[#allocation4 + $0x1b0] sm:$0xf] %v3973
        %3990 = vst [vmem:[#allocation4 + $0x1b8] sm:$0xf] %v3974
        %v3999 = vrot.slane %v3975, 4
        %v4000 = vrot.slane %v3976, 4
        %v4001 = vrot.slane %v3977, 4
        %v4002 = vrot.slane %v3978, 4
        %v4003 = vrot.slane %v3979, 4
        %v4004 = vrot.slane %v3980, 4
        %v4005 = vrot.slane %v3981, 4
        %v4006 = vrot.slane %v3982, 4
        %4015 = vst [vmem:[#allocation4 + $0x180] sm:$0xf0] %v3999
        %4016 = vst [vmem:[#allocation4 + $0x188] sm:$0xf0] %v4000
        %4017 = vst [vmem:[#allocation4 + $0x190] sm:$0xf0] %v4001
        %4018 = vst [vmem:[#allocation4 + $0x198] sm:$0xf0] %v4002
        %4019 = vst [vmem:[#allocation4 + $0x1a0] sm:$0xf0] %v4003
        %4020 = vst [vmem:[#allocation4 + $0x1a8] sm:$0xf0] %v4004
        %4021 = vst [vmem:[#allocation4 + $0x1b0] sm:$0xf0] %v4005
        %4022 = vst [vmem:[#allocation4 + $0x1b8] sm:$0xf0] %v4006
        %4023 = vrot.lane.b32.xlu0 %v3343, 112
        %v4024 = vpop.permute.xlu0 %4023
        %4025 = vrot.lane.b32.xlu0 %v3344, 112
        %v4026 = vpop.permute.xlu0 %4025
        %4027 = vrot.lane.b32.xlu0 %v3345, 112
        %v4028 = vpop.permute.xlu0 %4027
        %4029 = vrot.lane.b32.xlu0 %v3346, 112
        %v4030 = vpop.permute.xlu0 %4029
        %4031 = vrot.lane.b32.xlu0 %v3347, 112
        %v4032 = vpop.permute.xlu0 %4031
        %4033 = vrot.lane.b32.xlu0 %v3348, 112
        %v4034 = vpop.permute.xlu0 %4033
        %4035 = vrot.lane.b32.xlu0 %v3349, 112
        %v4036 = vpop.permute.xlu0 %4035
        %4037 = vrot.lane.b32.xlu0 %v3350, 112
        %v4038 = vpop.permute.xlu0 %4037
        %4039 = vrot.lane.b32.xlu0 %v3351, 112
        %v4040 = vpop.permute.xlu0 %4039
        %4041 = vrot.lane.b32.xlu0 %v3352, 112
        %v4042 = vpop.permute.xlu0 %4041
        %4043 = vrot.lane.b32.xlu0 %v3353, 112
        %v4044 = vpop.permute.xlu0 %4043
        %4045 = vrot.lane.b32.xlu0 %v3354, 112
        %v4046 = vpop.permute.xlu0 %4045
        %4047 = vrot.lane.b32.xlu0 %v3355, 112
        %v4048 = vpop.permute.xlu0 %4047
        %4049 = vrot.lane.b32.xlu0 %v3356, 112
        %v4050 = vpop.permute.xlu0 %4049
        %4051 = vrot.lane.b32.xlu0 %v3357, 112
        %v4052 = vpop.permute.xlu0 %4051
        %4053 = vrot.lane.b32.xlu0 %v3358, 112
        %v4054 = vpop.permute.xlu0 %4053
        %v4055 = vsel %vm2293, %v4052, %v4054
        %v4056 = vsel %vm2293, %v4050, %v4052
        %v4057 = vsel %vm2293, %v4048, %v4050
        %v4058 = vsel %vm2293, %v4046, %v4048
        %v4059 = vsel %vm2293, %v4044, %v4046
        %v4060 = vsel %vm2293, %v4042, %v4044
        %v4061 = vsel %vm2293, %v4040, %v4042
        %v4062 = vsel %vm2293, %v4038, %v4040
        %v4063 = vsel %vm2293, %v4036, %v4038
        %v4064 = vsel %vm2293, %v4034, %v4036
        %v4065 = vsel %vm2293, %v4032, %v4034
        %v4066 = vsel %vm2293, %v4030, %v4032
        %v4067 = vsel %vm2293, %v4028, %v4030
        %v4068 = vsel %vm2293, %v4026, %v4028
        %v4069 = vsel %vm2293, %v4024, %v4026
        %v4070 = vsel %vm2293, %v4054, %v4024
        %v4071 = vmul.f32 %v4069, %v2315
        %v4072 = vmul.f32 %v4068, %v2319
        %v4073 = vmul.f32 %v4067, %v2323
        %v4074 = vmul.f32 %v4066, %v2327
        %v4075 = vmul.f32 %v4065, %v2331
        %v4076 = vmul.f32 %v4064, %v2335
        %v4077 = vmul.f32 %v4063, %v2339
        %v4078 = vmul.f32 %v4062, %v2343
        %v4079 = vmul.f32 %v4061, %v2347
        %v4080 = vmul.f32 %v4060, %v2351
        %v4081 = vmul.f32 %v4059, %v2355
        %v4082 = vmul.f32 %v4058, %v2359
        %v4083 = vmul.f32 %v4057, %v2363
        %v4084 = vmul.f32 %v4056, %v2367
        %v4085 = vmul.f32 %v4055, %v2371
        %v4086 = vmul.f32 %v4070, %v2375
        %4087 = vst [vmem:[#allocation4 + $0x1c0] sm:$0xf] %v4071
        %4088 = vst [vmem:[#allocation4 + $0x1c8] sm:$0xf] %v4072
        %4089 = vst [vmem:[#allocation4 + $0x1d0] sm:$0xf] %v4073
        %4090 = vst [vmem:[#allocation4 + $0x1d8] sm:$0xf] %v4074
        %4091 = vst [vmem:[#allocation4 + $0x1e0] sm:$0xf] %v4075
        %4092 = vst [vmem:[#allocation4 + $0x1e8] sm:$0xf] %v4076
        %4093 = vst [vmem:[#allocation4 + $0x1f0] sm:$0xf] %v4077
        %4094 = vst [vmem:[#allocation4 + $0x1f8] sm:$0xf] %v4078
        %v4103 = vrot.slane %v4079, 4
        %v4104 = vrot.slane %v4080, 4
        %v4105 = vrot.slane %v4081, 4
        %v4106 = vrot.slane %v4082, 4
        %v4107 = vrot.slane %v4083, 4
        %v4108 = vrot.slane %v4084, 4
        %v4109 = vrot.slane %v4085, 4
        %v4110 = vrot.slane %v4086, 4
        %4119 = vst [vmem:[#allocation4 + $0x1c0] sm:$0xf0] %v4103
        %4120 = vst [vmem:[#allocation4 + $0x1c8] sm:$0xf0] %v4104
        %4121 = vst [vmem:[#allocation4 + $0x1d0] sm:$0xf0] %v4105
        %4122 = vst [vmem:[#allocation4 + $0x1d8] sm:$0xf0] %v4106
        %4123 = vst [vmem:[#allocation4 + $0x1e0] sm:$0xf0] %v4107
        %4124 = vst [vmem:[#allocation4 + $0x1e8] sm:$0xf0] %v4108
        %4125 = vst [vmem:[#allocation4 + $0x1f0] sm:$0xf0] %v4109
        %4126 = vst [vmem:[#allocation4 + $0x1f8] sm:$0xf0] %v4110
        %4127 = vrot.lane.b32.xlu0 %v3343, 111
        %v4128 = vpop.permute.xlu0 %4127
        %4129 = vrot.lane.b32.xlu0 %v3344, 111
        %v4130 = vpop.permute.xlu0 %4129
        %4131 = vrot.lane.b32.xlu0 %v3345, 111
        %v4132 = vpop.permute.xlu0 %4131
        %4133 = vrot.lane.b32.xlu0 %v3346, 111
        %v4134 = vpop.permute.xlu0 %4133
        %4135 = vrot.lane.b32.xlu0 %v3347, 111
        %v4136 = vpop.permute.xlu0 %4135
        %4137 = vrot.lane.b32.xlu0 %v3348, 111
        %v4138 = vpop.permute.xlu0 %4137
        %4139 = vrot.lane.b32.xlu0 %v3349, 111
        %v4140 = vpop.permute.xlu0 %4139
        %4141 = vrot.lane.b32.xlu0 %v3350, 111
        %v4142 = vpop.permute.xlu0 %4141
        %4143 = vrot.lane.b32.xlu0 %v3351, 111
        %v4144 = vpop.permute.xlu0 %4143
        %4145 = vrot.lane.b32.xlu0 %v3352, 111
        %v4146 = vpop.permute.xlu0 %4145
        %4147 = vrot.lane.b32.xlu0 %v3353, 111
        %v4148 = vpop.permute.xlu0 %4147
        %4149 = vrot.lane.b32.xlu0 %v3354, 111
        %v4150 = vpop.permute.xlu0 %4149
        %4151 = vrot.lane.b32.xlu0 %v3355, 111
        %v4152 = vpop.permute.xlu0 %4151
        %4153 = vrot.lane.b32.xlu0 %v3356, 111
        %v4154 = vpop.permute.xlu0 %4153
        %4155 = vrot.lane.b32.xlu0 %v3357, 111
        %v4156 = vpop.permute.xlu0 %4155
        %4157 = vrot.lane.b32.xlu0 %v3358, 111
        %v4158 = vpop.permute.xlu0 %4157
        %v4159 = vsel %vm2504, %v4156, %v4158
        %v4160 = vsel %vm2504, %v4154, %v4156
        %v4161 = vsel %vm2504, %v4152, %v4154
        %v4162 = vsel %vm2504, %v4150, %v4152
        %v4163 = vsel %vm2504, %v4148, %v4150
        %v4164 = vsel %vm2504, %v4146, %v4148
        %v4165 = vsel %vm2504, %v4144, %v4146
        %v4166 = vsel %vm2504, %v4142, %v4144
        %v4167 = vsel %vm2504, %v4140, %v4142
        %v4168 = vsel %vm2504, %v4138, %v4140
        %v4169 = vsel %vm2504, %v4136, %v4138
        %v4170 = vsel %vm2504, %v4134, %v4136
        %v4171 = vsel %vm2504, %v4132, %v4134
        %v4172 = vsel %vm2504, %v4130, %v4132
        %v4173 = vsel %vm2504, %v4128, %v4130
        %v4174 = vsel %vm2504, %v4158, %v4128
        %v4175 = vmul.f32 %v4173, %v2526
        %v4176 = vmul.f32 %v4172, %v2530
        %v4177 = vmul.f32 %v4171, %v2534
        %v4178 = vmul.f32 %v4170, %v2538
        %v4179 = vmul.f32 %v4169, %v2542
        %v4180 = vmul.f32 %v4168, %v2546
        %v4181 = vmul.f32 %v4167, %v2550
        %v4182 = vmul.f32 %v4166, %v2554
        %v4183 = vmul.f32 %v4165, %v2558
        %v4184 = vmul.f32 %v4164, %v2562
        %v4185 = vmul.f32 %v4163, %v2566
        %v4186 = vmul.f32 %v4162, %v2570
        %v4187 = vmul.f32 %v4161, %v2574
        %v4188 = vmul.f32 %v4160, %v2578
        %v4189 = vmul.f32 %v4159, %v2582
        %v4190 = vmul.f32 %v4174, %v2586
        %4191 = vst [vmem:[#allocation4 + $0x200] sm:$0xf] %v4175
        %4192 = vst [vmem:[#allocation4 + $0x208] sm:$0xf] %v4176
        %4193 = vst [vmem:[#allocation4 + $0x210] sm:$0xf] %v4177
        %4194 = vst [vmem:[#allocation4 + $0x218] sm:$0xf] %v4178
        %4195 = vst [vmem:[#allocation4 + $0x220] sm:$0xf] %v4179
        %4196 = vst [vmem:[#allocation4 + $0x228] sm:$0xf] %v4180
        %4197 = vst [vmem:[#allocation4 + $0x230] sm:$0xf] %v4181
        %4198 = vst [vmem:[#allocation4 + $0x238] sm:$0xf] %v4182
        %v4207 = vrot.slane %v4183, 4
        %v4208 = vrot.slane %v4184, 4
        %v4209 = vrot.slane %v4185, 4
        %v4210 = vrot.slane %v4186, 4
        %v4211 = vrot.slane %v4187, 4
        %v4212 = vrot.slane %v4188, 4
        %v4213 = vrot.slane %v4189, 4
        %v4214 = vrot.slane %v4190, 4
        %4223 = vst [vmem:[#allocation4 + $0x200] sm:$0xf0] %v4207
        %4224 = vst [vmem:[#allocation4 + $0x208] sm:$0xf0] %v4208
        %4225 = vst [vmem:[#allocation4 + $0x210] sm:$0xf0] %v4209
        %4226 = vst [vmem:[#allocation4 + $0x218] sm:$0xf0] %v4210
        %4227 = vst [vmem:[#allocation4 + $0x220] sm:$0xf0] %v4211
        %4228 = vst [vmem:[#allocation4 + $0x228] sm:$0xf0] %v4212
        %4229 = vst [vmem:[#allocation4 + $0x230] sm:$0xf0] %v4213
        %4230 = vst [vmem:[#allocation4 + $0x238] sm:$0xf0] %v4214
        %v4231 = vld [vmem:[%s14] sm:$0xff]
        %v4232 = vld [vmem:[#allocation4] sm:$0xff]
        %v4233 = vld [vmem:[#allocation4 + $0x8] sm:$0xff]
        %v4234 = vld [vmem:[#allocation4 + $0x10] sm:$0xff]
        %v4235 = vld [vmem:[#allocation4 + $0x18] sm:$0xff]
        %v4236 = vld [vmem:[#allocation4 + $0x20] sm:$0xff]
        %v4237 = vld [vmem:[#allocation4 + $0x28] sm:$0xff]
        %v4238 = vld [vmem:[#allocation4 + $0x30] sm:$0xff]
        %v4239 = vld [vmem:[#allocation4 + $0x38] sm:$0xff]
        %v4240 = vld [vmem:[#allocation4 + $0x40] sm:$0xff]
        %v4241 = vld [vmem:[#allocation4 + $0x48] sm:$0xff]
        %v4242 = vld [vmem:[#allocation4 + $0x50] sm:$0xff]
        %v4243 = vld [vmem:[#allocation4 + $0x58] sm:$0xff]
        %v4244 = vld [vmem:[#allocation4 + $0x60] sm:$0xff]
        %v4245 = vld [vmem:[#allocation4 + $0x68] sm:$0xff]
        %v4246 = vld [vmem:[#allocation4 + $0x70] sm:$0xff]
        %v4247 = vld [vmem:[#allocation4 + $0x78] sm:$0xff]
        %v4248 = vld [vmem:[#allocation4 + $0x80] sm:$0xff]
        %v4249 = vld [vmem:[#allocation4 + $0x88] sm:$0xff]
        %v4250 = vld [vmem:[#allocation4 + $0x90] sm:$0xff]
        %v4251 = vld [vmem:[#allocation4 + $0x98] sm:$0xff]
        %v4252 = vld [vmem:[#allocation4 + $0xa0] sm:$0xff]
        %v4253 = vld [vmem:[#allocation4 + $0xa8] sm:$0xff]
        %v4254 = vld [vmem:[#allocation4 + $0xb0] sm:$0xff]
        %v4255 = vld [vmem:[#allocation4 + $0xb8] sm:$0xff]
        %v4256 = vld [vmem:[#allocation4 + $0xc0] sm:$0xff]
        %v4257 = vld [vmem:[#allocation4 + $0xc8] sm:$0xff]
        %v4258 = vld [vmem:[#allocation4 + $0xd0] sm:$0xff]
        %v4259 = vld [vmem:[#allocation4 + $0xd8] sm:$0xff]
        %v4260 = vld [vmem:[#allocation4 + $0xe0] sm:$0xff]
        %v4261 = vld [vmem:[#allocation4 + $0xe8] sm:$0xff]
        %v4262 = vld [vmem:[#allocation4 + $0xf0] sm:$0xff]
        %v4263 = vld [vmem:[#allocation4 + $0xf8] sm:$0xff]
        %v4264 = vld [vmem:[#allocation4 + $0x100] sm:$0xff]
        %v4265 = vld [vmem:[#allocation4 + $0x108] sm:$0xff]
        %v4266 = vld [vmem:[#allocation4 + $0x110] sm:$0xff]
        %v4267 = vld [vmem:[#allocation4 + $0x118] sm:$0xff]
        %v4268 = vld [vmem:[#allocation4 + $0x120] sm:$0xff]
        %v4269 = vld [vmem:[#allocation4 + $0x128] sm:$0xff]
        %v4270 = vld [vmem:[#allocation4 + $0x130] sm:$0xff]
        %v4271 = vld [vmem:[#allocation4 + $0x138] sm:$0xff]
        %v4272 = vld [vmem:[#allocation4 + $0x140] sm:$0xff]
        %v4273 = vld [vmem:[#allocation4 + $0x148] sm:$0xff]
        %v4274 = vld [vmem:[#allocation4 + $0x150] sm:$0xff]
        %v4275 = vld [vmem:[#allocation4 + $0x158] sm:$0xff]
        %v4276 = vld [vmem:[#allocation4 + $0x160] sm:$0xff]
        %v4277 = vld [vmem:[#allocation4 + $0x168] sm:$0xff]
        %v4278 = vld [vmem:[#allocation4 + $0x170] sm:$0xff]
        %v4279 = vld [vmem:[#allocation4 + $0x178] sm:$0xff]
        %v4280 = vld [vmem:[#allocation4 + $0x180] sm:$0xff]
        %v4281 = vld [vmem:[#allocation4 + $0x188] sm:$0xff]
        %v4282 = vld [vmem:[#allocation4 + $0x190] sm:$0xff]
        %v4283 = vld [vmem:[#allocation4 + $0x198] sm:$0xff]
        %v4284 = vld [vmem:[#allocation4 + $0x1a0] sm:$0xff]
        %v4285 = vld [vmem:[#allocation4 + $0x1a8] sm:$0xff]
        %v4286 = vld [vmem:[#allocation4 + $0x1b0] sm:$0xff]
        %v4287 = vld [vmem:[#allocation4 + $0x1b8] sm:$0xff]
        %v4288 = vld [vmem:[#allocation4 + $0x1c0] sm:$0xff]
        %v4289 = vld [vmem:[#allocation4 + $0x1c8] sm:$0xff]
        %v4290 = vld [vmem:[#allocation4 + $0x1d0] sm:$0xff]
        %v4291 = vld [vmem:[#allocation4 + $0x1d8] sm:$0xff]
        %v4292 = vld [vmem:[#allocation4 + $0x1e0] sm:$0xff]
        %v4293 = vld [vmem:[#allocation4 + $0x1e8] sm:$0xff]
        %v4294 = vld [vmem:[#allocation4 + $0x1f0] sm:$0xff]
        %v4295 = vld [vmem:[#allocation4 + $0x1f8] sm:$0xff]
        %v4296 = vld [vmem:[#allocation4 + $0x200] sm:$0xff]
        %v4297 = vld [vmem:[#allocation4 + $0x208] sm:$0xff]
        %v4298 = vld [vmem:[#allocation4 + $0x210] sm:$0xff]
        %v4299 = vld [vmem:[#allocation4 + $0x218] sm:$0xff]
        %v4300 = vld [vmem:[#allocation4 + $0x220] sm:$0xff]
        %v4301 = vld [vmem:[#allocation4 + $0x228] sm:$0xff]
        %v4302 = vld [vmem:[#allocation4 + $0x230] sm:$0xff]
        %v4303 = vld [vmem:[#allocation4 + $0x238] sm:$0xff]
        %v4304 = vld [vmem:[%s16] sm:$0xff]
        %4306 = vset.pattern.permute.xlu0 0
        %4307 = vperm.xlu0 %4306, %v4304
        %v4308 = vpop.permute.xlu0 %4307
        %vm4310 = vcmask 588800
        %v4312 = vsel %vm4310, %v4231, 0
        %4314 = vmatprep.subr.mxu0 %v4233
        %4315 = vmatpush1.msra.mxu0 %v4232
        %4316 = vmatprep.subr.mxu0 %v4241
        %4317 = vmatpush1.msra.mxu0 %v4240
        %4318 = vmatprep.subr.mxu0 %v4249
        %4319 = vmatpush1.msra.mxu0 %v4248
        %4320 = vmatprep.subr.mxu0 %v4257
        %4321 = vmatpush1.msra.mxu0 %v4256
        %4322 = vmatprep.subr.mxu0 %v4265
        %4323 = vmatpush1.msra.mxu0 %v4264
        %4324 = vmatprep.subr.mxu0 %v4273
        %4325 = vmatpush1.msra.mxu0 %v4272
        %4326 = vmatprep.subr.mxu0 %v4281
        %4327 = vmatpush1.msra.mxu0 %v4280
        %4328 = vmatprep.subr.mxu0 %v4289
        %4329 = vmatpush1.msra.mxu0 %v4288
        %4330 = vmatprep.subr.mxu0 %v4297
        %4331 = vmatpush1.msra.mxu0 %v4296
        %4332 = vmatprep.subr.mxu0 0.0
        %4333 = vmatpush1.msra.mxu0 0.0
        %4334 = vmatprep.subr.mxu0 0.0
        %4335 = vmatpush1.msra.mxu0 0.0
        %4336 = vmatprep.subr.mxu0 0.0
        %4337 = vmatpush1.msra.mxu0 0.0
        %4338 = vmatprep.subr.mxu0 0.0
        %4339 = vmatpush1.msra.mxu0 0.0
        %4340 = vmatprep.subr.mxu0 0.0
        %4341 = vmatpush1.msra.mxu0 0.0
        %4342 = vmatprep.subr.mxu0 0.0
        %4343 = vmatpush1.msra.mxu0 0.0
        %4344 = vmatprep.subr.mxu0 0.0
        %4345 = vmatpush1.msra.mxu0 0.0
        %4346 = vmatprep.subr.mxu0 0.0
        %4347 = vmatpush1.msra.mxu0 0.0
        %4348 = vmatprep.subr.mxu0 0.0
        %4349 = vmatpush1.msra.mxu0 0.0
        %4350 = vmatprep.subr.mxu0 0.0
        %4351 = vmatpush1.msra.mxu0 0.0
        %4352 = vmatprep.subr.mxu0 0.0
        %4353 = vmatpush1.msra.mxu0 0.0
        %4354 = vmatprep.subr.mxu0 0.0
        %4355 = vmatpush1.msra.mxu0 0.0
        %4356 = vmatprep.subr.mxu0 0.0
        %4357 = vmatpush1.msra.mxu0 0.0
        %4358 = vmatprep.subr.mxu0 0.0
        %4359 = vmatpush1.msra.mxu0 0.0
        %4360 = vmatprep.subr.mxu0 0.0
        %4361 = vmatpush1.msra.mxu0 0.0
        %4362 = vmatprep.subr.mxu0 0.0
        %4363 = vmatpush1.msra.mxu0 0.0
        %4364 = vmatprep.subr.mxu0 0.0
        %4365 = vmatpush1.msra.mxu0 0.0
        %4366 = vmatprep.subr.mxu0 0.0
        %4367 = vmatpush1.msra.mxu0 0.0
        %4368 = vmatprep.subr.mxu0 0.0
        %4369 = vmatpush1.msra.mxu0 0.0
        %4370 = vmatprep.subr.mxu0 0.0
        %4371 = vmatpush1.msra.mxu0 0.0
        %4372 = vmatprep.subr.mxu0 0.0
        %4373 = vmatpush1.msra.mxu0 0.0
        %4374 = vmatprep.subr.mxu0 0.0
        %4375 = vmatpush1.msra.mxu0 0.0
        %4376 = vmatprep.subr.mxu0 0.0
        %4377 = vmatpush1.msra.mxu0 0.0
        %4378 = vmatprep.mubr.f32.mxu0 0.0
        %4379 = vmatmul.mubr.f32.gmra.mrb[0].mxu0 %v4312
        %v4380 = vpop.f32.mrb[0].mxu0
        %v4381 = vadd.f32 %v4308, %v4380
        %v4382 = vpop.f32.mrb[0].mxu0
        %v4383 = vadd.f32 %v4308, %v4382
        %4384 = vdwg.mxu0
        %4385 = vmatprep.subr.mxu0 %v4235
        %4386 = vmatpush1.msra.mxu0 %v4234
        %4387 = vmatprep.subr.mxu0 %v4243
        %4388 = vmatpush1.msra.mxu0 %v4242
        %4389 = vmatprep.subr.mxu0 %v4251
        %4390 = vmatpush1.msra.mxu0 %v4250
        %4391 = vmatprep.subr.mxu0 %v4259
        %4392 = vmatpush1.msra.mxu0 %v4258
        %4393 = vmatprep.subr.mxu0 %v4267
        %4394 = vmatpush1.msra.mxu0 %v4266
        %4395 = vmatprep.subr.mxu0 %v4275
        %4396 = vmatpush1.msra.mxu0 %v4274
        %4397 = vmatprep.subr.mxu0 %v4283
        %4398 = vmatpush1.msra.mxu0 %v4282
        %4399 = vmatprep.subr.mxu0 %v4291
        %4400 = vmatpush1.msra.mxu0 %v4290
        %4401 = vmatprep.subr.mxu0 %v4299
        %4402 = vmatpush1.msra.mxu0 %v4298
        %4403 = vmatprep.subr.mxu0 0.0
        %4404 = vmatpush1.msra.mxu0 0.0
        %4405 = vmatprep.subr.mxu0 0.0
        %4406 = vmatpush1.msra.mxu0 0.0
        %4407 = vmatprep.subr.mxu0 0.0
        %4408 = vmatpush1.msra.mxu0 0.0
        %4409 = vmatprep.subr.mxu0 0.0
        %4410 = vmatpush1.msra.mxu0 0.0
        %4411 = vmatprep.subr.mxu0 0.0
        %4412 = vmatpush1.msra.mxu0 0.0
        %4413 = vmatprep.subr.mxu0 0.0
        %4414 = vmatpush1.msra.mxu0 0.0
        %4415 = vmatprep.subr.mxu0 0.0
        %4416 = vmatpush1.msra.mxu0 0.0
        %4417 = vmatprep.subr.mxu0 0.0
        %4418 = vmatpush1.msra.mxu0 0.0
        %4419 = vmatprep.subr.mxu0 0.0
        %4420 = vmatpush1.msra.mxu0 0.0
        %4421 = vmatprep.subr.mxu0 0.0
        %4422 = vmatpush1.msra.mxu0 0.0
        %4423 = vmatprep.subr.mxu0 0.0
        %4424 = vmatpush1.msra.mxu0 0.0
        %4425 = vmatprep.subr.mxu0 0.0
        %4426 = vmatpush1.msra.mxu0 0.0
        %4427 = vmatprep.subr.mxu0 0.0
        %4428 = vmatpush1.msra.mxu0 0.0
        %4429 = vmatprep.subr.mxu0 0.0
        %4430 = vmatpush1.msra.mxu0 0.0
        %4431 = vmatprep.subr.mxu0 0.0
        %4432 = vmatpush1.msra.mxu0 0.0
        %4433 = vmatprep.subr.mxu0 0.0
        %4434 = vmatpush1.msra.mxu0 0.0
        %4435 = vmatprep.subr.mxu0 0.0
        %4436 = vmatpush1.msra.mxu0 0.0
        %4437 = vmatprep.subr.mxu0 0.0
        %4438 = vmatpush1.msra.mxu0 0.0
        %4439 = vmatprep.subr.mxu0 0.0
        %4440 = vmatpush1.msra.mxu0 0.0
        %4441 = vmatprep.subr.mxu0 0.0
        %4442 = vmatpush1.msra.mxu0 0.0
        %4443 = vmatprep.subr.mxu0 0.0
        %4444 = vmatpush1.msra.mxu0 0.0
        %4445 = vmatprep.subr.mxu0 0.0
        %4446 = vmatpush1.msra.mxu0 0.0
        %4447 = vmatprep.subr.mxu0 0.0
        %4448 = vmatpush1.msra.mxu0 0.0
        %4449 = vmatprep.mubr.f32.mxu0 0.0
        %4450 = vmatmul.mubr.f32.gmra.mrb[0].mxu0 %v4312
        %v4451 = vpop.f32.mrb[0].mxu0
        %v4452 = vadd.f32 %v4308, %v4451
        %v4453 = vpop.f32.mrb[0].mxu0
        %v4454 = vadd.f32 %v4308, %v4453
        %4455 = vdwg.mxu0
        %4456 = vmatprep.subr.mxu0 %v4237
        %4457 = vmatpush1.msra.mxu0 %v4236
        %4458 = vmatprep.subr.mxu0 %v4245
        %4459 = vmatpush1.msra.mxu0 %v4244
        %4460 = vmatprep.subr.mxu0 %v4253
        %4461 = vmatpush1.msra.mxu0 %v4252
        %4462 = vmatprep.subr.mxu0 %v4261
        %4463 = vmatpush1.msra.mxu0 %v4260
        %4464 = vmatprep.subr.mxu0 %v4269
        %4465 = vmatpush1.msra.mxu0 %v4268
        %4466 = vmatprep.subr.mxu0 %v4277
        %4467 = vmatpush1.msra.mxu0 %v4276
        %4468 = vmatprep.subr.mxu0 %v4285
        %4469 = vmatpush1.msra.mxu0 %v4284
        %4470 = vmatprep.subr.mxu0 %v4293
        %4471 = vmatpush1.msra.mxu0 %v4292
        %4472 = vmatprep.subr.mxu0 %v4301
        %4473 = vmatpush1.msra.mxu0 %v4300
        %4474 = vmatprep.subr.mxu0 0.0
        %4475 = vmatpush1.msra.mxu0 0.0
        %4476 = vmatprep.subr.mxu0 0.0
        %4477 = vmatpush1.msra.mxu0 0.0
        %4478 = vmatprep.subr.mxu0 0.0
        %4479 = vmatpush1.msra.mxu0 0.0
        %4480 = vmatprep.subr.mxu0 0.0
        %4481 = vmatpush1.msra.mxu0 0.0
        %4482 = vmatprep.subr.mxu0 0.0
        %4483 = vmatpush1.msra.mxu0 0.0
        %4484 = vmatprep.subr.mxu0 0.0
        %4485 = vmatpush1.msra.mxu0 0.0
        %4486 = vmatprep.subr.mxu0 0.0
        %4487 = vmatpush1.msra.mxu0 0.0
        %4488 = vmatprep.subr.mxu0 0.0
        %4489 = vmatpush1.msra.mxu0 0.0
        %4490 = vmatprep.subr.mxu0 0.0
        %4491 = vmatpush1.msra.mxu0 0.0
        %4492 = vmatprep.subr.mxu0 0.0
        %4493 = vmatpush1.msra.mxu0 0.0
        %4494 = vmatprep.subr.mxu0 0.0
        %4495 = vmatpush1.msra.mxu0 0.0
        %4496 = vmatprep.subr.mxu0 0.0
        %4497 = vmatpush1.msra.mxu0 0.0
        %4498 = vmatprep.subr.mxu0 0.0
        %4499 = vmatpush1.msra.mxu0 0.0
        %4500 = vmatprep.subr.mxu0 0.0
        %4501 = vmatpush1.msra.mxu0 0.0
        %4502 = vmatprep.subr.mxu0 0.0
        %4503 = vmatpush1.msra.mxu0 0.0
        %4504 = vmatprep.subr.mxu0 0.0
        %4505 = vmatpush1.msra.mxu0 0.0
        %4506 = vmatprep.subr.mxu0 0.0
        %4507 = vmatpush1.msra.mxu0 0.0
        %4508 = vmatprep.subr.mxu0 0.0
        %4509 = vmatpush1.msra.mxu0 0.0
        %4510 = vmatprep.subr.mxu0 0.0
        %4511 = vmatpush1.msra.mxu0 0.0
        %4512 = vmatprep.subr.mxu0 0.0
        %4513 = vmatpush1.msra.mxu0 0.0
        %4514 = vmatprep.subr.mxu0 0.0
        %4515 = vmatpush1.msra.mxu0 0.0
        %4516 = vmatprep.subr.mxu0 0.0
        %4517 = vmatpush1.msra.mxu0 0.0
        %4518 = vmatprep.subr.mxu0 0.0
        %4519 = vmatpush1.msra.mxu0 0.0
        %4520 = vmatprep.mubr.f32.mxu0 0.0
        %4521 = vmatmul.mubr.f32.gmra.mrb[0].mxu0 %v4312
        %v4522 = vpop.f32.mrb[0].mxu0
        %v4523 = vadd.f32 %v4308, %v4522
        %v4524 = vpop.f32.mrb[0].mxu0
        %v4525 = vadd.f32 %v4308, %v4524
        %4526 = vdwg.mxu0
        %4527 = vmatprep.subr.mxu0 %v4239
        %4528 = vmatpush1.msra.mxu0 %v4238
        %4529 = vmatprep.subr.mxu0 %v4247
        %4530 = vmatpush1.msra.mxu0 %v4246
        %4531 = vmatprep.subr.mxu0 %v4255
        %4532 = vmatpush1.msra.mxu0 %v4254
        %4533 = vmatprep.subr.mxu0 %v4263
        %4534 = vmatpush1.msra.mxu0 %v4262
        %4535 = vmatprep.subr.mxu0 %v4271
        %4536 = vmatpush1.msra.mxu0 %v4270
        %4537 = vmatprep.subr.mxu0 %v4279
        %4538 = vmatpush1.msra.mxu0 %v4278
        %4539 = vmatprep.subr.mxu0 %v4287
        %4540 = vmatpush1.msra.mxu0 %v4286
        %4541 = vmatprep.subr.mxu0 %v4295
        %4542 = vmatpush1.msra.mxu0 %v4294
        %4543 = vmatprep.subr.mxu0 %v4303
        %4544 = vmatpush1.msra.mxu0 %v4302
        %4545 = vmatprep.subr.mxu0 0.0
        %4546 = vmatpush1.msra.mxu0 0.0
        %4547 = vmatprep.subr.mxu0 0.0
        %4548 = vmatpush1.msra.mxu0 0.0
        %4549 = vmatprep.subr.mxu0 0.0
        %4550 = vmatpush1.msra.mxu0 0.0
        %4551 = vmatprep.subr.mxu0 0.0
        %4552 = vmatpush1.msra.mxu0 0.0
        %4553 = vmatprep.subr.mxu0 0.0
        %4554 = vmatpush1.msra.mxu0 0.0
        %4555 = vmatprep.subr.mxu0 0.0
        %4556 = vmatpush1.msra.mxu0 0.0
        %4557 = vmatprep.subr.mxu0 0.0
        %4558 = vmatpush1.msra.mxu0 0.0
        %4559 = vmatprep.subr.mxu0 0.0
        %4560 = vmatpush1.msra.mxu0 0.0
        %4561 = vmatprep.subr.mxu0 0.0
        %4562 = vmatpush1.msra.mxu0 0.0
        %4563 = vmatprep.subr.mxu0 0.0
        %4564 = vmatpush1.msra.mxu0 0.0
        %4565 = vmatprep.subr.mxu0 0.0
        %4566 = vmatpush1.msra.mxu0 0.0
        %4567 = vmatprep.subr.mxu0 0.0
        %4568 = vmatpush1.msra.mxu0 0.0
        %4569 = vmatprep.subr.mxu0 0.0
        %4570 = vmatpush1.msra.mxu0 0.0
        %4571 = vmatprep.subr.mxu0 0.0
        %4572 = vmatpush1.msra.mxu0 0.0
        %4573 = vmatprep.subr.mxu0 0.0
        %4574 = vmatpush1.msra.mxu0 0.0
        %4575 = vmatprep.subr.mxu0 0.0
        %4576 = vmatpush1.msra.mxu0 0.0
        %4577 = vmatprep.subr.mxu0 0.0
        %4578 = vmatpush1.msra.mxu0 0.0
        %4579 = vmatprep.subr.mxu0 0.0
        %4580 = vmatpush1.msra.mxu0 0.0
        %4581 = vmatprep.subr.mxu0 0.0
        %4582 = vmatpush1.msra.mxu0 0.0
        %4583 = vmatprep.subr.mxu0 0.0
        %4584 = vmatpush1.msra.mxu0 0.0
        %4585 = vmatprep.subr.mxu0 0.0
        %4586 = vmatpush1.msra.mxu0 0.0
        %4587 = vmatprep.subr.mxu0 0.0
        %4588 = vmatpush1.msra.mxu0 0.0
        %4589 = vmatprep.subr.mxu0 0.0
        %4590 = vmatpush1.msra.mxu0 0.0
        %4591 = vmatprep.mubr.f32.mxu0 0.0
        %4592 = vmatmul.mubr.f32.gmra.mrb[0].mxu0 %v4312
        %v4593 = vpop.f32.mrb[0].mxu0
        %v4594 = vadd.f32 %v4308, %v4593
        %v4595 = vpop.f32.mrb[0].mxu0
        %v4596 = vadd.f32 %v4308, %v4595
        %4597 = vdwg.mxu0
        %v4598 = vmax.f32 %v4381, 0.0
        %v4599 = vmax.f32 %v4383, 0.0
        %v4600 = vmax.f32 %v4452, 0.0
        %v4601 = vmax.f32 %v4454, 0.0
        %v4602 = vmax.f32 %v4523, 0.0
        %v4603 = vmax.f32 %v4525, 0.0
        %v4604 = vmax.f32 %v4594, 0.0
        %v4605 = vmax.f32 %v4596, 0.0
        %4606 = vst [vmem:[%s1004] sm:$0xff] %v4598
        %4607 = vst [vmem:[%s1004 + $0x8] sm:$0xff] %v4599
        %4608 = vst [vmem:[%s1011] sm:$0xff] %v4600
        %4609 = vst [vmem:[%s1011 + $0x8] sm:$0xff] %v4601
        %4610 = vst [vmem:[%s1018] sm:$0xff] %v4602
        %4611 = vst [vmem:[%s1018 + $0x8] sm:$0xff] %v4603
        %4612 = vst [vmem:[%s1025] sm:$0xff] %v4604
        %4613 = vst [vmem:[%s1025 + $0x8] sm:$0xff] %v4605
        %s4614 = sand.u32 %s482, 1
        %s4615 = scalar_lea.sflag [#allocation7], %s4614
        %s4616 = sand.u32 %s482, 1
        %s4617 = smul.addr %s4616, 16
        %s4618 = scalar_lea.vmem [#allocation22], %s4617
        %s4619 = sand.u32 %s57, 1
        %s4620 = scalar_lea.sflag [#allocation24], %s4619
        %s4621 = sand.u32 %s508, 1
        %s4622 = smul.addr %s4621, 16
        %s4623 = scalar_lea.vmem [#allocation23], %s4622
        %s4624 = sand.u32 %s57, 1
        %s4625 = scalar_lea.sflag [#allocation24], %s4624
        %s4626 = sand.u32 %s534, 1
        %s4627 = smul.addr %s4626, 16
        %s4628 = scalar_lea.vmem [#allocation25], %s4627
        %s4629 = sand.u32 %s560, 1
        %s4630 = scalar_lea.sflag [#allocation27], %s4629
        %s4631 = sand.u32 %s560, 1
        %s4632 = smul.addr %s4631, 16
        %s4633 = scalar_lea.vmem [#allocation26], %s4632
        // Predicated region
        $region129: #{tpu_custom_call.1} parent=87 // pred_check
          %p4634 = pneg %p492
        $region130: #{tpu_custom_call.1} parent=87 // pred_check_branch
          %4636 = sbr.rel (%p4634) target = $region132
        $region131: #{tpu_custom_call.1} parent=87 // pred_region
          %s4638 = ssub.s32 256, 256
          %4639 = vsyncadd %s4615, %s4638
          %s4640 = smul.addr %s57, 2
          %s4641 = smul.addr %s4640, 128
          %s4642 = scalar_lea.hbm %s17, %s4641
          %s4644 = sshll.u32 %s4618, 4
          %s4645 = int_to_ptr.vmem [resolvable:$true] %s4644
          %4647 = dma.vmem_to_hbm [thread:$0]  %s4645, 256, %s4642, %s4615
        $region132: #{tpu_custom_call.1} parent=87 // pred_fallthru
          _
        // Predicated region
        $region133: #{tpu_custom_call.1} parent=87 // pred_check
          %p4648 = pneg %p518
        $region134: #{tpu_custom_call.1} parent=87 // pred_check_branch
          %4650 = sbr.rel (%p4648) target = $region136
        $region135: #{tpu_custom_call.1} parent=87 // pred_region
          %s4652 = ssub.s32 256, 256
          %4653 = vsyncadd %s4620, %s4652
          %s4654 = smul.addr %s57, 2
          %s4655 = smul.addr %s4654, 128
          %s4656 = scalar_lea.hbm %s18, %s4655
          %s4658 = sshll.u32 %s4623, 4
          %s4659 = int_to_ptr.vmem [resolvable:$true] %s4658
          %4661 = dma.vmem_to_hbm [thread:$0]  %s4659, 256, %s4656, %s4620
        $region136: #{tpu_custom_call.1} parent=87 // pred_fallthru
          _
        // Predicated region
        $region137: #{tpu_custom_call.1} parent=87 // pred_check
          %p4662 = pneg %p544
        $region138: #{tpu_custom_call.1} parent=87 // pred_check_branch
          %4664 = sbr.rel (%p4662) target = $region140
        $region139: #{tpu_custom_call.1} parent=87 // pred_region
          %s4666 = ssub.s32 256, 256
          %4667 = vsyncadd %s4625, %s4666
          %s4668 = smul.addr %s57, 2
          %s4669 = smul.addr %s4668, 128
          %s4670 = scalar_lea.hbm %s19, %s4669
          %s4672 = sshll.u32 %s4628, 4
          %s4673 = int_to_ptr.vmem [resolvable:$true] %s4672
          %4675 = dma.vmem_to_hbm [thread:$0]  %s4673, 256, %s4670, %s4625
        $region140: #{tpu_custom_call.1} parent=87 // pred_fallthru
          _
        // Predicated region
        $region141: #{tpu_custom_call.1} parent=87 // pred_check
          %p4676 = pneg %p570
        $region142: #{tpu_custom_call.1} parent=87 // pred_check_branch
          %4678 = sbr.rel (%p4676) target = $region144
        $region143: #{tpu_custom_call.1} parent=87 // pred_region
          %s4680 = ssub.s32 256, 256
          %4681 = vsyncadd %s4630, %s4680
          %s4682 = smul.addr %s57, 2
          %s4683 = smul.addr %s4682, 128
          %s4684 = scalar_lea.hbm %s20, %s4683
          %s4686 = sshll.u32 %s4633, 4
          %s4687 = int_to_ptr.vmem [resolvable:$true] %s4686
          %4689 = dma.vmem_to_hbm [thread:$0]  %s4687, 256, %s4684, %s4630
        $region144: #{tpu_custom_call.1} parent=87 // pred_fallthru
          _
      $region88: #{tpu_custom_call.1} parent=5 // pred_fallthru
        _
      %p4690 = scmp.le.s32.totalorder 2, %s52
      // Predicated region
      $region145: #{tpu_custom_call.1} parent=5 // pred_check
        %p4691 = pneg %p4690
      $region146: #{tpu_custom_call.1} parent=5 // pred_check_branch
        %4693 = sbr.rel (%p4691) target = $region148
      $region147: #{tpu_custom_call.1} parent=5 // pred_region
        %s4694 = ssub.s32 %s52, 2
        // Predicated region
        $region149: #{tpu_custom_call.1} parent=147 // pred_check
          %p4695 = pneg %p498
        $region150: #{tpu_custom_call.1} parent=147 // pred_check_branch
          %4697 = sbr.rel (%p4695) target = $region152
        $region151: #{tpu_custom_call.1} parent=147 // pred_region
          %s4698 = sand.u32 %s483, 1
          %s4699 = scalar_lea.sflag [#allocation7], %s4698
          %s4700 = sand.u32 %s483, 1
          %s4701 = smul.addr %s4700, 16
          %s4702 = scalar_lea.vmem [#allocation22], %s4701
          %4703 = dma.done %s4699, 256
        $region152: #{tpu_custom_call.1} parent=147 // pred_fallthru
          _
        // Predicated region
        $region153: #{tpu_custom_call.1} parent=147 // pred_check
          %p4704 = pneg %p524
        $region154: #{tpu_custom_call.1} parent=147 // pred_check_branch
          %4706 = sbr.rel (%p4704) target = $region156
        $region155: #{tpu_custom_call.1} parent=147 // pred_region
          %s4707 = sand.u32 %s58, 1
          %s4708 = scalar_lea.sflag [#allocation24], %s4707
          %s4709 = sand.u32 %s509, 1
          %s4710 = smul.addr %s4709, 16
          %s4711 = scalar_lea.vmem [#allocation23], %s4710
          %4712 = dma.done %s4708, 256
        $region156: #{tpu_custom_call.1} parent=147 // pred_fallthru
          _
        // Predicated region
        $region157: #{tpu_custom_call.1} parent=147 // pred_check
          %p4713 = pneg %p550
        $region158: #{tpu_custom_call.1} parent=147 // pred_check_branch
          %4715 = sbr.rel (%p4713) target = $region160
        $region159: #{tpu_custom_call.1} parent=147 // pred_region
          %s4716 = sand.u32 %s58, 1
          %s4717 = scalar_lea.sflag [#allocation24], %s4716
          %s4718 = sand.u32 %s535, 1
          %s4719 = smul.addr %s4718, 16
          %s4720 = scalar_lea.vmem [#allocation25], %s4719
          %4721 = dma.done %s4717, 256
        $region160: #{tpu_custom_call.1} parent=147 // pred_fallthru
          _
        // Predicated region
        $region161: #{tpu_custom_call.1} parent=147 // pred_check
          %p4722 = pneg %p576
        $region162: #{tpu_custom_call.1} parent=147 // pred_check_branch
          %4724 = sbr.rel (%p4722) target = $region164
        $region163: #{tpu_custom_call.1} parent=147 // pred_region
          %s4725 = sand.u32 %s561, 1
          %s4726 = scalar_lea.sflag [#allocation27], %s4725
          %s4727 = sand.u32 %s561, 1
          %s4728 = smul.addr %s4727, 16
          %s4729 = scalar_lea.vmem [#allocation26], %s4728
          %4730 = dma.done %s4726, 256
        $region164: #{tpu_custom_call.1} parent=147 // pred_fallthru
          _
      $region148: #{tpu_custom_call.1} parent=5 // pred_fallthru
        _
    $region6: #{tpu_custom_call.1} parent=1 // loop_footer
      %s56 = sadd.s32 1, %s52
    $region7: #{tpu_custom_call.1} parent=1 // loop_footer_branch
      %51 = sbr.rel target = $region3
    $region8: #{tpu_custom_call.1} parent=1 // loop_exit
      _
    %4731 = vsyncpa [#allocation6], 1
    %s4732 = scalar_lea.sflag [#allocation6], 1
    %4733 = vsyncpa %s4732, 1
    %4734 = vsyncpa [#allocation9], 1
    %s4735 = scalar_lea.sflag [#allocation9], 1
    %4736 = vsyncpa %s4735, 1
    %4737 = vsyncpa [#allocation12], 1
    %s4738 = scalar_lea.sflag [#allocation12], 1
    %4739 = vsyncpa %s4738, 1
    %4740 = vsyncpa [#allocation15], 1
    %s4741 = scalar_lea.sflag [#allocation15], 1
    %4742 = vsyncpa %s4741, 1
    %4743 = vsyncpa [#allocation18], 1
    %s4744 = scalar_lea.sflag [#allocation18], 1
    %4745 = vsyncpa %s4744, 1
    %4746 = vsyncpa [#allocation21], 1
    %4747 = vsyncpa [#allocation7], 1
    %s4748 = scalar_lea.sflag [#allocation7], 1
    %4749 = vsyncpa %s4748, 1
    %4750 = vsyncpa [#allocation24], 1
    %s4751 = scalar_lea.sflag [#allocation24], 1
    %4752 = vsyncpa %s4751, 1
    %4753 = vsyncpa [#allocation27], 1
    %s4754 = scalar_lea.sflag [#allocation27], 1
    %4755 = vsyncpa %s4754, 1

</llo_original>
